<compile_context>
chip_gen: v6e
topology: v6e:2x2x1
jax: 0.10.0
libtpu: 0.0.40
codegen_flags: <defaults>
</compile_context>

<pallas_src>
import functools

import jax
import jax.numpy as jnp
from jax.experimental import pallas as pl
from jax.experimental.pallas import tpu as pltpu

# ---- module hyperparameters (synthetic, small) ----
NUM_EDGE_TYPES = 3
LATENT_DIM = 32
NUM_NODE_FEATS = 4
MAX_LV = 3
NUM_NODES = 8           # nodes per graph
NUM_GRAPHS = 32         # batch of graphs
GRAPHS_PER_BLOCK = 16   # graphs per grid step -> rows = 16*8 = 128 stacked nodes
                        # (raise to 32 -> rows=256 on v6e/v7x when the batch
                        #  allows; keep NUM_GRAPHS // GRAPHS_PER_BLOCK even so
                        #  both v7x TensorCores get a grid step)


def mean_field_kernel(node_ref, adj_ref, wn_ref, bn_ref,
                      wc_ref, bc_ref, wm_ref, bm_ref, out_ref, *, matmul_dtype):
    """Mean-field forward for one group of graphs (nodes stacked to `rows`)."""
    L, E = LATENT_DIM, NUM_EDGE_TYPES
    cdt = matmul_dtype

    # input_node_linear = w_n2l(node_feat); input_potential = tanh(.)
    x = node_ref[...]                                                  # [rows, F] (cdt)
    h = jnp.tanh(
        jnp.dot(x, wn_ref[...], preferred_element_type=jnp.float32) + bn_ref[...]
    )                                                                  # [rows, L] f32

    for lv in range(MAX_LV):                  # static unroll over mean-field levels
        # conv_param_list[lv](h): single wide [rows,L] x [L,E*L] MXU dot.
        conv = (
            jnp.dot(h.astype(cdt), wc_ref[lv], preferred_element_type=jnp.float32)
            + bc_ref[lv]
        )                                                              # [rows, E*L] f32
        conv_c = conv.astype(cdt)

        # gnn_spmm per edge type: block-diagonal adjacency -> one dense
        # [rows,rows] x [rows,L] matmul per edge type.  The 32-lane slices and
        # the lane concat are XLU work in a non-bottleneck slot.
        msg_parts = [
            jnp.dot(adj_ref[0, e], conv_c[:, e * L:(e + 1) * L],
                    preferred_element_type=jnp.float32)
            for e in range(E)
        ]
        msg = jnp.tanh(jnp.concatenate(msg_parts, axis=1))             # [rows, E*L] f32
        # TODO(synk): if profiling shows the single-issue EUP (tanh) is the
        # binding unit on v6e/v7x, evaluate tanh in bf16 there (keep f32 on v5e).

        # merge_param_list[lv](msg) + bias + residual, then tanh.
        h = jnp.tanh(
            jnp.dot(msg.astype(cdt), wm_ref[lv], preferred_element_type=jnp.float32)
            + bm_ref[lv] + h
        )

    out_ref[...] = h.astype(out_ref.dtype)


def embed_mean_field(node_feat, adj, params,
                     graphs_per_block=GRAPHS_PER_BLOCK, matmul_dtype=jnp.bfloat16):
    wn, bn, wc, bc, wm, bm = params
    B, N, F = node_feat.shape
    E, L = NUM_EDGE_TYPES, LATENT_DIM
    gb = graphs_per_block
    assert B % gb == 0
    G = B // gb
    rows = gb * N

    # Block-diagonal per-edge-type adjacency for each group of gb graphs:
    # adj_bd[g, e] is [rows, rows] with graph (g*gb+i)'s [N,N] block on the diagonal.
    adj_g = adj.reshape(G, gb, E, N, N).transpose(0, 2, 1, 3, 4)       # [G, E, gb, N, N]
    eye = jnp.eye(gb, dtype=adj.dtype)
    adj_bd = jnp.einsum("geinm,ij->geinjm", adj_g, eye).reshape(G, E, rows, rows)

    # MXU operands in bf16 (exact for the 0/1 adjacency); biases stay f32.
    cdt = matmul_dtype
    x2 = node_feat.reshape(B * N, F).astype(cdt)
    adj_bd = adj_bd.astype(cdt)
    wn_c, wc_c, wm_c = wn.astype(cdt), wc.astype(cdt), wm.astype(cdt)

    def const_spec(shape):
        zeros = (0,) * len(shape)
        return pl.BlockSpec(shape, lambda g: zeros)   # VMEM-resident weights
    # NOTE: the constant weight blocks are tiny (<100 KiB total), so default
    # double-buffering is left in place instead of pipeline_mode tweaks.

    kernel = functools.partial(mean_field_kernel, matmul_dtype=cdt)

    out = pl.pallas_call(
        kernel,
        out_shape=jax.ShapeDtypeStruct((B * N, L), jnp.float32),
        grid=(G,),
        in_specs=[
            pl.BlockSpec((rows, F), lambda g: (g, 0)),                 # stacked node feats
            pl.BlockSpec((1, E, rows, rows), lambda g: (g, 0, 0, 0)),  # block-diag adjacency
            const_spec(wn_c.shape),
            const_spec(bn.shape),
            const_spec(wc_c.shape),
            const_spec(bc.shape),
            const_spec(wm_c.shape),
            const_spec(bm.shape),
        ],
        out_specs=pl.BlockSpec((rows, L), lambda g: (g, 0)),
        compiler_params=pltpu.CompilerParams(
            dimension_semantics=("parallel",),
        ),
    )(x2, adj_bd, wn_c, bn, wc_c, bc, wm_c, bm)
    # Scaling notes: the adjacency block is E*rows^2 bytes and double-buffered;
    # when scaling N/gb size it for v7x's 64 MiB VMEM (half of v5e/v6e) and set
    # vmem_limit_bytes explicitly.  The output last dim is L=32 (<128 lanes);
    # at realistic row counts present a lane-dense output slab via a wrapper
    # reshape to avoid masked partial stores.

    return out.reshape(B, N, L)


def reference_mean_field(node_feat, adj, params, matmul_dtype=jnp.bfloat16):
    """Pure-JAX reference mirroring PyTorch mean_field() (combined weight layout).

    Matmul operands are rounded to `matmul_dtype` with f32 accumulation so the
    reference follows the same precision policy as the kernel; pass
    matmul_dtype=jnp.float32 for a full-precision reference.
    """
    wn, bn, wc, bc, wm, bm = params
    L, E = LATENT_DIM, NUM_EDGE_TYPES
    cdt = matmul_dtype

    def dot(a, b):
        return jnp.dot(a.astype(cdt), b.astype(cdt),
                       preferred_element_type=jnp.float32)

    def one_graph(nf, a):
        h = jnp.tanh(dot(nf, wn) + bn)
        for lv in range(MAX_LV):
            conv_feat = dot(h, wc[lv]) + bc[lv]
            msgs = [dot(a[e], conv_feat[:, e * L:(e + 1) * L]) for e in range(E)]
            msg = jnp.tanh(jnp.concatenate(msgs, axis=1))
            h = jnp.tanh(dot(msg, wm[lv]) + bm[lv] + h)   # nn.Linear bias included
        return h

    return jax.vmap(one_graph)(node_feat, adj)


def init_params(key):
    """Deterministic synthetic parameter init (shapes from EmbedMeanField.__init__)."""
    L, F, E, LV = LATENT_DIM, NUM_NODE_FEATS, NUM_EDGE_TYPES, MAX_LV
    ks = jax.random.split(key, 6)
    scale = 0.1
    wn = scale * jax.random.normal(ks[0], (F, L), jnp.float32)
    bn = scale * jax.random.normal(ks[1], (1, L), jnp.float32)
    wc = scale * jax.random.normal(ks[2], (LV, L, E * L), jnp.float32)
    bc = scale * jax.random.normal(ks[3], (LV, 1, E * L), jnp.float32)
    wm = scale * jax.random.normal(ks[4], (LV, E * L, L), jnp.float32)
    bm = scale * jax.random.normal(ks[5], (LV, 1, L), jnp.float32)
    # TODO(synk): state_gru (nn.GRUCell) is declared in __init__ but never used in
    # forward/mean_field, so it is intentionally not implemented here.
    return wn, bn, wc, bc, wm, bm


if __name__ == "__main__":
    key = jax.random.PRNGKey(0)
    k_feat, k_adj, k_par = jax.random.split(key, 3)

    # Synthetic batch of graphs: B graphs, N nodes each, dense per-edge-type
    # adjacency (stand-in for the S2VLIB sp_list spmm).
    node_feat = jax.random.normal(
        k_feat, (NUM_GRAPHS, NUM_NODES, NUM_NODE_FEATS), jnp.float32)
    adj_raw = jax.random.uniform(
        k_adj, (NUM_GRAPHS, NUM_EDGE_TYPES, NUM_NODES, NUM_NODES))
    adj = (adj_raw > 0.6).astype(jnp.float32)   # sparse-ish 0/1 adjacency per edge type

    params = init_params(k_par)

    out = embed_mean_field(node_feat, adj, params)
    out = jax.block_until_ready(out)

    ref = reference_mean_field(node_feat, adj, params, matmul_dtype=jnp.bfloat16)
    assert out.shape == (NUM_GRAPHS, NUM_NODES, LATENT_DIM)
    max_err = float(jnp.max(jnp.abs(out - ref)))
    assert jnp.allclose(out, ref, atol=5e-3, rtol=5e-3), (
        f"mismatch vs JAX reference, max abs err={max_err}")

    print("KERNEL_OK")
</pallas_src>

<mosaic_0001>
module attributes {stable_mosaic.version = 11 : i64} {
  func.func @mean_field_kernel(%arg0: i32, %arg1: memref<128x4xbf16, #tpu.memory_space<vmem>>, %arg2: memref<1x3x128x128xbf16, #tpu.memory_space<vmem>>, %arg3: memref<4x32xbf16, #tpu.memory_space<vmem>>, %arg4: memref<1x32xf32, #tpu.memory_space<vmem>>, %arg5: memref<3x32x96xbf16, #tpu.memory_space<vmem>>, %arg6: memref<3x1x96xf32, #tpu.memory_space<vmem>>, %arg7: memref<3x96x32xbf16, #tpu.memory_space<vmem>>, %arg8: memref<3x1x32xf32, #tpu.memory_space<vmem>>, %arg9: memref<128x32xf32, #tpu.memory_space<vmem>>) attributes {dimension_semantics = [#tpu.dimension_semantics<parallel>], iteration_bounds = array<i64: 2>, scalar_prefetch = 0 : i64, scratch_operands = 0 : i64, tpu.core_type = #tpu.core_type<tc>, window_params = [{transform_indices = @transform_0, window_bounds = array<i64: 128, 4>}, {transform_indices = @transform_1, window_bounds = array<i64: 1, 3, 128, 128>}, {pipeline_mode = #tpu.pipeline_mode<synchronous>, transform_indices = @transform_2, window_bounds = array<i64: 4, 32>}, {pipeline_mode = #tpu.pipeline_mode<synchronous>, transform_indices = @transform_3, window_bounds = array<i64: 1, 32>}, {pipeline_mode = #tpu.pipeline_mode<synchronous>, transform_indices = @transform_4, window_bounds = array<i64: 3, 32, 96>}, {pipeline_mode = #tpu.pipeline_mode<synchronous>, transform_indices = @transform_5, window_bounds = array<i64: 3, 1, 96>}, {pipeline_mode = #tpu.pipeline_mode<synchronous>, transform_indices = @transform_6, window_bounds = array<i64: 3, 96, 32>}, {pipeline_mode = #tpu.pipeline_mode<synchronous>, transform_indices = @transform_7, window_bounds = array<i64: 3, 1, 32>}, {transform_indices = @transform_8, window_bounds = array<i64: 128, 32>}]} {
    %c0 = arith.constant 0 : index
    %c0_0 = arith.constant 0 : index
    %0 = vector.load %arg1[%c0, %c0_0] : memref<128x4xbf16, #tpu.memory_space<vmem>>, vector<128x4xbf16>
    %c0_1 = arith.constant 0 : index
    %c0_2 = arith.constant 0 : index
    %1 = vector.load %arg3[%c0_1, %c0_2] : memref<4x32xbf16, #tpu.memory_space<vmem>>, vector<4x32xbf16>
    %cst = arith.constant dense<0.000000e+00> : vector<128x32xf32>
    %2 = tpu.matmul %0, %1, %cst {dimension_numbers = #tpu.dot_dimension_numbers<[1], [0], [0], [1], [0, 0, 1, 1], [], []>} : vector<128x4xbf16>, vector<4x32xbf16>, vector<128x32xf32> -> vector<128x32xf32>
    %c0_3 = arith.constant 0 : index
    %c0_4 = arith.constant 0 : index
    %3 = vector.load %arg4[%c0_3, %c0_4] : memref<1x32xf32, #tpu.memory_space<vmem>>, vector<1x32xf32>
    %4 = vector.broadcast %3 : vector<1x32xf32> to vector<128x32xf32>
    %5 = arith.addf %2, %4 : vector<128x32xf32>
    %6 = math.tanh %5 : vector<128x32xf32>
    %7 = arith.truncf %6 : vector<128x32xf32> to vector<128x32xbf16>
    %c0_5 = arith.constant 0 : index
    %c0_6 = arith.constant 0 : index
    %c0_7 = arith.constant 0 : index
    %8 = vector.load %arg5[%c0_5, %c0_6, %c0_7] : memref<3x32x96xbf16, #tpu.memory_space<vmem>>, vector<1x32x96xbf16>
    %9 = vector.shape_cast %8 : vector<1x32x96xbf16> to vector<32x96xbf16>
    %cst_8 = arith.constant dense<0.000000e+00> : vector<128x96xf32>
    %10 = tpu.matmul %7, %9, %cst_8 {dimension_numbers = #tpu.dot_dimension_numbers<[1], [0], [0], [1], [0, 0, 1, 1], [], []>} : vector<128x32xbf16>, vector<32x96xbf16>, vector<128x96xf32> -> vector<128x96xf32>
    %c0_9 = arith.constant 0 : index
    %c0_10 = arith.constant 0 : index
    %c0_11 = arith.constant 0 : index
    %11 = vector.load %arg6[%c0_9, %c0_10, %c0_11] : memref<3x1x96xf32, #tpu.memory_space<vmem>>, vector<1x1x96xf32>
    %12 = vector.shape_cast %11 : vector<1x1x96xf32> to vector<1x96xf32>
    %13 = vector.broadcast %12 : vector<1x96xf32> to vector<128x96xf32>
    %14 = arith.addf %10, %13 : vector<128x96xf32>
    %15 = arith.truncf %14 : vector<128x96xf32> to vector<128x96xbf16>
    %c0_12 = arith.constant 0 : index
    %c0_13 = arith.constant 0 : index
    %c0_14 = arith.constant 0 : index
    %c0_15 = arith.constant 0 : index
    %16 = vector.load %arg2[%c0_12, %c0_13, %c0_14, %c0_15] : memref<1x3x128x128xbf16, #tpu.memory_space<vmem>>, vector<1x1x128x128xbf16>
    %17 = vector.shape_cast %16 : vector<1x1x128x128xbf16> to vector<128x128xbf16>
    %18 = vector.extract_strided_slice %15 {offsets = [0, 0], sizes = [128, 32], strides = [1, 1]} : vector<128x96xbf16> to vector<128x32xbf16>
    %cst_16 = arith.constant dense<0.000000e+00> : vector<128x32xf32>
    %19 = tpu.matmul %17, %18, %cst_16 {dimension_numbers = #tpu.dot_dimension_numbers<[1], [0], [0], [1], [0, 0, 1, 1], [], []>} : vector<128x128xbf16>, vector<128x32xbf16>, vector<128x32xf32> -> vector<128x32xf32>
    %c0_17 = arith.constant 0 : index
    %c1 = arith.constant 1 : index
    %c0_18 = arith.constant 0 : index
    %c0_19 = arith.constant 0 : index
    %20 = vector.load %arg2[%c0_17, %c1, %c0_18, %c0_19] : memref<1x3x128x128xbf16, #tpu.memory_space<vmem>>, vector<1x1x128x128xbf16>
    %21 = vector.shape_cast %20 : vector<1x1x128x128xbf16> to vector<128x128xbf16>
    %22 = vector.extract_strided_slice %15 {offsets = [0, 32], sizes = [128, 32], strides = [1, 1]} : vector<128x96xbf16> to vector<128x32xbf16>
    %cst_20 = arith.constant dense<0.000000e+00> : vector<128x32xf32>
    %23 = tpu.matmul %21, %22, %cst_20 {dimension_numbers = #tpu.dot_dimension_numbers<[1], [0], [0], [1], [0, 0, 1, 1], [], []>} : vector<128x128xbf16>, vector<128x32xbf16>, vector<128x32xf32> -> vector<128x32xf32>
    %c0_21 = arith.constant 0 : index
    %c2 = arith.constant 2 : index
    %c0_22 = arith.constant 0 : index
    %c0_23 = arith.constant 0 : index
    %24 = vector.load %arg2[%c0_21, %c2, %c0_22, %c0_23] : memref<1x3x128x128xbf16, #tpu.memory_space<vmem>>, vector<1x1x128x128xbf16>
    %25 = vector.shape_cast %24 : vector<1x1x128x128xbf16> to vector<128x128xbf16>
    %26 = vector.extract_strided_slice %15 {offsets = [0, 64], sizes = [128, 32], strides = [1, 1]} : vector<128x96xbf16> to vector<128x32xbf16>
    %cst_24 = arith.constant dense<0.000000e+00> : vector<128x32xf32>
    %27 = tpu.matmul %25, %26, %cst_24 {dimension_numbers = #tpu.dot_dimension_numbers<[1], [0], [0], [1], [0, 0, 1, 1], [], []>} : vector<128x128xbf16>, vector<128x32xbf16>, vector<128x32xf32> -> vector<128x32xf32>
    %28 = tpu.concatenate %19, %23, %27 in 1 : vector<128x32xf32>, vector<128x32xf32>, vector<128x32xf32> -> vector<128x96xf32>
    %29 = math.tanh %28 : vector<128x96xf32>
    %30 = arith.truncf %29 : vector<128x96xf32> to vector<128x96xbf16>
    %c0_25 = arith.constant 0 : index
    %c0_26 = arith.constant 0 : index
    %c0_27 = arith.constant 0 : index
    %31 = vector.load %arg7[%c0_25, %c0_26, %c0_27] : memref<3x96x32xbf16, #tpu.memory_space<vmem>>, vector<1x96x32xbf16>
    %32 = vector.shape_cast %31 : vector<1x96x32xbf16> to vector<96x32xbf16>
    %cst_28 = arith.constant dense<0.000000e+00> : vector<128x32xf32>
    %33 = tpu.matmul %30, %32, %cst_28 {dimension_numbers = #tpu.dot_dimension_numbers<[1], [0], [0], [1], [0, 0, 1, 1], [], []>} : vector<128x96xbf16>, vector<96x32xbf16>, vector<128x32xf32> -> vector<128x32xf32>
    %c0_29 = arith.constant 0 : index
    %c0_30 = arith.constant 0 : index
    %c0_31 = arith.constant 0 : index
    %34 = vector.load %arg8[%c0_29, %c0_30, %c0_31] : memref<3x1x32xf32, #tpu.memory_space<vmem>>, vector<1x1x32xf32>
    %35 = vector.shape_cast %34 : vector<1x1x32xf32> to vector<1x32xf32>
    %36 = vector.broadcast %35 : vector<1x32xf32> to vector<128x32xf32>
    %37 = arith.addf %33, %36 : vector<128x32xf32>
    %38 = arith.addf %37, %6 : vector<128x32xf32>
    %39 = math.tanh %38 : vector<128x32xf32>
    %40 = arith.truncf %39 : vector<128x32xf32> to vector<128x32xbf16>
    %c1_32 = arith.constant 1 : index
    %c0_33 = arith.constant 0 : index
    %c0_34 = arith.constant 0 : index
    %41 = vector.load %arg5[%c1_32, %c0_33, %c0_34] : memref<3x32x96xbf16, #tpu.memory_space<vmem>>, vector<1x32x96xbf16>
    %42 = vector.shape_cast %41 : vector<1x32x96xbf16> to vector<32x96xbf16>
    %cst_35 = arith.constant dense<0.000000e+00> : vector<128x96xf32>
    %43 = tpu.matmul %40, %42, %cst_35 {dimension_numbers = #tpu.dot_dimension_numbers<[1], [0], [0], [1], [0, 0, 1, 1], [], []>} : vector<128x32xbf16>, vector<32x96xbf16>, vector<128x96xf32> -> vector<128x96xf32>
    %c1_36 = arith.constant 1 : index
    %c0_37 = arith.constant 0 : index
    %c0_38 = arith.constant 0 : index
    %44 = vector.load %arg6[%c1_36, %c0_37, %c0_38] : memref<3x1x96xf32, #tpu.memory_space<vmem>>, vector<1x1x96xf32>
    %45 = vector.shape_cast %44 : vector<1x1x96xf32> to vector<1x96xf32>
    %46 = vector.broadcast %45 : vector<1x96xf32> to vector<128x96xf32>
    %47 = arith.addf %43, %46 : vector<128x96xf32>
    %48 = arith.truncf %47 : vector<128x96xf32> to vector<128x96xbf16>
    %c0_39 = arith.constant 0 : index
    %c0_40 = arith.constant 0 : index
    %c0_41 = arith.constant 0 : index
    %c0_42 = arith.constant 0 : index
    %49 = vector.load %arg2[%c0_39, %c0_40, %c0_41, %c0_42] : memref<1x3x128x128xbf16, #tpu.memory_space<vmem>>, vector<1x1x128x128xbf16>
    %50 = vector.shape_cast %49 : vector<1x1x128x128xbf16> to vector<128x128xbf16>
    %51 = vector.extract_strided_slice %48 {offsets = [0, 0], sizes = [128, 32], strides = [1, 1]} : vector<128x96xbf16> to vector<128x32xbf16>
    %cst_43 = arith.constant dense<0.000000e+00> : vector<128x32xf32>
    %52 = tpu.matmul %50, %51, %cst_43 {dimension_numbers = #tpu.dot_dimension_numbers<[1], [0], [0], [1], [0, 0, 1, 1], [], []>} : vector<128x128xbf16>, vector<128x32xbf16>, vector<128x32xf32> -> vector<128x32xf32>
    %c0_44 = arith.constant 0 : index
    %c1_45 = arith.constant 1 : index
    %c0_46 = arith.constant 0 : index
    %c0_47 = arith.constant 0 : index
    %53 = vector.load %arg2[%c0_44, %c1_45, %c0_46, %c0_47] : memref<1x3x128x128xbf16, #tpu.memory_space<vmem>>, vector<1x1x128x128xbf16>
    %54 = vector.shape_cast %53 : vector<1x1x128x128xbf16> to vector<128x128xbf16>
    %55 = vector.extract_strided_slice %48 {offsets = [0, 32], sizes = [128, 32], strides = [1, 1]} : vector<128x96xbf16> to vector<128x32xbf16>
    %cst_48 = arith.constant dense<0.000000e+00> : vector<128x32xf32>
    %56 = tpu.matmul %54, %55, %cst_48 {dimension_numbers = #tpu.dot_dimension_numbers<[1], [0], [0], [1], [0, 0, 1, 1], [], []>} : vector<128x128xbf16>, vector<128x32xbf16>, vector<128x32xf32> -> vector<128x32xf32>
    %c0_49 = arith.constant 0 : index
    %c2_50 = arith.constant 2 : index
    %c0_51 = arith.constant 0 : index
    %c0_52 = arith.constant 0 : index
    %57 = vector.load %arg2[%c0_49, %c2_50, %c0_51, %c0_52] : memref<1x3x128x128xbf16, #tpu.memory_space<vmem>>, vector<1x1x128x128xbf16>
    %58 = vector.shape_cast %57 : vector<1x1x128x128xbf16> to vector<128x128xbf16>
    %59 = vector.extract_strided_slice %48 {offsets = [0, 64], sizes = [128, 32], strides = [1, 1]} : vector<128x96xbf16> to vector<128x32xbf16>
    %cst_53 = arith.constant dense<0.000000e+00> : vector<128x32xf32>
    %60 = tpu.matmul %58, %59, %cst_53 {dimension_numbers = #tpu.dot_dimension_numbers<[1], [0], [0], [1], [0, 0, 1, 1], [], []>} : vector<128x128xbf16>, vector<128x32xbf16>, vector<128x32xf32> -> vector<128x32xf32>
    %61 = tpu.concatenate %52, %56, %60 in 1 : vector<128x32xf32>, vector<128x32xf32>, vector<128x32xf32> -> vector<128x96xf32>
    %62 = math.tanh %61 : vector<128x96xf32>
    %63 = arith.truncf %62 : vector<128x96xf32> to vector<128x96xbf16>
    %c1_54 = arith.constant 1 : index
    %c0_55 = arith.constant 0 : index
    %c0_56 = arith.constant 0 : index
    %64 = vector.load %arg7[%c1_54, %c0_55, %c0_56] : memref<3x96x32xbf16, #tpu.memory_space<vmem>>, vector<1x96x32xbf16>
    %65 = vector.shape_cast %64 : vector<1x96x32xbf16> to vector<96x32xbf16>
    %cst_57 = arith.constant dense<0.000000e+00> : vector<128x32xf32>
    %66 = tpu.matmul %63, %65, %cst_57 {dimension_numbers = #tpu.dot_dimension_numbers<[1], [0], [0], [1], [0, 0, 1, 1], [], []>} : vector<128x96xbf16>, vector<96x32xbf16>, vector<128x32xf32> -> vector<128x32xf32>
    %c1_58 = arith.constant 1 : index
    %c0_59 = arith.constant 0 : index
    %c0_60 = arith.constant 0 : index
    %67 = vector.load %arg8[%c1_58, %c0_59, %c0_60] : memref<3x1x32xf32, #tpu.memory_space<vmem>>, vector<1x1x32xf32>
    %68 = vector.shape_cast %67 : vector<1x1x32xf32> to vector<1x32xf32>
    %69 = vector.broadcast %68 : vector<1x32xf32> to vector<128x32xf32>
    %70 = arith.addf %66, %69 : vector<128x32xf32>
    %71 = arith.addf %70, %39 : vector<128x32xf32>
    %72 = math.tanh %71 : vector<128x32xf32>
    %73 = arith.truncf %72 : vector<128x32xf32> to vector<128x32xbf16>
    %c2_61 = arith.constant 2 : index
    %c0_62 = arith.constant 0 : index
    %c0_63 = arith.constant 0 : index
    %74 = vector.load %arg5[%c2_61, %c0_62, %c0_63] : memref<3x32x96xbf16, #tpu.memory_space<vmem>>, vector<1x32x96xbf16>
    %75 = vector.shape_cast %74 : vector<1x32x96xbf16> to vector<32x96xbf16>
    %cst_64 = arith.constant dense<0.000000e+00> : vector<128x96xf32>
    %76 = tpu.matmul %73, %75, %cst_64 {dimension_numbers = #tpu.dot_dimension_numbers<[1], [0], [0], [1], [0, 0, 1, 1], [], []>} : vector<128x32xbf16>, vector<32x96xbf16>, vector<128x96xf32> -> vector<128x96xf32>
    %c2_65 = arith.constant 2 : index
    %c0_66 = arith.constant 0 : index
    %c0_67 = arith.constant 0 : index
    %77 = vector.load %arg6[%c2_65, %c0_66, %c0_67] : memref<3x1x96xf32, #tpu.memory_space<vmem>>, vector<1x1x96xf32>
    %78 = vector.shape_cast %77 : vector<1x1x96xf32> to vector<1x96xf32>
    %79 = vector.broadcast %78 : vector<1x96xf32> to vector<128x96xf32>
    %80 = arith.addf %76, %79 : vector<128x96xf32>
    %81 = arith.truncf %80 : vector<128x96xf32> to vector<128x96xbf16>
    %c0_68 = arith.constant 0 : index
    %c0_69 = arith.constant 0 : index
    %c0_70 = arith.constant 0 : index
    %c0_71 = arith.constant 0 : index
    %82 = vector.load %arg2[%c0_68, %c0_69, %c0_70, %c0_71] : memref<1x3x128x128xbf16, #tpu.memory_space<vmem>>, vector<1x1x128x128xbf16>
    %83 = vector.shape_cast %82 : vector<1x1x128x128xbf16> to vector<128x128xbf16>
    %84 = vector.extract_strided_slice %81 {offsets = [0, 0], sizes = [128, 32], strides = [1, 1]} : vector<128x96xbf16> to vector<128x32xbf16>
    %cst_72 = arith.constant dense<0.000000e+00> : vector<128x32xf32>
    %85 = tpu.matmul %83, %84, %cst_72 {dimension_numbers = #tpu.dot_dimension_numbers<[1], [0], [0], [1], [0, 0, 1, 1], [], []>} : vector<128x128xbf16>, vector<128x32xbf16>, vector<128x32xf32> -> vector<128x32xf32>
    %c0_73 = arith.constant 0 : index
    %c1_74 = arith.constant 1 : index
    %c0_75 = arith.constant 0 : index
    %c0_76 = arith.constant 0 : index
    %86 = vector.load %arg2[%c0_73, %c1_74, %c0_75, %c0_76] : memref<1x3x128x128xbf16, #tpu.memory_space<vmem>>, vector<1x1x128x128xbf16>
    %87 = vector.shape_cast %86 : vector<1x1x128x128xbf16> to vector<128x128xbf16>
    %88 = vector.extract_strided_slice %81 {offsets = [0, 32], sizes = [128, 32], strides = [1, 1]} : vector<128x96xbf16> to vector<128x32xbf16>
    %cst_77 = arith.constant dense<0.000000e+00> : vector<128x32xf32>
    %89 = tpu.matmul %87, %88, %cst_77 {dimension_numbers = #tpu.dot_dimension_numbers<[1], [0], [0], [1], [0, 0, 1, 1], [], []>} : vector<128x128xbf16>, vector<128x32xbf16>, vector<128x32xf32> -> vector<128x32xf32>
    %c0_78 = arith.constant 0 : index
    %c2_79 = arith.constant 2 : index
    %c0_80 = arith.constant 0 : index
    %c0_81 = arith.constant 0 : index
    %90 = vector.load %arg2[%c0_78, %c2_79, %c0_80, %c0_81] : memref<1x3x128x128xbf16, #tpu.memory_space<vmem>>, vector<1x1x128x128xbf16>
    %91 = vector.shape_cast %90 : vector<1x1x128x128xbf16> to vector<128x128xbf16>
    %92 = vector.extract_strided_slice %81 {offsets = [0, 64], sizes = [128, 32], strides = [1, 1]} : vector<128x96xbf16> to vector<128x32xbf16>
    %cst_82 = arith.constant dense<0.000000e+00> : vector<128x32xf32>
    %93 = tpu.matmul %91, %92, %cst_82 {dimension_numbers = #tpu.dot_dimension_numbers<[1], [0], [0], [1], [0, 0, 1, 1], [], []>} : vector<128x128xbf16>, vector<128x32xbf16>, vector<128x32xf32> -> vector<128x32xf32>
    %94 = tpu.concatenate %85, %89, %93 in 1 : vector<128x32xf32>, vector<128x32xf32>, vector<128x32xf32> -> vector<128x96xf32>
    %95 = math.tanh %94 : vector<128x96xf32>
    %96 = arith.truncf %95 : vector<128x96xf32> to vector<128x96xbf16>
    %c2_83 = arith.constant 2 : index
    %c0_84 = arith.constant 0 : index
    %c0_85 = arith.constant 0 : index
    %97 = vector.load %arg7[%c2_83, %c0_84, %c0_85] : memref<3x96x32xbf16, #tpu.memory_space<vmem>>, vector<1x96x32xbf16>
    %98 = vector.shape_cast %97 : vector<1x96x32xbf16> to vector<96x32xbf16>
    %cst_86 = arith.constant dense<0.000000e+00> : vector<128x32xf32>
    %99 = tpu.matmul %96, %98, %cst_86 {dimension_numbers = #tpu.dot_dimension_numbers<[1], [0], [0], [1], [0, 0, 1, 1], [], []>} : vector<128x96xbf16>, vector<96x32xbf16>, vector<128x32xf32> -> vector<128x32xf32>
    %c2_87 = arith.constant 2 : index
    %c0_88 = arith.constant 0 : index
    %c0_89 = arith.constant 0 : index
    %100 = vector.load %arg8[%c2_87, %c0_88, %c0_89] : memref<3x1x32xf32, #tpu.memory_space<vmem>>, vector<1x1x32xf32>
    %101 = vector.shape_cast %100 : vector<1x1x32xf32> to vector<1x32xf32>
    %102 = vector.broadcast %101 : vector<1x32xf32> to vector<128x32xf32>
    %103 = arith.addf %99, %102 : vector<128x32xf32>
    %104 = arith.addf %103, %72 : vector<128x32xf32>
    %105 = math.tanh %104 : vector<128x32xf32>
    %c0_90 = arith.constant 0 : index
    %c0_91 = arith.constant 0 : index
    %106 = vector.load %arg9[%c0_90, %c0_91] : memref<128x32xf32, #tpu.memory_space<vmem>>, vector<128x32xf32>
    tpu.vector_store %arg9[%c0_90, %c0_91], %105 {strides = array<i32>} : memref<128x32xf32, #tpu.memory_space<vmem>>, vector<128x32xf32>,
    return
  }
  func.func @transform_0(%arg0: i32) -> (i32, i32) {
    %c0_i32 = arith.constant 0 : i32
    %c0_i32_0 = arith.constant 0 : i32
    return %arg0, %c0_i32 : i32, i32
  }
  func.func @transform_1(%arg0: i32) -> (i32, i32, i32, i32) {
    %c0_i32 = arith.constant 0 : i32
    %c0_i32_0 = arith.constant 0 : i32
    %c0_i32_1 = arith.constant 0 : i32
    %c0_i32_2 = arith.constant 0 : i32
    return %arg0, %c0_i32, %c0_i32_0, %c0_i32_1 : i32, i32, i32, i32
  }
  func.func @transform_2(%arg0: i32) -> (i32, i32) {
    %c0_i32 = arith.constant 0 : i32
    %c0_i32_0 = arith.constant 0 : i32
    %c0_i32_1 = arith.constant 0 : i32
    return %c0_i32, %c0_i32_0 : i32, i32
  }
  func.func @transform_3(%arg0: i32) -> (i32, i32) {
    %c0_i32 = arith.constant 0 : i32
    %c0_i32_0 = arith.constant 0 : i32
    %c0_i32_1 = arith.constant 0 : i32
    return %c0_i32, %c0_i32_0 : i32, i32
  }
  func.func @transform_4(%arg0: i32) -> (i32, i32, i32) {
    %c0_i32 = arith.constant 0 : i32
    %c0_i32_0 = arith.constant 0 : i32
    %c0_i32_1 = arith.constant 0 : i32
    %c0_i32_2 = arith.constant 0 : i32
    return %c0_i32, %c0_i32_0, %c0_i32_1 : i32, i32, i32
  }
  func.func @transform_5(%arg0: i32) -> (i32, i32, i32) {
    %c0_i32 = arith.constant 0 : i32
    %c0_i32_0 = arith.constant 0 : i32
    %c0_i32_1 = arith.constant 0 : i32
    %c0_i32_2 = arith.constant 0 : i32
    return %c0_i32, %c0_i32_0, %c0_i32_1 : i32, i32, i32
  }
  func.func @transform_6(%arg0: i32) -> (i32, i32, i32) {
    %c0_i32 = arith.constant 0 : i32
    %c0_i32_0 = arith.constant 0 : i32
    %c0_i32_1 = arith.constant 0 : i32
    %c0_i32_2 = arith.constant 0 : i32
    return %c0_i32, %c0_i32_0, %c0_i32_1 : i32, i32, i32
  }
  func.func @transform_7(%arg0: i32) -> (i32, i32, i32) {
    %c0_i32 = arith.constant 0 : i32
    %c0_i32_0 = arith.constant 0 : i32
    %c0_i32_1 = arith.constant 0 : i32
    %c0_i32_2 = arith.constant 0 : i32
    return %c0_i32, %c0_i32_0, %c0_i32_1 : i32, i32, i32
  }
  func.func @transform_8(%arg0: i32) -> (i32, i32) {
    %c0_i32 = arith.constant 0 : i32
    %c0_i32_0 = arith.constant 0 : i32
    return %arg0, %c0_i32 : i32, i32
  }
}

</mosaic_0001>

<llo_original>
// kernel: tpu_custom_call.1
$region0: #{tpu_custom_call.1}
  #allocation0 [shape = 'u32[]', space=smem, size = 0x4, offset = 0x4, fixed_abs, tag = 'smem constant byte address 0x4 - core index']
  #allocation1 [shape = 'u32[144,128]{1,0:T(1,128)}', space=vmem, size = 0x12000, scoped, tag = 'internal scratch']
  %s0 = inlined_call_operand.vmem [shape: bf16[256,4], index: 0, kind: input, shape index: {}]
  %s1 = inlined_call_operand.hbm [shape: bf16[2,3,128,128], index: 1, kind: input, shape index: {}]
  %s2 = inlined_call_operand.vmem [shape: bf16[4,32], index: 2, kind: input, shape index: {}]
  %s3 = inlined_call_operand.vmem [shape: f32[1,32], index: 3, kind: input, shape index: {}]
  %s4 = inlined_call_operand.vmem [shape: bf16[3,32,96], index: 4, kind: input, shape index: {}]
  %s5 = inlined_call_operand.vmem [shape: f32[3,1,96], index: 5, kind: input, shape index: {}]
  %s6 = inlined_call_operand.vmem [shape: bf16[3,96,32], index: 6, kind: input, shape index: {}]
  %s7 = inlined_call_operand.vmem [shape: f32[3,1,32], index: 7, kind: input, shape index: {}]
  %s8 = inlined_call_operand.vmem [shape: f32[256,32], index: 8, kind: output, shape index: {}]
  %s9 = sld [smem:[#allocation0]]
  $region69: #{tpu_custom_call.1} parent=0
    _
  %s11 = ssub.s32 1, %s9
  %s12 = scalar_select 0, %s11, %s9
  $region1: #{tpu_custom_call.1} parent=0
    #allocation2 [shape = 'u8[196608]{0}', space=vmem, size = 0x30000, scoped, tag = 'input window, operand 1']
    #allocation3 [shape = 's32[2]{0}', space=sflag, size = 0x8, scoped, tag = 'scoped memory for tpu_custom_call.1']
    %13 = vsyncpa [#allocation3], 0
    %s14 = scalar_lea.sflag [#allocation3], 1
    %15 = vsyncpa %s14, 0
    loop: start=0, step=1, limit=4
    $region2: #{tpu_custom_call.1} parent=1 // loop_pre_header
      _
    $region3: #{tpu_custom_call.1} parent=1 // loop_header
      %s17 = sphi 0, %s21
      %p18 = scmp.ge.s32.totalorder %s17, 4
      %s27 = sphi 0, %s29
      %s30 = sphi 0, %s27
      %s31 = sphi 0, %s30
      %s47 = sphi 0, %s31
      %s53 = sphi 0, %s55
      %s56 = sphi 0, %s53
      %s57 = sphi 0, %s56
      %s73 = sphi 0, %s57
      %s77 = sphi 0, %s77
      %s79 = sphi 0, %s77
      %s80 = sphi 0, %s79
      %s94 = sphi 0, %s80
      %s98 = sphi 0, %s98
      %s100 = sphi 0, %s98
      %s101 = sphi 0, %s100
      %s115 = sphi 0, %s101
      %s119 = sphi 0, %s119
      %s121 = sphi 0, %s119
      %s122 = sphi 0, %s121
      %s136 = sphi 0, %s122
      %s140 = sphi 0, %s140
      %s142 = sphi 0, %s140
      %s143 = sphi 0, %s142
      %s157 = sphi 0, %s143
      %s161 = sphi 0, %s161
      %s163 = sphi 0, %s161
      %s164 = sphi 0, %s163
      %s178 = sphi 0, %s164
      %s182 = sphi 0, %s182
      %s184 = sphi 0, %s182
      %s185 = sphi 0, %s184
      %s199 = sphi 0, %s185
      %s205 = sphi 0, %s207
      %s208 = sphi 0, %s205
      %s209 = sphi 0, %s208
      %s225 = sphi 0, %s209
    $region4: #{tpu_custom_call.1} parent=1 // loop_header_branch
      %20 = sbr.rel (%p18) target = $region8
    $region5: #{tpu_custom_call.1} parent=1 // loop_body
      %s22 = ssub.s32 %s17, 1
      %s23 = ssub.s32 %s17, 2
      %s24 = sadd.s32 %s17, 1
      %s25 = ssub.s32 %s17, %s24
      %p26 = scmp.eq.s32.totalorder %s25, 0
      %s28 = sadd.s32 %s27, 1
      %s29 = scalar_select %p26, %s27, %s28
      %p32 = pneg %p26
      %p33 = scmp.eq.s32.totalorder %s17, 1
      %p34 = por %p32, %p33
      %p35 = scmp.ne.s32.totalorder %s27, %s30
      %p36 = scmp.eq.s32.totalorder %s17, 0
      %p37 = por %p35, %p36
      %p38 = scmp.ne.s32.totalorder %s27, %s30
      %p39 = scmp.eq.s32.totalorder %s22, 1
      %p40 = por %p38, %p39
      %p41 = scmp.ne.s32.totalorder %s30, %s31
      %p42 = scmp.eq.s32.totalorder %s22, 0
      %p43 = por %p41, %p42
      %p44 = scmp.ne.s32.totalorder %s30, %s31
      %p45 = scmp.eq.s32.totalorder %s23, 1
      %p46 = por %p44, %p45
      %p48 = scmp.ne.s32.totalorder %s31, %s47
      %p49 = scmp.eq.s32.totalorder %s23, 0
      %p50 = por %p48, %p49
      %s51 = ssub.s32 %s17, %s24
      %p52 = scmp.eq.s32.totalorder %s51, 0
      %s54 = sadd.s32 %s53, 1
      %s55 = scalar_select %p52, %s53, %s54
      %p58 = pneg %p52
      %p59 = scmp.eq.s32.totalorder %s17, 1
      %p60 = por %p58, %p59
      %p61 = scmp.ne.s32.totalorder %s53, %s56
      %p62 = scmp.eq.s32.totalorder %s17, 0
      %p63 = por %p61, %p62
      %p64 = scmp.ne.s32.totalorder %s53, %s56
      %p65 = scmp.eq.s32.totalorder %s22, 1
      %p66 = por %p64, %p65
      %p67 = scmp.ne.s32.totalorder %s56, %s57
      %p68 = scmp.eq.s32.totalorder %s22, 0
      %p69 = por %p67, %p68
      %p70 = scmp.ne.s32.totalorder %s56, %s57
      %p71 = scmp.eq.s32.totalorder %s23, 1
      %p72 = por %p70, %p71
      %p74 = scmp.ne.s32.totalorder %s57, %s73
      %p75 = scmp.eq.s32.totalorder %s23, 0
      %p76 = por %p74, %p75
      %s78 = sadd.s32 %s77, 1
      %p81 = scmp.eq.s32.totalorder %s17, 1
      %p82 = scmp.ne.s32.totalorder %s77, %s79
      %p83 = scmp.eq.s32.totalorder %s17, 0
      %p84 = por %p82, %p83
      %p85 = scmp.ne.s32.totalorder %s77, %s79
      %p86 = scmp.eq.s32.totalorder %s22, 1
      %p87 = por %p85, %p86
      %p88 = scmp.ne.s32.totalorder %s79, %s80
      %p89 = scmp.eq.s32.totalorder %s22, 0
      %p90 = por %p88, %p89
      %p91 = scmp.ne.s32.totalorder %s79, %s80
      %p92 = scmp.eq.s32.totalorder %s23, 1
      %p93 = por %p91, %p92
      %p95 = scmp.ne.s32.totalorder %s80, %s94
      %p96 = scmp.eq.s32.totalorder %s23, 0
      %p97 = por %p95, %p96
      %s99 = sadd.s32 %s98, 1
      %p102 = scmp.eq.s32.totalorder %s17, 1
      %p103 = scmp.ne.s32.totalorder %s98, %s100
      %p104 = scmp.eq.s32.totalorder %s17, 0
      %p105 = por %p103, %p104
      %p106 = scmp.ne.s32.totalorder %s98, %s100
      %p107 = scmp.eq.s32.totalorder %s22, 1
      %p108 = por %p106, %p107
      %p109 = scmp.ne.s32.totalorder %s100, %s101
      %p110 = scmp.eq.s32.totalorder %s22, 0
      %p111 = por %p109, %p110
      %p112 = scmp.ne.s32.totalorder %s100, %s101
      %p113 = scmp.eq.s32.totalorder %s23, 1
      %p114 = por %p112, %p113
      %p116 = scmp.ne.s32.totalorder %s101, %s115
      %p117 = scmp.eq.s32.totalorder %s23, 0
      %p118 = por %p116, %p117
      %s120 = sadd.s32 %s119, 1
      %p123 = scmp.eq.s32.totalorder %s17, 1
      %p124 = scmp.ne.s32.totalorder %s119, %s121
      %p125 = scmp.eq.s32.totalorder %s17, 0
      %p126 = por %p124, %p125
      %p127 = scmp.ne.s32.totalorder %s119, %s121
      %p128 = scmp.eq.s32.totalorder %s22, 1
      %p129 = por %p127, %p128
      %p130 = scmp.ne.s32.totalorder %s121, %s122
      %p131 = scmp.eq.s32.totalorder %s22, 0
      %p132 = por %p130, %p131
      %p133 = scmp.ne.s32.totalorder %s121, %s122
      %p134 = scmp.eq.s32.totalorder %s23, 1
      %p135 = por %p133, %p134
      %p137 = scmp.ne.s32.totalorder %s122, %s136
      %p138 = scmp.eq.s32.totalorder %s23, 0
      %p139 = por %p137, %p138
      %s141 = sadd.s32 %s140, 1
      %p144 = scmp.eq.s32.totalorder %s17, 1
      %p145 = scmp.ne.s32.totalorder %s140, %s142
      %p146 = scmp.eq.s32.totalorder %s17, 0
      %p147 = por %p145, %p146
      %p148 = scmp.ne.s32.totalorder %s140, %s142
      %p149 = scmp.eq.s32.totalorder %s22, 1
      %p150 = por %p148, %p149
      %p151 = scmp.ne.s32.totalorder %s142, %s143
      %p152 = scmp.eq.s32.totalorder %s22, 0
      %p153 = por %p151, %p152
      %p154 = scmp.ne.s32.totalorder %s142, %s143
      %p155 = scmp.eq.s32.totalorder %s23, 1
      %p156 = por %p154, %p155
      %p158 = scmp.ne.s32.totalorder %s143, %s157
      %p159 = scmp.eq.s32.totalorder %s23, 0
      %p160 = por %p158, %p159
      %s162 = sadd.s32 %s161, 1
      %p165 = scmp.eq.s32.totalorder %s17, 1
      %p166 = scmp.ne.s32.totalorder %s161, %s163
      %p167 = scmp.eq.s32.totalorder %s17, 0
      %p168 = por %p166, %p167
      %p169 = scmp.ne.s32.totalorder %s161, %s163
      %p170 = scmp.eq.s32.totalorder %s22, 1
      %p171 = por %p169, %p170
      %p172 = scmp.ne.s32.totalorder %s163, %s164
      %p173 = scmp.eq.s32.totalorder %s22, 0
      %p174 = por %p172, %p173
      %p175 = scmp.ne.s32.totalorder %s163, %s164
      %p176 = scmp.eq.s32.totalorder %s23, 1
      %p177 = por %p175, %p176
      %p179 = scmp.ne.s32.totalorder %s164, %s178
      %p180 = scmp.eq.s32.totalorder %s23, 0
      %p181 = por %p179, %p180
      %s183 = sadd.s32 %s182, 1
      %p186 = scmp.eq.s32.totalorder %s17, 1
      %p187 = scmp.ne.s32.totalorder %s182, %s184
      %p188 = scmp.eq.s32.totalorder %s17, 0
      %p189 = por %p187, %p188
      %p190 = scmp.ne.s32.totalorder %s182, %s184
      %p191 = scmp.eq.s32.totalorder %s22, 1
      %p192 = por %p190, %p191
      %p193 = scmp.ne.s32.totalorder %s184, %s185
      %p194 = scmp.eq.s32.totalorder %s22, 0
      %p195 = por %p193, %p194
      %p196 = scmp.ne.s32.totalorder %s184, %s185
      %p197 = scmp.eq.s32.totalorder %s23, 1
      %p198 = por %p196, %p197
      %p200 = scmp.ne.s32.totalorder %s185, %s199
      %p201 = scmp.eq.s32.totalorder %s23, 0
      %p202 = por %p200, %p201
      %s203 = ssub.s32 %s17, %s24
      %p204 = scmp.eq.s32.totalorder %s203, 0
      %s206 = sadd.s32 %s205, 1
      %s207 = scalar_select %p204, %s205, %s206
      %p210 = pneg %p204
      %p211 = scmp.eq.s32.totalorder %s17, 1
      %p212 = por %p210, %p211
      %p213 = scmp.ne.s32.totalorder %s205, %s208
      %p214 = scmp.eq.s32.totalorder %s17, 0
      %p215 = por %p213, %p214
      %p216 = scmp.ne.s32.totalorder %s205, %s208
      %p217 = scmp.eq.s32.totalorder %s22, 1
      %p218 = por %p216, %p217
      %p219 = scmp.ne.s32.totalorder %s208, %s209
      %p220 = scmp.eq.s32.totalorder %s22, 0
      %p221 = por %p219, %p220
      %p222 = scmp.ne.s32.totalorder %s208, %s209
      %p223 = scmp.eq.s32.totalorder %s23, 1
      %p224 = por %p222, %p223
      %p226 = scmp.ne.s32.totalorder %s209, %s225
      %p227 = scmp.eq.s32.totalorder %s23, 0
      %p228 = por %p226, %p227
      %p229 = scmp.le.s32.totalorder 1, %s17
      %p230 = scmp.lt.s32.totalorder %s17, 3
      %p231 = pnand %p229, %p230
      %p232 = pneg %p231
      // Predicated region
      $region9: #{tpu_custom_call.1} parent=5 // pred_check
        _
      $region10: #{tpu_custom_call.1} parent=5 // pred_check_branch
        %234 = sbr.rel (%p231) target = $region12
      $region11: #{tpu_custom_call.1} parent=5 // pred_region
        %s235 = ssub.s32 %s17, 1
        // Predicated region
        $region13: #{tpu_custom_call.1} parent=11 // pred_check
          %p236 = pneg %p90
        $region14: #{tpu_custom_call.1} parent=11 // pred_check_branch
          %238 = sbr.rel (%p236) target = $region16
        $region15: #{tpu_custom_call.1} parent=11 // pred_region
          _
        $region16: #{tpu_custom_call.1} parent=11 // pred_fallthru
          _
        // Predicated region
        $region17: #{tpu_custom_call.1} parent=11 // pred_check
          %p239 = pneg %p111
        $region18: #{tpu_custom_call.1} parent=11 // pred_check_branch
          %241 = sbr.rel (%p239) target = $region20
        $region19: #{tpu_custom_call.1} parent=11 // pred_region
          _
        $region20: #{tpu_custom_call.1} parent=11 // pred_fallthru
          _
        // Predicated region
        $region21: #{tpu_custom_call.1} parent=11 // pred_check
          %p242 = pneg %p132
        $region22: #{tpu_custom_call.1} parent=11 // pred_check_branch
          %244 = sbr.rel (%p242) target = $region24
        $region23: #{tpu_custom_call.1} parent=11 // pred_region
          _
        $region24: #{tpu_custom_call.1} parent=11 // pred_fallthru
          _
        // Predicated region
        $region25: #{tpu_custom_call.1} parent=11 // pred_check
          %p245 = pneg %p153
        $region26: #{tpu_custom_call.1} parent=11 // pred_check_branch
          %247 = sbr.rel (%p245) target = $region28
        $region27: #{tpu_custom_call.1} parent=11 // pred_region
          _
        $region28: #{tpu_custom_call.1} parent=11 // pred_fallthru
          _
        // Predicated region
        $region29: #{tpu_custom_call.1} parent=11 // pred_check
          %p248 = pneg %p174
        $region30: #{tpu_custom_call.1} parent=11 // pred_check_branch
          %250 = sbr.rel (%p248) target = $region32
        $region31: #{tpu_custom_call.1} parent=11 // pred_region
          _
        $region32: #{tpu_custom_call.1} parent=11 // pred_fallthru
          _
        // Predicated region
        $region33: #{tpu_custom_call.1} parent=11 // pred_check
          %p251 = pneg %p195
        $region34: #{tpu_custom_call.1} parent=11 // pred_check_branch
          %253 = sbr.rel (%p251) target = $region36
        $region35: #{tpu_custom_call.1} parent=11 // pred_region
          _
        $region36: #{tpu_custom_call.1} parent=11 // pred_fallthru
          _
      $region12: #{tpu_custom_call.1} parent=5 // pred_fallthru
        _
      %p254 = scmp.lt.s32.totalorder %s17, 2
      // Predicated region
      $region37: #{tpu_custom_call.1} parent=5 // pred_check
        %p255 = pneg %p254
      $region38: #{tpu_custom_call.1} parent=5 // pred_check_branch
        %257 = sbr.rel (%p255) target = $region40
      $region39: #{tpu_custom_call.1} parent=5 // pred_region
        // Predicated region
        $region41: #{tpu_custom_call.1} parent=39 // pred_check
          %p258 = pneg %p37
        $region42: #{tpu_custom_call.1} parent=39 // pred_check_branch
          %260 = sbr.rel (%p258) target = $region44
        $region43: #{tpu_custom_call.1} parent=39 // pred_region
          %s261 = smul.u32 16, %s17
          %p262 = scmp.lt.s32.totalorder %s261, 31
          %s263 = scalar_select %p262, %s261, 31
          %s264 = smul.addr %s263, 4
          %s265 = scalar_lea.vmem %s0, %s264
          %s266 = smul.u32 16, %s17
        $region44: #{tpu_custom_call.1} parent=39 // pred_fallthru
          _
        // Predicated region
        $region45: #{tpu_custom_call.1} parent=39 // pred_check
          %p267 = pneg %p63
        $region46: #{tpu_custom_call.1} parent=39 // pred_check_branch
          %269 = sbr.rel (%p267) target = $region48
        $region47: #{tpu_custom_call.1} parent=39 // pred_region
          %s270 = sand.u32 %s53, 1
          %s271 = scalar_lea.sflag [#allocation3], %s270
          %s272 = sand.u32 %s53, 1
          %s273 = smul.addr %s272, 192
          %s274 = scalar_lea.vmem [#allocation2], %s273
          %s276 = ssub.s32 3072, 3072
          %277 = vsyncadd %s271, %s276
          %s278 = smul.addr %s17, 48
          %s279 = smul.addr %s278, 64
          %s280 = scalar_lea.hbm %s1, %s279
          %s281 = sshll.u32 %s274, 4
          %s282 = int_to_ptr.vmem [resolvable:$true] %s281
          %287 = dma.hbm_to_vmem [thread:$0]  %s280, 3072, %s282, %s271, 64, 64, 4
        $region48: #{tpu_custom_call.1} parent=39 // pred_fallthru
          _
      $region40: #{tpu_custom_call.1} parent=5 // pred_fallthru
        _
      %p288 = scmp.le.s32.totalorder 1, %s17
      %p289 = scmp.lt.s32.totalorder %s17, 3
      %p290 = pnand %p288, %p289
      %p291 = pneg %p290
      // Predicated region
      $region49: #{tpu_custom_call.1} parent=5 // pred_check
        _
      $region50: #{tpu_custom_call.1} parent=5 // pred_check_branch
        %293 = sbr.rel (%p290) target = $region52
      $region51: #{tpu_custom_call.1} parent=5 // pred_region
        %s294 = ssub.s32 %s17, 1
        %s295 = sand.u32 %s56, 1
        %s296 = scalar_lea.sflag [#allocation3], %s295
        %s297 = sand.u32 %s56, 1
        %s298 = smul.addr %s297, 192
        %s299 = scalar_lea.vmem [#allocation2], %s298
        // Predicated region
        $region53: #{tpu_custom_call.1} parent=51 // pred_check
          %p300 = pneg %p69
        $region54: #{tpu_custom_call.1} parent=51 // pred_check_branch
          %302 = sbr.rel (%p300) target = $region56
        $region55: #{tpu_custom_call.1} parent=51 // pred_region
          %303 = dma.done %s296, 3072
        $region56: #{tpu_custom_call.1} parent=51 // pred_fallthru
          _
        %s304 = smul.u32 16, %s22
        %p305 = scmp.lt.s32.totalorder %s304, 31
        %s306 = scalar_select %p305, %s304, 31
        %s307 = smul.addr %s306, 4
        %s308 = scalar_lea.vmem %s0, %s307
        %p309 = pneg %p43
        %p310 = pneg %p40
        %s311 = sand.u32 %s56, 1
        %s312 = scalar_lea.sflag [#allocation3], %s311
        %s313 = sand.u32 %s56, 1
        %s314 = smul.addr %s313, 192
        %s315 = scalar_lea.vmem [#allocation2], %s314
        %p316 = pneg %p69
        %p317 = pneg %p66
        %p318 = pneg %p90
        %p319 = pneg %p87
        %p320 = pneg %p111
        %p321 = pneg %p108
        %p322 = pneg %p132
        %p323 = pneg %p129
        %p324 = pneg %p153
        %p325 = pneg %p150
        %p326 = pneg %p174
        %p327 = pneg %p171
        %p328 = pneg %p195
        %p329 = pneg %p192
        %p330 = pneg %p221
        %p331 = pneg %p218
        %s332 = smul.u32 16, %s22
        %p333 = scmp.lt.s32.totalorder %s332, 31
        %s334 = scalar_select %p333, %s332, 31
        %s335 = smul.addr %s334, 8
        %s336 = scalar_lea.vmem %s8, %s335
        %s337 = smul.u32 16, %s22
        %p338 = scmp.lt.s32.totalorder %s337, 31
        %s339 = scalar_select %p338, %s337, 31
        %s340 = smul.addr %s339, 4
        %s341 = scalar_lea.vmem %s0, %s340
        %s342 = smul.u32 16, %s22
        %s343 = smul.u32 16, %s22
        %p344 = scmp.lt.s32.totalorder %s343, 31
        %s345 = scalar_select %p344, %s343, 31
        %s346 = smul.addr %s345, 8
        %s347 = scalar_lea.vmem %s8, %s346
        %s348 = smul.u32 16, %s22
        %v350 = vld [vmem:[%s341] sm:$0xf]
        %v351 = vld [vmem:[%s341 + $0x4] sm:$0xf]
        %v352 = vld [vmem:[%s341 + $0x8] sm:$0xf]
        %v353 = vld [vmem:[%s341 + $0xc] sm:$0xf]
        %v354 = vld [vmem:[%s341 + $0x10] sm:$0xf]
        %v355 = vld [vmem:[%s341 + $0x14] sm:$0xf]
        %v356 = vld [vmem:[%s341 + $0x18] sm:$0xf]
        %v357 = vld [vmem:[%s341 + $0x1c] sm:$0xf]
        %v358 = vld [vmem:[%s341 + $0x20] sm:$0xf]
        %v359 = vld [vmem:[%s341 + $0x24] sm:$0xf]
        %v360 = vld [vmem:[%s341 + $0x28] sm:$0xf]
        %v361 = vld [vmem:[%s341 + $0x2c] sm:$0xf]
        %v362 = vld [vmem:[%s341 + $0x30] sm:$0xf]
        %v363 = vld [vmem:[%s341 + $0x34] sm:$0xf]
        %v364 = vld [vmem:[%s341 + $0x38] sm:$0xf]
        %v365 = vld [vmem:[%s341 + $0x3c] sm:$0xf]
        %v366 = vld [vmem:[%s2] sm:$0x3]
        %v367 = vld [vmem:[%s3] sm:$0x1]
        %v369 = vlaneseq
        %v370 = vshrl.u32 %v369, 7
        %v371 = vsub.s32 0, %v370
        %v372 = vrot.slane %v367, %v371
        %v390 = vunpack.c.l.b16 %v350
        %v391 = vunpack.c.l.b16 %v351
        %v392 = vunpack.c.l.b16 %v352
        %v393 = vunpack.c.l.b16 %v353
        %v394 = vunpack.c.l.b16 %v354
        %v395 = vunpack.c.l.b16 %v355
        %v396 = vunpack.c.l.b16 %v356
        %v397 = vunpack.c.l.b16 %v357
        %v398 = vunpack.c.l.b16 %v358
        %v399 = vunpack.c.l.b16 %v359
        %v400 = vunpack.c.l.b16 %v360
        %v401 = vunpack.c.l.b16 %v361
        %v402 = vunpack.c.l.b16 %v362
        %v403 = vunpack.c.l.b16 %v363
        %v404 = vunpack.c.l.b16 %v364
        %v405 = vunpack.c.l.b16 %v365
        %v406 = vpack.c.b16 %v391, %v390
        %v407 = vpack.c.b16 %v393, %v392
        %v408 = vpack.c.b16 %v395, %v394
        %v409 = vpack.c.b16 %v397, %v396
        %v410 = vpack.c.b16 %v399, %v398
        %v411 = vpack.c.b16 %v401, %v400
        %v412 = vpack.c.b16 %v403, %v402
        %v413 = vpack.c.b16 %v405, %v404
        %vm414 = vcmask 31744
        %v416 = vsel %vm414, %v406, 0
        %v419 = vsel %vm414, %v407, 0
        %v422 = vsel %vm414, %v408, 0
        %v425 = vsel %vm414, %v409, 0
        %v428 = vsel %vm414, %v410, 0
        %v431 = vsel %vm414, %v411, 0
        %v434 = vsel %vm414, %v412, 0
        %v437 = vsel %vm414, %v413, 0
        %vm439 = vcmask 1041408
        %v441 = vsel %vm439, %v366, 0
        %443 = vmatprep.subr.bf16.mxu0 0
        %444 = vmatpush1.bf16.msra.mxu0 0
        %445 = vmatprep.subr.bf16.mxu0 0
        %446 = vmatpush1.bf16.msra.mxu0 0
        %447 = vmatprep.subr.bf16.mxu0 0
        %448 = vmatpush1.bf16.msra.mxu0 0
        %449 = vmatprep.subr.bf16.mxu0 0
        %450 = vmatpush1.bf16.msra.mxu0 0
        %451 = vmatprep.subr.bf16.mxu0 0
        %452 = vmatpush1.bf16.msra.mxu0 0
        %453 = vmatprep.subr.bf16.mxu0 0
        %454 = vmatpush1.bf16.msra.mxu0 0
        %455 = vmatprep.subr.bf16.mxu0 0
        %456 = vmatpush1.bf16.msra.mxu0 0
        %457 = vmatprep.subr.bf16.mxu0 0
        %458 = vmatpush1.bf16.msra.mxu0 %v441
        %459 = vmatprep.subr.bf16.mxu0 0
        %460 = vmatpush2.bf16.msra.mxu0 0
        %461 = vmatprep.subr.bf16.mxu0 0
        %462 = vmatpush2.bf16.msra.mxu0 0
        %463 = vmatprep.subr.bf16.mxu0 0
        %464 = vmatpush2.bf16.msra.mxu0 0
        %465 = vmatprep.subr.bf16.mxu0 0
        %466 = vmatpush2.bf16.msra.mxu0 0
        %467 = vmatprep.subr.bf16.mxu0 0
        %468 = vmatpush2.bf16.msra.mxu0 0
        %469 = vmatprep.subr.bf16.mxu0 0
        %470 = vmatpush2.bf16.msra.mxu0 0
        %471 = vmatprep.subr.bf16.mxu0 0
        %472 = vmatpush2.bf16.msra.mxu0 0
        %473 = vmatprep.subr.bf16.mxu0 0
        %474 = vmatpush2.bf16.msra.mxu0 0
        %475 = vmatprep.mubr.bf16.mxu0 0
        %476 = vmatmul.mubr.bf16.gmra.mxu0 %v416
        %v477 = vpop.f32.mrf.mxu0
        %v478 = vadd.f32 %v372, %v477
        %v479 = vpop.f32.mrf.mxu0
        %v480 = vpop.f32.mrf.mxu0
        %v481 = vadd.f32 %v372, %v480
        %v482 = vpop.f32.mrf.mxu0
        %483 = vmatprep.mubr.bf16.mxu0 0
        %484 = vmatmul.mubr.bf16.gmra.mxu0 %v419
        %v485 = vpop.f32.mrf.mxu0
        %v486 = vadd.f32 %v372, %v485
        %v487 = vpop.f32.mrf.mxu0
        %v488 = vpop.f32.mrf.mxu0
        %v489 = vadd.f32 %v372, %v488
        %v490 = vpop.f32.mrf.mxu0
        %491 = vmatprep.mubr.bf16.mxu0 0
        %492 = vmatmul.mubr.bf16.gmra.mxu0 %v422
        %v493 = vpop.f32.mrf.mxu0
        %v494 = vadd.f32 %v372, %v493
        %v495 = vpop.f32.mrf.mxu0
        %v496 = vpop.f32.mrf.mxu0
        %v497 = vadd.f32 %v372, %v496
        %v498 = vpop.f32.mrf.mxu0
        %499 = vmatprep.mubr.bf16.mxu0 0
        %500 = vmatmul.mubr.bf16.gmra.mxu0 %v425
        %v501 = vpop.f32.mrf.mxu0
        %v502 = vadd.f32 %v372, %v501
        %v503 = vpop.f32.mrf.mxu0
        %v504 = vpop.f32.mrf.mxu0
        %v505 = vadd.f32 %v372, %v504
        %v506 = vpop.f32.mrf.mxu0
        %507 = vmatprep.mubr.bf16.mxu0 0
        %508 = vmatmul.mubr.bf16.gmra.mxu0 %v428
        %v509 = vpop.f32.mrf.mxu0
        %v510 = vadd.f32 %v372, %v509
        %v511 = vpop.f32.mrf.mxu0
        %v512 = vpop.f32.mrf.mxu0
        %v513 = vadd.f32 %v372, %v512
        %v514 = vpop.f32.mrf.mxu0
        %515 = vmatprep.mubr.bf16.mxu0 0
        %516 = vmatmul.mubr.bf16.gmra.mxu0 %v431
        %v517 = vpop.f32.mrf.mxu0
        %v518 = vadd.f32 %v372, %v517
        %v519 = vpop.f32.mrf.mxu0
        %v520 = vpop.f32.mrf.mxu0
        %v521 = vadd.f32 %v372, %v520
        %v522 = vpop.f32.mrf.mxu0
        %523 = vmatprep.mubr.bf16.mxu0 0
        %524 = vmatmul.mubr.bf16.gmra.mxu0 %v434
        %v525 = vpop.f32.mrf.mxu0
        %v526 = vadd.f32 %v372, %v525
        %v527 = vpop.f32.mrf.mxu0
        %v528 = vpop.f32.mrf.mxu0
        %v529 = vadd.f32 %v372, %v528
        %v530 = vpop.f32.mrf.mxu0
        %531 = vmatprep.mubr.bf16.mxu0 0
        %532 = vmatmul.mubr.bf16.gmra.mxu0 %v437
        %v533 = vpop.f32.mrf.mxu0
        %v534 = vadd.f32 %v372, %v533
        %v535 = vpop.f32.mrf.mxu0
        %v536 = vpop.f32.mrf.mxu0
        %v537 = vadd.f32 %v372, %v536
        %v538 = vpop.f32.mrf.mxu0
        %539 = vdwg.mxu0
        %v540 = vtanh.pop %v478
        %v541 = vtanh.pop %v481
        %v542 = vtanh.pop %v486
        %v543 = vtanh.pop %v489
        %v544 = vtanh.pop %v494
        %v545 = vtanh.pop %v497
        %v546 = vtanh.pop %v502
        %v547 = vtanh.pop %v505
        %v548 = vtanh.pop %v510
        %v549 = vtanh.pop %v513
        %v550 = vtanh.pop %v518
        %v551 = vtanh.pop %v521
        %v552 = vtanh.pop %v526
        %v553 = vtanh.pop %v529
        %v554 = vtanh.pop %v534
        %v555 = vtanh.pop %v537
        %v556 = vpack.c.bf16 %v541, %v540
        %v557 = vpack.c.bf16 %v543, %v542
        %v558 = vpack.c.bf16 %v545, %v544
        %v559 = vpack.c.bf16 %v547, %v546
        %v560 = vpack.c.bf16 %v549, %v548
        %v561 = vpack.c.bf16 %v551, %v550
        %v562 = vpack.c.bf16 %v553, %v552
        %v563 = vpack.c.bf16 %v555, %v554
        %v564 = vld [vmem:[%s4] sm:$0xf]
        %v565 = vld [vmem:[%s4 + $0x4] sm:$0xf]
        %v566 = vld [vmem:[%s4 + $0x8] sm:$0xf]
        %v567 = vld [vmem:[%s4 + $0xc] sm:$0xf]
        %v568 = vld [vmem:[%s5] sm:$0x1]
        %v570 = vlaneseq
        %v571 = vshrl.u32 %v570, 7
        %v572 = vsub.s32 0, %v571
        %v573 = vrot.slane %v568, %v572
        %v579 = vunpack.c.l.b16 %v564
        %v580 = vunpack.c.l.b16 %v565
        %v581 = vunpack.c.l.b16 %v566
        %v582 = vunpack.c.l.b16 %v567
        %v583 = vpack.c.b16 %v580, %v579
        %v584 = vpack.c.b16 %v582, %v581
        %vm587 = vcmask 261120
        %v589 = vsel %vm587, %v556, 0
        %v592 = vsel %vm587, %v557, 0
        %v595 = vsel %vm587, %v558, 0
        %v598 = vsel %vm587, %v559, 0
        %v601 = vsel %vm587, %v560, 0
        %v604 = vsel %vm587, %v561, 0
        %v607 = vsel %vm587, %v562, 0
        %v610 = vsel %vm587, %v563, 0
        %612 = vmatprep.subr.bf16.mxu0 0
        %613 = vmatpush1.bf16.msra.mxu0 0
        %614 = vmatprep.subr.bf16.mxu0 0
        %615 = vmatpush1.bf16.msra.mxu0 0
        %616 = vmatprep.subr.bf16.mxu0 0
        %617 = vmatpush1.bf16.msra.mxu0 0
        %618 = vmatprep.subr.bf16.mxu0 0
        %619 = vmatpush1.bf16.msra.mxu0 0
        %620 = vmatprep.subr.bf16.mxu0 0
        %621 = vmatpush1.bf16.msra.mxu0 0
        %622 = vmatprep.subr.bf16.mxu0 0
        %623 = vmatpush1.bf16.msra.mxu0 0
        %624 = vmatprep.subr.bf16.mxu0 0
        %625 = vmatpush1.bf16.msra.mxu0 %v584
        %626 = vmatprep.subr.bf16.mxu0 0
        %627 = vmatpush1.bf16.msra.mxu0 %v583
        %628 = vmatprep.subr.bf16.mxu0 0
        %629 = vmatpush2.bf16.msra.mxu0 0
        %630 = vmatprep.subr.bf16.mxu0 0
        %631 = vmatpush2.bf16.msra.mxu0 0
        %632 = vmatprep.subr.bf16.mxu0 0
        %633 = vmatpush2.bf16.msra.mxu0 0
        %634 = vmatprep.subr.bf16.mxu0 0
        %635 = vmatpush2.bf16.msra.mxu0 0
        %636 = vmatprep.subr.bf16.mxu0 0
        %637 = vmatpush2.bf16.msra.mxu0 0
        %638 = vmatprep.subr.bf16.mxu0 0
        %639 = vmatpush2.bf16.msra.mxu0 0
        %640 = vmatprep.subr.bf16.mxu0 0
        %641 = vmatpush2.bf16.msra.mxu0 0
        %642 = vmatprep.subr.bf16.mxu0 0
        %643 = vmatpush2.bf16.msra.mxu0 0
        %644 = vmatprep.mubr.bf16.mxu0 0
        %645 = vmatmul.mubr.bf16.gmra.mxu0 %v589
        %v646 = vpop.f32.mrf.mxu0
        %v647 = vadd.f32 %v573, %v646
        %v648 = vpop.f32.mrf.mxu0
        %v649 = vpop.f32.mrf.mxu0
        %v650 = vadd.f32 %v573, %v649
        %v651 = vpop.f32.mrf.mxu0
        %652 = vmatprep.mubr.bf16.mxu0 0
        %653 = vmatmul.mubr.bf16.gmra.mxu0 %v592
        %v654 = vpop.f32.mrf.mxu0
        %v655 = vadd.f32 %v573, %v654
        %v656 = vpop.f32.mrf.mxu0
        %v657 = vpop.f32.mrf.mxu0
        %v658 = vadd.f32 %v573, %v657
        %v659 = vpop.f32.mrf.mxu0
        %660 = vmatprep.mubr.bf16.mxu0 0
        %661 = vmatmul.mubr.bf16.gmra.mxu0 %v595
        %v662 = vpop.f32.mrf.mxu0
        %v663 = vadd.f32 %v573, %v662
        %v664 = vpop.f32.mrf.mxu0
        %v665 = vpop.f32.mrf.mxu0
        %v666 = vadd.f32 %v573, %v665
        %v667 = vpop.f32.mrf.mxu0
        %668 = vmatprep.mubr.bf16.mxu0 0
        %669 = vmatmul.mubr.bf16.gmra.mxu0 %v598
        %v670 = vpop.f32.mrf.mxu0
        %v671 = vadd.f32 %v573, %v670
        %v672 = vpop.f32.mrf.mxu0
        %v673 = vpop.f32.mrf.mxu0
        %v674 = vadd.f32 %v573, %v673
        %v675 = vpop.f32.mrf.mxu0
        %676 = vmatprep.mubr.bf16.mxu0 0
        %677 = vmatmul.mubr.bf16.gmra.mxu0 %v601
        %v678 = vpop.f32.mrf.mxu0
        %v679 = vadd.f32 %v573, %v678
        %v680 = vpop.f32.mrf.mxu0
        %v681 = vpop.f32.mrf.mxu0
        %v682 = vadd.f32 %v573, %v681
        %v683 = vpop.f32.mrf.mxu0
        %684 = vmatprep.mubr.bf16.mxu0 0
        %685 = vmatmul.mubr.bf16.gmra.mxu0 %v604
        %v686 = vpop.f32.mrf.mxu0
        %v687 = vadd.f32 %v573, %v686
        %v688 = vpop.f32.mrf.mxu0
        %v689 = vpop.f32.mrf.mxu0
        %v690 = vadd.f32 %v573, %v689
        %v691 = vpop.f32.mrf.mxu0
        %692 = vmatprep.mubr.bf16.mxu0 0
        %693 = vmatmul.mubr.bf16.gmra.mxu0 %v607
        %v694 = vpop.f32.mrf.mxu0
        %v695 = vadd.f32 %v573, %v694
        %v696 = vpop.f32.mrf.mxu0
        %v697 = vpop.f32.mrf.mxu0
        %v698 = vadd.f32 %v573, %v697
        %v699 = vpop.f32.mrf.mxu0
        %700 = vmatprep.mubr.bf16.mxu0 0
        %701 = vmatmul.mubr.bf16.gmra.mxu0 %v610
        %v702 = vpop.f32.mrf.mxu0
        %v703 = vadd.f32 %v573, %v702
        %v704 = vpop.f32.mrf.mxu0
        %v705 = vpop.f32.mrf.mxu0
        %v706 = vadd.f32 %v573, %v705
        %v707 = vpop.f32.mrf.mxu0
        %708 = vdwg.mxu0
        %v709 = vpack.c.bf16 %v650, %v647
        %v710 = vpack.c.bf16 %v658, %v655
        %v711 = vpack.c.bf16 %v666, %v663
        %v712 = vpack.c.bf16 %v674, %v671
        %v713 = vpack.c.bf16 %v682, %v679
        %v714 = vpack.c.bf16 %v690, %v687
        %v715 = vpack.c.bf16 %v698, %v695
        %v716 = vpack.c.bf16 %v706, %v703
        %v717 = vld [vmem:[%s299] sm:$0xf]
        %v718 = vld [vmem:[%s299 + $0x4] sm:$0xf]
        %v719 = vld [vmem:[%s299 + $0x8] sm:$0xf]
        %v720 = vld [vmem:[%s299 + $0xc] sm:$0xf]
        %v721 = vld [vmem:[%s299 + $0x10] sm:$0xf]
        %v722 = vld [vmem:[%s299 + $0x14] sm:$0xf]
        %v723 = vld [vmem:[%s299 + $0x18] sm:$0xf]
        %v724 = vld [vmem:[%s299 + $0x1c] sm:$0xf]
        %v725 = vld [vmem:[%s299 + $0x20] sm:$0xf]
        %v726 = vld [vmem:[%s299 + $0x24] sm:$0xf]
        %v727 = vld [vmem:[%s299 + $0x28] sm:$0xf]
        %v728 = vld [vmem:[%s299 + $0x2c] sm:$0xf]
        %v729 = vld [vmem:[%s299 + $0x30] sm:$0xf]
        %v730 = vld [vmem:[%s299 + $0x34] sm:$0xf]
        %v731 = vld [vmem:[%s299 + $0x38] sm:$0xf]
        %v732 = vld [vmem:[%s299 + $0x3c] sm:$0xf]
        %v749 = vunpack.c.l.b16 %v717
        %v750 = vunpack.c.l.b16 %v718
        %v751 = vunpack.c.l.b16 %v719
        %v752 = vunpack.c.l.b16 %v720
        %v753 = vunpack.c.l.b16 %v721
        %v754 = vunpack.c.l.b16 %v722
        %v755 = vunpack.c.l.b16 %v723
        %v756 = vunpack.c.l.b16 %v724
        %v757 = vunpack.c.l.b16 %v725
        %v758 = vunpack.c.l.b16 %v726
        %v759 = vunpack.c.l.b16 %v727
        %v760 = vunpack.c.l.b16 %v728
        %v761 = vunpack.c.l.b16 %v729
        %v762 = vunpack.c.l.b16 %v730
        %v763 = vunpack.c.l.b16 %v731
        %v764 = vunpack.c.l.b16 %v732
        %v765 = vpack.c.b16 %v750, %v749
        %v766 = vpack.c.b16 %v752, %v751
        %v767 = vpack.c.b16 %v754, %v753
        %v768 = vpack.c.b16 %v756, %v755
        %v769 = vpack.c.b16 %v758, %v757
        %v770 = vpack.c.b16 %v760, %v759
        %v771 = vpack.c.b16 %v762, %v761
        %v772 = vpack.c.b16 %v764, %v763
        %781 = vmatprep.subr.bf16.mxu0 0
        %782 = vmatpush1.bf16.msra.mxu0 %v716
        %783 = vmatprep.subr.bf16.mxu0 0
        %784 = vmatpush1.bf16.msra.mxu0 %v715
        %785 = vmatprep.subr.bf16.mxu0 0
        %786 = vmatpush1.bf16.msra.mxu0 %v714
        %787 = vmatprep.subr.bf16.mxu0 0
        %788 = vmatpush1.bf16.msra.mxu0 %v713
        %789 = vmatprep.subr.bf16.mxu0 0
        %790 = vmatpush1.bf16.msra.mxu0 %v712
        %791 = vmatprep.subr.bf16.mxu0 0
        %792 = vmatpush1.bf16.msra.mxu0 %v711
        %793 = vmatprep.subr.bf16.mxu0 0
        %794 = vmatpush1.bf16.msra.mxu0 %v710
        %795 = vmatprep.subr.bf16.mxu0 0
        %796 = vmatpush1.bf16.msra.mxu0 %v709
        %797 = vmatprep.subr.bf16.mxu0 0
        %798 = vmatpush2.bf16.msra.mxu0 0
        %799 = vmatprep.subr.bf16.mxu0 0
        %800 = vmatpush2.bf16.msra.mxu0 0
        %801 = vmatprep.subr.bf16.mxu0 0
        %802 = vmatpush2.bf16.msra.mxu0 0
        %803 = vmatprep.subr.bf16.mxu0 0
        %804 = vmatpush2.bf16.msra.mxu0 0
        %805 = vmatprep.subr.bf16.mxu0 0
        %806 = vmatpush2.bf16.msra.mxu0 0
        %807 = vmatprep.subr.bf16.mxu0 0
        %808 = vmatpush2.bf16.msra.mxu0 0
        %809 = vmatprep.subr.bf16.mxu0 0
        %810 = vmatpush2.bf16.msra.mxu0 0
        %811 = vmatprep.subr.bf16.mxu0 0
        %812 = vmatpush2.bf16.msra.mxu0 0
        %813 = vmatprep.mubr.bf16.mxu0 0
        %814 = vmatmul.mubr.bf16.gmra.mxu0 %v765
        %v815 = vpop.f32.mrf.mxu0
        %v816 = vadd.f32 0.0, %v815
        %v817 = vpop.f32.mrf.mxu0
        %v818 = vpop.f32.mrf.mxu0
        %v819 = vadd.f32 0.0, %v818
        %v820 = vpop.f32.mrf.mxu0
        %821 = vmatprep.mubr.bf16.mxu0 0
        %822 = vmatmul.mubr.bf16.gmra.mxu0 %v766
        %v823 = vpop.f32.mrf.mxu0
        %v824 = vadd.f32 0.0, %v823
        %v825 = vpop.f32.mrf.mxu0
        %v826 = vpop.f32.mrf.mxu0
        %v827 = vadd.f32 0.0, %v826
        %v828 = vpop.f32.mrf.mxu0
        %829 = vmatprep.mubr.bf16.mxu0 0
        %830 = vmatmul.mubr.bf16.gmra.mxu0 %v767
        %v831 = vpop.f32.mrf.mxu0
        %v832 = vadd.f32 0.0, %v831
        %v833 = vpop.f32.mrf.mxu0
        %v834 = vpop.f32.mrf.mxu0
        %v835 = vadd.f32 0.0, %v834
        %v836 = vpop.f32.mrf.mxu0
        %837 = vmatprep.mubr.bf16.mxu0 0
        %838 = vmatmul.mubr.bf16.gmra.mxu0 %v768
        %v839 = vpop.f32.mrf.mxu0
        %v840 = vadd.f32 0.0, %v839
        %v841 = vpop.f32.mrf.mxu0
        %v842 = vpop.f32.mrf.mxu0
        %v843 = vadd.f32 0.0, %v842
        %v844 = vpop.f32.mrf.mxu0
        %845 = vmatprep.mubr.bf16.mxu0 0
        %846 = vmatmul.mubr.bf16.gmra.mxu0 %v769
        %v847 = vpop.f32.mrf.mxu0
        %v848 = vadd.f32 0.0, %v847
        %v849 = vpop.f32.mrf.mxu0
        %v850 = vpop.f32.mrf.mxu0
        %v851 = vadd.f32 0.0, %v850
        %v852 = vpop.f32.mrf.mxu0
        %853 = vmatprep.mubr.bf16.mxu0 0
        %854 = vmatmul.mubr.bf16.gmra.mxu0 %v770
        %v855 = vpop.f32.mrf.mxu0
        %v856 = vadd.f32 0.0, %v855
        %v857 = vpop.f32.mrf.mxu0
        %v858 = vpop.f32.mrf.mxu0
        %v859 = vadd.f32 0.0, %v858
        %v860 = vpop.f32.mrf.mxu0
        %861 = vmatprep.mubr.bf16.mxu0 0
        %862 = vmatmul.mubr.bf16.gmra.mxu0 %v771
        %v863 = vpop.f32.mrf.mxu0
        %v864 = vadd.f32 0.0, %v863
        %v865 = vpop.f32.mrf.mxu0
        %v866 = vpop.f32.mrf.mxu0
        %v867 = vadd.f32 0.0, %v866
        %v868 = vpop.f32.mrf.mxu0
        %869 = vmatprep.mubr.bf16.mxu0 0
        %870 = vmatmul.mubr.bf16.gmra.mxu0 %v772
        %v871 = vpop.f32.mrf.mxu0
        %v872 = vadd.f32 0.0, %v871
        %v873 = vpop.f32.mrf.mxu0
        %v874 = vpop.f32.mrf.mxu0
        %v875 = vadd.f32 0.0, %v874
        %v876 = vpop.f32.mrf.mxu0
        %877 = vdwg.mxu0
        %s878 = scalar_lea.vmem %s299, 64 [#allocation2]
        %v879 = vld [vmem:[%s878] sm:$0xf]
        %v880 = vld [vmem:[%s878 + $0x4] sm:$0xf]
        %v881 = vld [vmem:[%s878 + $0x8] sm:$0xf]
        %v882 = vld [vmem:[%s878 + $0xc] sm:$0xf]
        %v883 = vld [vmem:[%s878 + $0x10] sm:$0xf]
        %v884 = vld [vmem:[%s878 + $0x14] sm:$0xf]
        %v885 = vld [vmem:[%s878 + $0x18] sm:$0xf]
        %v886 = vld [vmem:[%s878 + $0x1c] sm:$0xf]
        %v887 = vld [vmem:[%s878 + $0x20] sm:$0xf]
        %v888 = vld [vmem:[%s878 + $0x24] sm:$0xf]
        %v889 = vld [vmem:[%s878 + $0x28] sm:$0xf]
        %v890 = vld [vmem:[%s878 + $0x2c] sm:$0xf]
        %v891 = vld [vmem:[%s878 + $0x30] sm:$0xf]
        %v892 = vld [vmem:[%s878 + $0x34] sm:$0xf]
        %v893 = vld [vmem:[%s878 + $0x38] sm:$0xf]
        %v894 = vld [vmem:[%s878 + $0x3c] sm:$0xf]
        %v911 = vunpack.c.l.b16 %v879
        %v912 = vunpack.c.l.b16 %v880
        %v913 = vunpack.c.l.b16 %v881
        %v914 = vunpack.c.l.b16 %v882
        %v915 = vunpack.c.l.b16 %v883
        %v916 = vunpack.c.l.b16 %v884
        %v917 = vunpack.c.l.b16 %v885
        %v918 = vunpack.c.l.b16 %v886
        %v919 = vunpack.c.l.b16 %v887
        %v920 = vunpack.c.l.b16 %v888
        %v921 = vunpack.c.l.b16 %v889
        %v922 = vunpack.c.l.b16 %v890
        %v923 = vunpack.c.l.b16 %v891
        %v924 = vunpack.c.l.b16 %v892
        %v925 = vunpack.c.l.b16 %v893
        %v926 = vunpack.c.l.b16 %v894
        %v927 = vpack.c.b16 %v912, %v911
        %v928 = vpack.c.b16 %v914, %v913
        %v929 = vpack.c.b16 %v916, %v915
        %v930 = vpack.c.b16 %v918, %v917
        %v931 = vpack.c.b16 %v920, %v919
        %v932 = vpack.c.b16 %v922, %v921
        %v933 = vpack.c.b16 %v924, %v923
        %v934 = vpack.c.b16 %v926, %v925
        %951 = vrot.lane.b32.xlu0 %v709, 96
        %v952 = vpop.permute.xlu0 %951
        %953 = vrot.lane.b32.xlu0 %v710, 96
        %v954 = vpop.permute.xlu0 %953
        %955 = vrot.lane.b32.xlu0 %v711, 96
        %v956 = vpop.permute.xlu0 %955
        %957 = vrot.lane.b32.xlu0 %v712, 96
        %v958 = vpop.permute.xlu0 %957
        %959 = vrot.lane.b32.xlu0 %v713, 96
        %v960 = vpop.permute.xlu0 %959
        %961 = vrot.lane.b32.xlu0 %v714, 96
        %v962 = vpop.permute.xlu0 %961
        %963 = vrot.lane.b32.xlu0 %v715, 96
        %v964 = vpop.permute.xlu0 %963
        %965 = vrot.lane.b32.xlu0 %v716, 96
        %v966 = vpop.permute.xlu0 %965
        %975 = vmatprep.subr.bf16.mxu0 0
        %976 = vmatpush1.bf16.msra.mxu0 %v966
        %977 = vmatprep.subr.bf16.mxu0 0
        %978 = vmatpush1.bf16.msra.mxu0 %v964
        %979 = vmatprep.subr.bf16.mxu0 0
        %980 = vmatpush1.bf16.msra.mxu0 %v962
        %981 = vmatprep.subr.bf16.mxu0 0
        %982 = vmatpush1.bf16.msra.mxu0 %v960
        %983 = vmatprep.subr.bf16.mxu0 0
        %984 = vmatpush1.bf16.msra.mxu0 %v958
        %985 = vmatprep.subr.bf16.mxu0 0
        %986 = vmatpush1.bf16.msra.mxu0 %v956
        %987 = vmatprep.subr.bf16.mxu0 0
        %988 = vmatpush1.bf16.msra.mxu0 %v954
        %989 = vmatprep.subr.bf16.mxu0 0
        %990 = vmatpush1.bf16.msra.mxu0 %v952
        %991 = vmatprep.subr.bf16.mxu0 0
        %992 = vmatpush2.bf16.msra.mxu0 0
        %993 = vmatprep.subr.bf16.mxu0 0
        %994 = vmatpush2.bf16.msra.mxu0 0
        %995 = vmatprep.subr.bf16.mxu0 0
        %996 = vmatpush2.bf16.msra.mxu0 0
        %997 = vmatprep.subr.bf16.mxu0 0
        %998 = vmatpush2.bf16.msra.mxu0 0
        %999 = vmatprep.subr.bf16.mxu0 0
        %1000 = vmatpush2.bf16.msra.mxu0 0
        %1001 = vmatprep.subr.bf16.mxu0 0
        %1002 = vmatpush2.bf16.msra.mxu0 0
        %1003 = vmatprep.subr.bf16.mxu0 0
        %1004 = vmatpush2.bf16.msra.mxu0 0
        %1005 = vmatprep.subr.bf16.mxu0 0
        %1006 = vmatpush2.bf16.msra.mxu0 0
        %1007 = vmatprep.mubr.bf16.mxu0 0
        %1008 = vmatmul.mubr.bf16.gmra.mxu0 %v927
        %v1009 = vpop.f32.mrf.mxu0
        %v1010 = vadd.f32 0.0, %v1009
        %v1011 = vpop.f32.mrf.mxu0
        %v1012 = vpop.f32.mrf.mxu0
        %v1013 = vadd.f32 0.0, %v1012
        %v1014 = vpop.f32.mrf.mxu0
        %1015 = vmatprep.mubr.bf16.mxu0 0
        %1016 = vmatmul.mubr.bf16.gmra.mxu0 %v928
        %v1017 = vpop.f32.mrf.mxu0
        %v1018 = vadd.f32 0.0, %v1017
        %v1019 = vpop.f32.mrf.mxu0
        %v1020 = vpop.f32.mrf.mxu0
        %v1021 = vadd.f32 0.0, %v1020
        %v1022 = vpop.f32.mrf.mxu0
        %1023 = vmatprep.mubr.bf16.mxu0 0
        %1024 = vmatmul.mubr.bf16.gmra.mxu0 %v929
        %v1025 = vpop.f32.mrf.mxu0
        %v1026 = vadd.f32 0.0, %v1025
        %v1027 = vpop.f32.mrf.mxu0
        %v1028 = vpop.f32.mrf.mxu0
        %v1029 = vadd.f32 0.0, %v1028
        %v1030 = vpop.f32.mrf.mxu0
        %1031 = vmatprep.mubr.bf16.mxu0 0
        %1032 = vmatmul.mubr.bf16.gmra.mxu0 %v930
        %v1033 = vpop.f32.mrf.mxu0
        %v1034 = vadd.f32 0.0, %v1033
        %v1035 = vpop.f32.mrf.mxu0
        %v1036 = vpop.f32.mrf.mxu0
        %v1037 = vadd.f32 0.0, %v1036
        %v1038 = vpop.f32.mrf.mxu0
        %1039 = vmatprep.mubr.bf16.mxu0 0
        %1040 = vmatmul.mubr.bf16.gmra.mxu0 %v931
        %v1041 = vpop.f32.mrf.mxu0
        %v1042 = vadd.f32 0.0, %v1041
        %v1043 = vpop.f32.mrf.mxu0
        %v1044 = vpop.f32.mrf.mxu0
        %v1045 = vadd.f32 0.0, %v1044
        %v1046 = vpop.f32.mrf.mxu0
        %1047 = vmatprep.mubr.bf16.mxu0 0
        %1048 = vmatmul.mubr.bf16.gmra.mxu0 %v932
        %v1049 = vpop.f32.mrf.mxu0
        %v1050 = vadd.f32 0.0, %v1049
        %v1051 = vpop.f32.mrf.mxu0
        %v1052 = vpop.f32.mrf.mxu0
        %v1053 = vadd.f32 0.0, %v1052
        %v1054 = vpop.f32.mrf.mxu0
        %1055 = vmatprep.mubr.bf16.mxu0 0
        %1056 = vmatmul.mubr.bf16.gmra.mxu0 %v933
        %v1057 = vpop.f32.mrf.mxu0
        %v1058 = vadd.f32 0.0, %v1057
        %v1059 = vpop.f32.mrf.mxu0
        %v1060 = vpop.f32.mrf.mxu0
        %v1061 = vadd.f32 0.0, %v1060
        %v1062 = vpop.f32.mrf.mxu0
        %1063 = vmatprep.mubr.bf16.mxu0 0
        %1064 = vmatmul.mubr.bf16.gmra.mxu0 %v934
        %v1065 = vpop.f32.mrf.mxu0
        %v1066 = vadd.f32 0.0, %v1065
        %v1067 = vpop.f32.mrf.mxu0
        %v1068 = vpop.f32.mrf.mxu0
        %v1069 = vadd.f32 0.0, %v1068
        %v1070 = vpop.f32.mrf.mxu0
        %1071 = vdwg.mxu0
        %s1072 = scalar_lea.vmem %s299, 128 [#allocation2]
        %v1073 = vld [vmem:[%s1072] sm:$0xf]
        %v1074 = vld [vmem:[%s1072 + $0x4] sm:$0xf]
        %v1075 = vld [vmem:[%s1072 + $0x8] sm:$0xf]
        %v1076 = vld [vmem:[%s1072 + $0xc] sm:$0xf]
        %v1077 = vld [vmem:[%s1072 + $0x10] sm:$0xf]
        %v1078 = vld [vmem:[%s1072 + $0x14] sm:$0xf]
        %v1079 = vld [vmem:[%s1072 + $0x18] sm:$0xf]
        %v1080 = vld [vmem:[%s1072 + $0x1c] sm:$0xf]
        %v1081 = vld [vmem:[%s1072 + $0x20] sm:$0xf]
        %v1082 = vld [vmem:[%s1072 + $0x24] sm:$0xf]
        %v1083 = vld [vmem:[%s1072 + $0x28] sm:$0xf]
        %v1084 = vld [vmem:[%s1072 + $0x2c] sm:$0xf]
        %v1085 = vld [vmem:[%s1072 + $0x30] sm:$0xf]
        %v1086 = vld [vmem:[%s1072 + $0x34] sm:$0xf]
        %v1087 = vld [vmem:[%s1072 + $0x38] sm:$0xf]
        %v1088 = vld [vmem:[%s1072 + $0x3c] sm:$0xf]
        %v1105 = vunpack.c.l.b16 %v1073
        %v1106 = vunpack.c.l.b16 %v1074
        %v1107 = vunpack.c.l.b16 %v1075
        %v1108 = vunpack.c.l.b16 %v1076
        %v1109 = vunpack.c.l.b16 %v1077
        %v1110 = vunpack.c.l.b16 %v1078
        %v1111 = vunpack.c.l.b16 %v1079
        %v1112 = vunpack.c.l.b16 %v1080
        %v1113 = vunpack.c.l.b16 %v1081
        %v1114 = vunpack.c.l.b16 %v1082
        %v1115 = vunpack.c.l.b16 %v1083
        %v1116 = vunpack.c.l.b16 %v1084
        %v1117 = vunpack.c.l.b16 %v1085
        %v1118 = vunpack.c.l.b16 %v1086
        %v1119 = vunpack.c.l.b16 %v1087
        %v1120 = vunpack.c.l.b16 %v1088
        %v1121 = vpack.c.b16 %v1106, %v1105
        %v1122 = vpack.c.b16 %v1108, %v1107
        %v1123 = vpack.c.b16 %v1110, %v1109
        %v1124 = vpack.c.b16 %v1112, %v1111
        %v1125 = vpack.c.b16 %v1114, %v1113
        %v1126 = vpack.c.b16 %v1116, %v1115
        %v1127 = vpack.c.b16 %v1118, %v1117
        %v1128 = vpack.c.b16 %v1120, %v1119
        %1137 = vrot.lane.b32.xlu0 %v709, 64
        %v1138 = vpop.permute.xlu0 %1137
        %1139 = vrot.lane.b32.xlu0 %v710, 64
        %v1140 = vpop.permute.xlu0 %1139
        %1141 = vrot.lane.b32.xlu0 %v711, 64
        %v1142 = vpop.permute.xlu0 %1141
        %1143 = vrot.lane.b32.xlu0 %v712, 64
        %v1144 = vpop.permute.xlu0 %1143
        %1145 = vrot.lane.b32.xlu0 %v713, 64
        %v1146 = vpop.permute.xlu0 %1145
        %1147 = vrot.lane.b32.xlu0 %v714, 64
        %v1148 = vpop.permute.xlu0 %1147
        %1149 = vrot.lane.b32.xlu0 %v715, 64
        %v1150 = vpop.permute.xlu0 %1149
        %1151 = vrot.lane.b32.xlu0 %v716, 64
        %v1152 = vpop.permute.xlu0 %1151
        %1161 = vmatprep.subr.bf16.mxu0 0
        %1162 = vmatpush1.bf16.msra.mxu0 %v1152
        %1163 = vmatprep.subr.bf16.mxu0 0
        %1164 = vmatpush1.bf16.msra.mxu0 %v1150
        %1165 = vmatprep.subr.bf16.mxu0 0
        %1166 = vmatpush1.bf16.msra.mxu0 %v1148
        %1167 = vmatprep.subr.bf16.mxu0 0
        %1168 = vmatpush1.bf16.msra.mxu0 %v1146
        %1169 = vmatprep.subr.bf16.mxu0 0
        %1170 = vmatpush1.bf16.msra.mxu0 %v1144
        %1171 = vmatprep.subr.bf16.mxu0 0
        %1172 = vmatpush1.bf16.msra.mxu0 %v1142
        %1173 = vmatprep.subr.bf16.mxu0 0
        %1174 = vmatpush1.bf16.msra.mxu0 %v1140
        %1175 = vmatprep.subr.bf16.mxu0 0
        %1176 = vmatpush1.bf16.msra.mxu0 %v1138
        %1177 = vmatprep.subr.bf16.mxu0 0
        %1178 = vmatpush2.bf16.msra.mxu0 0
        %1179 = vmatprep.subr.bf16.mxu0 0
        %1180 = vmatpush2.bf16.msra.mxu0 0
        %1181 = vmatprep.subr.bf16.mxu0 0
        %1182 = vmatpush2.bf16.msra.mxu0 0
        %1183 = vmatprep.subr.bf16.mxu0 0
        %1184 = vmatpush2.bf16.msra.mxu0 0
        %1185 = vmatprep.subr.bf16.mxu0 0
        %1186 = vmatpush2.bf16.msra.mxu0 0
        %1187 = vmatprep.subr.bf16.mxu0 0
        %1188 = vmatpush2.bf16.msra.mxu0 0
        %1189 = vmatprep.subr.bf16.mxu0 0
        %1190 = vmatpush2.bf16.msra.mxu0 0
        %1191 = vmatprep.subr.bf16.mxu0 0
        %1192 = vmatpush2.bf16.msra.mxu0 0
        %1193 = vmatprep.mubr.bf16.mxu0 0
        %1194 = vmatmul.mubr.bf16.gmra.mxu0 %v1121
        %v1195 = vpop.f32.mrf.mxu0
        %v1196 = vadd.f32 0.0, %v1195
        %v1197 = vpop.f32.mrf.mxu0
        %v1198 = vpop.f32.mrf.mxu0
        %v1199 = vadd.f32 0.0, %v1198
        %v1200 = vpop.f32.mrf.mxu0
        %1201 = vmatprep.mubr.bf16.mxu0 0
        %1202 = vmatmul.mubr.bf16.gmra.mxu0 %v1122
        %v1203 = vpop.f32.mrf.mxu0
        %v1204 = vadd.f32 0.0, %v1203
        %v1205 = vpop.f32.mrf.mxu0
        %v1206 = vpop.f32.mrf.mxu0
        %v1207 = vadd.f32 0.0, %v1206
        %v1208 = vpop.f32.mrf.mxu0
        %1209 = vmatprep.mubr.bf16.mxu0 0
        %1210 = vmatmul.mubr.bf16.gmra.mxu0 %v1123
        %v1211 = vpop.f32.mrf.mxu0
        %v1212 = vadd.f32 0.0, %v1211
        %v1213 = vpop.f32.mrf.mxu0
        %v1214 = vpop.f32.mrf.mxu0
        %v1215 = vadd.f32 0.0, %v1214
        %v1216 = vpop.f32.mrf.mxu0
        %1217 = vmatprep.mubr.bf16.mxu0 0
        %1218 = vmatmul.mubr.bf16.gmra.mxu0 %v1124
        %v1219 = vpop.f32.mrf.mxu0
        %v1220 = vadd.f32 0.0, %v1219
        %v1221 = vpop.f32.mrf.mxu0
        %v1222 = vpop.f32.mrf.mxu0
        %v1223 = vadd.f32 0.0, %v1222
        %v1224 = vpop.f32.mrf.mxu0
        %1225 = vmatprep.mubr.bf16.mxu0 0
        %1226 = vmatmul.mubr.bf16.gmra.mxu0 %v1125
        %v1227 = vpop.f32.mrf.mxu0
        %v1228 = vadd.f32 0.0, %v1227
        %v1229 = vpop.f32.mrf.mxu0
        %v1230 = vpop.f32.mrf.mxu0
        %v1231 = vadd.f32 0.0, %v1230
        %v1232 = vpop.f32.mrf.mxu0
        %1233 = vmatprep.mubr.bf16.mxu0 0
        %1234 = vmatmul.mubr.bf16.gmra.mxu0 %v1126
        %v1235 = vpop.f32.mrf.mxu0
        %v1236 = vadd.f32 0.0, %v1235
        %v1237 = vpop.f32.mrf.mxu0
        %v1238 = vpop.f32.mrf.mxu0
        %v1239 = vadd.f32 0.0, %v1238
        %v1240 = vpop.f32.mrf.mxu0
        %1241 = vmatprep.mubr.bf16.mxu0 0
        %1242 = vmatmul.mubr.bf16.gmra.mxu0 %v1127
        %v1243 = vpop.f32.mrf.mxu0
        %v1244 = vadd.f32 0.0, %v1243
        %v1245 = vpop.f32.mrf.mxu0
        %v1246 = vpop.f32.mrf.mxu0
        %v1247 = vadd.f32 0.0, %v1246
        %v1248 = vpop.f32.mrf.mxu0
        %1249 = vmatprep.mubr.bf16.mxu0 0
        %1250 = vmatmul.mubr.bf16.gmra.mxu0 %v1128
        %v1251 = vpop.f32.mrf.mxu0
        %v1252 = vadd.f32 0.0, %v1251
        %v1253 = vpop.f32.mrf.mxu0
        %v1254 = vpop.f32.mrf.mxu0
        %v1255 = vadd.f32 0.0, %v1254
        %v1256 = vpop.f32.mrf.mxu0
        %1257 = vdwg.mxu0
        %1274 = vrot.lane.b32.xlu0 %v1010, 32
        %v1275 = vpop.permute.xlu0 %1274
        %1276 = vrot.lane.b32.xlu0 %v1013, 32
        %v1277 = vpop.permute.xlu0 %1276
        %1278 = vrot.lane.b32.xlu0 %v1018, 32
        %v1279 = vpop.permute.xlu0 %1278
        %1280 = vrot.lane.b32.xlu0 %v1021, 32
        %v1281 = vpop.permute.xlu0 %1280
        %1282 = vrot.lane.b32.xlu0 %v1026, 32
        %v1283 = vpop.permute.xlu0 %1282
        %1284 = vrot.lane.b32.xlu0 %v1029, 32
        %v1285 = vpop.permute.xlu0 %1284
        %1286 = vrot.lane.b32.xlu0 %v1034, 32
        %v1287 = vpop.permute.xlu0 %1286
        %1288 = vrot.lane.b32.xlu0 %v1037, 32
        %v1289 = vpop.permute.xlu0 %1288
        %1290 = vrot.lane.b32.xlu0 %v1042, 32
        %v1291 = vpop.permute.xlu0 %1290
        %1292 = vrot.lane.b32.xlu0 %v1045, 32
        %v1293 = vpop.permute.xlu0 %1292
        %1294 = vrot.lane.b32.xlu0 %v1050, 32
        %v1295 = vpop.permute.xlu0 %1294
        %1296 = vrot.lane.b32.xlu0 %v1053, 32
        %v1297 = vpop.permute.xlu0 %1296
        %1298 = vrot.lane.b32.xlu0 %v1058, 32
        %v1299 = vpop.permute.xlu0 %1298
        %1300 = vrot.lane.b32.xlu0 %v1061, 32
        %v1301 = vpop.permute.xlu0 %1300
        %1302 = vrot.lane.b32.xlu0 %v1066, 32
        %v1303 = vpop.permute.xlu0 %1302
        %1304 = vrot.lane.b32.xlu0 %v1069, 32
        %v1305 = vpop.permute.xlu0 %1304
        %1338 = vrot.lane.b32.xlu0 %v1196, 64
        %v1339 = vpop.permute.xlu0 %1338
        %1340 = vrot.lane.b32.xlu0 %v1199, 64
        %v1341 = vpop.permute.xlu0 %1340
        %1342 = vrot.lane.b32.xlu0 %v1204, 64
        %v1343 = vpop.permute.xlu0 %1342
        %1344 = vrot.lane.b32.xlu0 %v1207, 64
        %v1345 = vpop.permute.xlu0 %1344
        %1346 = vrot.lane.b32.xlu0 %v1212, 64
        %v1347 = vpop.permute.xlu0 %1346
        %1348 = vrot.lane.b32.xlu0 %v1215, 64
        %v1349 = vpop.permute.xlu0 %1348
        %1350 = vrot.lane.b32.xlu0 %v1220, 64
        %v1351 = vpop.permute.xlu0 %1350
        %1352 = vrot.lane.b32.xlu0 %v1223, 64
        %v1353 = vpop.permute.xlu0 %1352
        %1354 = vrot.lane.b32.xlu0 %v1228, 64
        %v1355 = vpop.permute.xlu0 %1354
        %1356 = vrot.lane.b32.xlu0 %v1231, 64
        %v1357 = vpop.permute.xlu0 %1356
        %1358 = vrot.lane.b32.xlu0 %v1236, 64
        %v1359 = vpop.permute.xlu0 %1358
        %1360 = vrot.lane.b32.xlu0 %v1239, 64
        %v1361 = vpop.permute.xlu0 %1360
        %1362 = vrot.lane.b32.xlu0 %v1244, 64
        %v1363 = vpop.permute.xlu0 %1362
        %1364 = vrot.lane.b32.xlu0 %v1247, 64
        %v1365 = vpop.permute.xlu0 %1364
        %1366 = vrot.lane.b32.xlu0 %v1252, 64
        %v1367 = vpop.permute.xlu0 %1366
        %1368 = vrot.lane.b32.xlu0 %v1255, 64
        %v1369 = vpop.permute.xlu0 %1368
        %v1386 = vsel %vm587, %v816, %v1275
        %v1387 = vsel %vm587, %v819, %v1277
        %v1388 = vsel %vm587, %v824, %v1279
        %v1389 = vsel %vm587, %v827, %v1281
        %v1390 = vsel %vm587, %v832, %v1283
        %v1391 = vsel %vm587, %v835, %v1285
        %v1392 = vsel %vm587, %v840, %v1287
        %v1393 = vsel %vm587, %v843, %v1289
        %v1394 = vsel %vm587, %v848, %v1291
        %v1395 = vsel %vm587, %v851, %v1293
        %v1396 = vsel %vm587, %v856, %v1295
        %v1397 = vsel %vm587, %v859, %v1297
        %v1398 = vsel %vm587, %v864, %v1299
        %v1399 = vsel %vm587, %v867, %v1301
        %v1400 = vsel %vm587, %v872, %v1303
        %v1401 = vsel %vm587, %v875, %v1305
        %vm1402 = vcmask 523264
        %v1403 = vsel %vm1402, %v1386, %v1339
        %v1404 = vsel %vm1402, %v1387, %v1341
        %v1405 = vsel %vm1402, %v1388, %v1343
        %v1406 = vsel %vm1402, %v1389, %v1345
        %v1407 = vsel %vm1402, %v1390, %v1347
        %v1408 = vsel %vm1402, %v1391, %v1349
        %v1409 = vsel %vm1402, %v1392, %v1351
        %v1410 = vsel %vm1402, %v1393, %v1353
        %v1411 = vsel %vm1402, %v1394, %v1355
        %v1412 = vsel %vm1402, %v1395, %v1357
        %v1413 = vsel %vm1402, %v1396, %v1359
        %v1414 = vsel %vm1402, %v1397, %v1361
        %v1415 = vsel %vm1402, %v1398, %v1363
        %v1416 = vsel %vm1402, %v1399, %v1365
        %v1417 = vsel %vm1402, %v1400, %v1367
        %v1418 = vsel %vm1402, %v1401, %v1369
        %v1419 = vtanh.pop %v1403
        %v1420 = vtanh.pop %v1404
        %v1421 = vtanh.pop %v1405
        %v1422 = vtanh.pop %v1406
        %v1423 = vtanh.pop %v1407
        %v1424 = vtanh.pop %v1408
        %v1425 = vtanh.pop %v1409
        %v1426 = vtanh.pop %v1410
        %v1427 = vtanh.pop %v1411
        %v1428 = vtanh.pop %v1412
        %v1429 = vtanh.pop %v1413
        %v1430 = vtanh.pop %v1414
        %v1431 = vtanh.pop %v1415
        %v1432 = vtanh.pop %v1416
        %v1433 = vtanh.pop %v1417
        %v1434 = vtanh.pop %v1418
        %v1435 = vpack.c.bf16 %v1420, %v1419
        %v1436 = vpack.c.bf16 %v1422, %v1421
        %v1437 = vpack.c.bf16 %v1424, %v1423
        %v1438 = vpack.c.bf16 %v1426, %v1425
        %v1439 = vpack.c.bf16 %v1428, %v1427
        %v1440 = vpack.c.bf16 %v1430, %v1429
        %v1441 = vpack.c.bf16 %v1432, %v1431
        %v1442 = vpack.c.bf16 %v1434, %v1433
        %v1443 = vld [vmem:[%s6] sm:$0xf]
        %v1444 = vld [vmem:[%s6 + $0x4] sm:$0xf]
        %v1445 = vld [vmem:[%s6 + $0x8] sm:$0xf]
        %v1446 = vld [vmem:[%s6 + $0xc] sm:$0xf]
        %v1447 = vld [vmem:[%s6 + $0x10] sm:$0xf]
        %v1448 = vld [vmem:[%s6 + $0x14] sm:$0xf]
        %v1449 = vld [vmem:[%s6 + $0x18] sm:$0xf]
        %v1450 = vld [vmem:[%s6 + $0x1c] sm:$0xf]
        %v1451 = vld [vmem:[%s6 + $0x20] sm:$0xf]
        %v1452 = vld [vmem:[%s6 + $0x24] sm:$0xf]
        %v1453 = vld [vmem:[%s6 + $0x28] sm:$0xf]
        %v1454 = vld [vmem:[%s6 + $0x2c] sm:$0xf]
        %v1455 = vld [vmem:[%s7] sm:$0x1]
        %v1457 = vlaneseq
        %v1458 = vshrl.u32 %v1457, 7
        %v1459 = vsub.s32 0, %v1458
        %v1460 = vrot.slane %v1455, %v1459
        %v1474 = vunpack.c.l.b16 %v1443
        %v1475 = vunpack.c.l.b16 %v1444
        %v1476 = vunpack.c.l.b16 %v1445
        %v1477 = vunpack.c.l.b16 %v1446
        %v1478 = vunpack.c.l.b16 %v1447
        %v1479 = vunpack.c.l.b16 %v1448
        %v1480 = vunpack.c.l.b16 %v1449
        %v1481 = vunpack.c.l.b16 %v1450
        %v1482 = vunpack.c.l.b16 %v1451
        %v1483 = vunpack.c.l.b16 %v1452
        %v1484 = vunpack.c.l.b16 %v1453
        %v1485 = vunpack.c.l.b16 %v1454
        %v1486 = vpack.c.b16 %v1475, %v1474
        %v1487 = vpack.c.b16 %v1477, %v1476
        %v1488 = vpack.c.b16 %v1479, %v1478
        %v1489 = vpack.c.b16 %v1481, %v1480
        %v1490 = vpack.c.b16 %v1483, %v1482
        %v1491 = vpack.c.b16 %v1485, %v1484
        %vm1498 = vcmask 785408
        %v1500 = vsel %vm1498, %v1435, 0
        %v1503 = vsel %vm1498, %v1436, 0
        %v1506 = vsel %vm1498, %v1437, 0
        %v1509 = vsel %vm1498, %v1438, 0
        %v1512 = vsel %vm1498, %v1439, 0
        %v1515 = vsel %vm1498, %v1440, 0
        %v1518 = vsel %vm1498, %v1441, 0
        %v1521 = vsel %vm1498, %v1442, 0
        %1523 = vmatprep.subr.bf16.mxu0 0
        %1524 = vmatpush1.bf16.msra.mxu0 0
        %1525 = vmatprep.subr.bf16.mxu0 0
        %1526 = vmatpush1.bf16.msra.mxu0 0
        %1527 = vmatprep.subr.bf16.mxu0 0
        %1528 = vmatpush1.bf16.msra.mxu0 %v1491
        %1529 = vmatprep.subr.bf16.mxu0 0
        %1530 = vmatpush1.bf16.msra.mxu0 %v1490
        %1531 = vmatprep.subr.bf16.mxu0 0
        %1532 = vmatpush1.bf16.msra.mxu0 %v1489
        %1533 = vmatprep.subr.bf16.mxu0 0
        %1534 = vmatpush1.bf16.msra.mxu0 %v1488
        %1535 = vmatprep.subr.bf16.mxu0 0
        %1536 = vmatpush1.bf16.msra.mxu0 %v1487
        %1537 = vmatprep.subr.bf16.mxu0 0
        %1538 = vmatpush1.bf16.msra.mxu0 %v1486
        %1539 = vmatprep.subr.bf16.mxu0 0
        %1540 = vmatpush2.bf16.msra.mxu0 0
        %1541 = vmatprep.subr.bf16.mxu0 0
        %1542 = vmatpush2.bf16.msra.mxu0 0
        %1543 = vmatprep.subr.bf16.mxu0 0
        %1544 = vmatpush2.bf16.msra.mxu0 0
        %1545 = vmatprep.subr.bf16.mxu0 0
        %1546 = vmatpush2.bf16.msra.mxu0 0
        %1547 = vmatprep.subr.bf16.mxu0 0
        %1548 = vmatpush2.bf16.msra.mxu0 0
        %1549 = vmatprep.subr.bf16.mxu0 0
        %1550 = vmatpush2.bf16.msra.mxu0 0
        %1551 = vmatprep.subr.bf16.mxu0 0
        %1552 = vmatpush2.bf16.msra.mxu0 0
        %1553 = vmatprep.subr.bf16.mxu0 0
        %1554 = vmatpush2.bf16.msra.mxu0 0
        %1555 = vmatprep.mubr.bf16.mxu0 0
        %1556 = vmatmul.mubr.bf16.gmra.mxu0 %v1500
        %v1557 = vpop.f32.mrf.mxu0
        %v1558 = vadd.f32 %v1460, %v1557
        %v1559 = vpop.f32.mrf.mxu0
        %v1560 = vpop.f32.mrf.mxu0
        %v1561 = vadd.f32 %v1460, %v1560
        %v1562 = vpop.f32.mrf.mxu0
        %1563 = vmatprep.mubr.bf16.mxu0 0
        %1564 = vmatmul.mubr.bf16.gmra.mxu0 %v1503
        %v1565 = vpop.f32.mrf.mxu0
        %v1566 = vadd.f32 %v1460, %v1565
        %v1567 = vpop.f32.mrf.mxu0
        %v1568 = vpop.f32.mrf.mxu0
        %v1569 = vadd.f32 %v1460, %v1568
        %v1570 = vpop.f32.mrf.mxu0
        %1571 = vmatprep.mubr.bf16.mxu0 0
        %1572 = vmatmul.mubr.bf16.gmra.mxu0 %v1506
        %v1573 = vpop.f32.mrf.mxu0
        %v1574 = vadd.f32 %v1460, %v1573
        %v1575 = vpop.f32.mrf.mxu0
        %v1576 = vpop.f32.mrf.mxu0
        %v1577 = vadd.f32 %v1460, %v1576
        %v1578 = vpop.f32.mrf.mxu0
        %1579 = vmatprep.mubr.bf16.mxu0 0
        %1580 = vmatmul.mubr.bf16.gmra.mxu0 %v1509
        %v1581 = vpop.f32.mrf.mxu0
        %v1582 = vadd.f32 %v1460, %v1581
        %v1583 = vpop.f32.mrf.mxu0
        %v1584 = vpop.f32.mrf.mxu0
        %v1585 = vadd.f32 %v1460, %v1584
        %v1586 = vpop.f32.mrf.mxu0
        %1587 = vmatprep.mubr.bf16.mxu0 0
        %1588 = vmatmul.mubr.bf16.gmra.mxu0 %v1512
        %v1589 = vpop.f32.mrf.mxu0
        %v1590 = vadd.f32 %v1460, %v1589
        %v1591 = vpop.f32.mrf.mxu0
        %v1592 = vpop.f32.mrf.mxu0
        %v1593 = vadd.f32 %v1460, %v1592
        %v1594 = vpop.f32.mrf.mxu0
        %1595 = vmatprep.mubr.bf16.mxu0 0
        %1596 = vmatmul.mubr.bf16.gmra.mxu0 %v1515
        %v1597 = vpop.f32.mrf.mxu0
        %v1598 = vadd.f32 %v1460, %v1597
        %v1599 = vpop.f32.mrf.mxu0
        %v1600 = vpop.f32.mrf.mxu0
        %v1601 = vadd.f32 %v1460, %v1600
        %v1602 = vpop.f32.mrf.mxu0
        %1603 = vmatprep.mubr.bf16.mxu0 0
        %1604 = vmatmul.mubr.bf16.gmra.mxu0 %v1518
        %v1605 = vpop.f32.mrf.mxu0
        %v1606 = vadd.f32 %v1460, %v1605
        %v1607 = vpop.f32.mrf.mxu0
        %v1608 = vpop.f32.mrf.mxu0
        %v1609 = vadd.f32 %v1460, %v1608
        %v1610 = vpop.f32.mrf.mxu0
        %1611 = vmatprep.mubr.bf16.mxu0 0
        %1612 = vmatmul.mubr.bf16.gmra.mxu0 %v1521
        %v1613 = vpop.f32.mrf.mxu0
        %v1614 = vadd.f32 %v1460, %v1613
        %v1615 = vpop.f32.mrf.mxu0
        %v1616 = vpop.f32.mrf.mxu0
        %v1617 = vadd.f32 %v1460, %v1616
        %v1618 = vpop.f32.mrf.mxu0
        %1619 = vdwg.mxu0
        %v1620 = vadd.f32 %v1558, %v540
        %v1621 = vadd.f32 %v1561, %v541
        %v1622 = vadd.f32 %v1566, %v542
        %v1623 = vadd.f32 %v1569, %v543
        %v1624 = vadd.f32 %v1574, %v544
        %v1625 = vadd.f32 %v1577, %v545
        %v1626 = vadd.f32 %v1582, %v546
        %v1627 = vadd.f32 %v1585, %v547
        %v1628 = vadd.f32 %v1590, %v548
        %v1629 = vadd.f32 %v1593, %v549
        %v1630 = vadd.f32 %v1598, %v550
        %v1631 = vadd.f32 %v1601, %v551
        %v1632 = vadd.f32 %v1606, %v552
        %v1633 = vadd.f32 %v1609, %v553
        %v1634 = vadd.f32 %v1614, %v554
        %v1635 = vadd.f32 %v1617, %v555
        %v1636 = vtanh.pop %v1620
        %v1637 = vtanh.pop %v1621
        %v1638 = vtanh.pop %v1622
        %v1639 = vtanh.pop %v1623
        %v1640 = vtanh.pop %v1624
        %v1641 = vtanh.pop %v1625
        %v1642 = vtanh.pop %v1626
        %v1643 = vtanh.pop %v1627
        %v1644 = vtanh.pop %v1628
        %v1645 = vtanh.pop %v1629
        %v1646 = vtanh.pop %v1630
        %v1647 = vtanh.pop %v1631
        %v1648 = vtanh.pop %v1632
        %v1649 = vtanh.pop %v1633
        %v1650 = vtanh.pop %v1634
        %v1651 = vtanh.pop %v1635
        %v1652 = vpack.c.bf16 %v1637, %v1636
        %v1653 = vpack.c.bf16 %v1639, %v1638
        %v1654 = vpack.c.bf16 %v1641, %v1640
        %v1655 = vpack.c.bf16 %v1643, %v1642
        %v1656 = vpack.c.bf16 %v1645, %v1644
        %v1657 = vpack.c.bf16 %v1647, %v1646
        %v1658 = vpack.c.bf16 %v1649, %v1648
        %v1659 = vpack.c.bf16 %v1651, %v1650
        %s1660 = scalar_lea.vmem %s4, 16
        %v1661 = vld [vmem:[%s1660] sm:$0xf]
        %v1662 = vld [vmem:[%s1660 + $0x4] sm:$0xf]
        %v1663 = vld [vmem:[%s1660 + $0x8] sm:$0xf]
        %v1664 = vld [vmem:[%s1660 + $0xc] sm:$0xf]
        %s1665 = scalar_lea.vmem %s5, 1
        %v1666 = vld [vmem:[%s1665] sm:$0x1]
        %v1668 = vlaneseq
        %v1669 = vshrl.u32 %v1668, 7
        %v1670 = vsub.s32 0, %v1669
        %v1671 = vrot.slane %v1666, %v1670
        %v1677 = vunpack.c.l.b16 %v1661
        %v1678 = vunpack.c.l.b16 %v1662
        %v1679 = vunpack.c.l.b16 %v1663
        %v1680 = vunpack.c.l.b16 %v1664
        %v1681 = vpack.c.b16 %v1678, %v1677
        %v1682 = vpack.c.b16 %v1680, %v1679
        %v1686 = vsel %vm587, %v1652, 0
        %v1689 = vsel %vm587, %v1653, 0
        %v1692 = vsel %vm587, %v1654, 0
        %v1695 = vsel %vm587, %v1655, 0
        %v1698 = vsel %vm587, %v1656, 0
        %v1701 = vsel %vm587, %v1657, 0
        %v1704 = vsel %vm587, %v1658, 0
        %v1707 = vsel %vm587, %v1659, 0
        %1709 = vmatprep.subr.bf16.mxu0 0
        %1710 = vmatpush1.bf16.msra.mxu0 0
        %1711 = vmatprep.subr.bf16.mxu0 0
        %1712 = vmatpush1.bf16.msra.mxu0 0
        %1713 = vmatprep.subr.bf16.mxu0 0
        %1714 = vmatpush1.bf16.msra.mxu0 0
        %1715 = vmatprep.subr.bf16.mxu0 0
        %1716 = vmatpush1.bf16.msra.mxu0 0
        %1717 = vmatprep.subr.bf16.mxu0 0
        %1718 = vmatpush1.bf16.msra.mxu0 0
        %1719 = vmatprep.subr.bf16.mxu0 0
        %1720 = vmatpush1.bf16.msra.mxu0 0
        %1721 = vmatprep.subr.bf16.mxu0 0
        %1722 = vmatpush1.bf16.msra.mxu0 %v1682
        %1723 = vmatprep.subr.bf16.mxu0 0
        %1724 = vmatpush1.bf16.msra.mxu0 %v1681
        %1725 = vmatprep.subr.bf16.mxu0 0
        %1726 = vmatpush2.bf16.msra.mxu0 0
        %1727 = vmatprep.subr.bf16.mxu0 0
        %1728 = vmatpush2.bf16.msra.mxu0 0
        %1729 = vmatprep.subr.bf16.mxu0 0
        %1730 = vmatpush2.bf16.msra.mxu0 0
        %1731 = vmatprep.subr.bf16.mxu0 0
        %1732 = vmatpush2.bf16.msra.mxu0 0
        %1733 = vmatprep.subr.bf16.mxu0 0
        %1734 = vmatpush2.bf16.msra.mxu0 0
        %1735 = vmatprep.subr.bf16.mxu0 0
        %1736 = vmatpush2.bf16.msra.mxu0 0
        %1737 = vmatprep.subr.bf16.mxu0 0
        %1738 = vmatpush2.bf16.msra.mxu0 0
        %1739 = vmatprep.subr.bf16.mxu0 0
        %1740 = vmatpush2.bf16.msra.mxu0 0
        %1741 = vmatprep.mubr.bf16.mxu0 0
        %1742 = vmatmul.mubr.bf16.gmra.mxu0 %v1686
        %v1743 = vpop.f32.mrf.mxu0
        %v1744 = vadd.f32 %v1671, %v1743
        %v1745 = vpop.f32.mrf.mxu0
        %v1746 = vpop.f32.mrf.mxu0
        %v1747 = vadd.f32 %v1671, %v1746
        %v1748 = vpop.f32.mrf.mxu0
        %1749 = vmatprep.mubr.bf16.mxu0 0
        %1750 = vmatmul.mubr.bf16.gmra.mxu0 %v1689
        %v1751 = vpop.f32.mrf.mxu0
        %v1752 = vadd.f32 %v1671, %v1751
        %v1753 = vpop.f32.mrf.mxu0
        %v1754 = vpop.f32.mrf.mxu0
        %v1755 = vadd.f32 %v1671, %v1754
        %v1756 = vpop.f32.mrf.mxu0
        %1757 = vmatprep.mubr.bf16.mxu0 0
        %1758 = vmatmul.mubr.bf16.gmra.mxu0 %v1692
        %v1759 = vpop.f32.mrf.mxu0
        %v1760 = vadd.f32 %v1671, %v1759
        %v1761 = vpop.f32.mrf.mxu0
        %v1762 = vpop.f32.mrf.mxu0
        %v1763 = vadd.f32 %v1671, %v1762
        %v1764 = vpop.f32.mrf.mxu0
        %1765 = vmatprep.mubr.bf16.mxu0 0
        %1766 = vmatmul.mubr.bf16.gmra.mxu0 %v1695
        %v1767 = vpop.f32.mrf.mxu0
        %v1768 = vadd.f32 %v1671, %v1767
        %v1769 = vpop.f32.mrf.mxu0
        %v1770 = vpop.f32.mrf.mxu0
        %v1771 = vadd.f32 %v1671, %v1770
        %v1772 = vpop.f32.mrf.mxu0
        %1773 = vmatprep.mubr.bf16.mxu0 0
        %1774 = vmatmul.mubr.bf16.gmra.mxu0 %v1698
        %v1775 = vpop.f32.mrf.mxu0
        %v1776 = vadd.f32 %v1671, %v1775
        %v1777 = vpop.f32.mrf.mxu0
        %v1778 = vpop.f32.mrf.mxu0
        %v1779 = vadd.f32 %v1671, %v1778
        %v1780 = vpop.f32.mrf.mxu0
        %1781 = vmatprep.mubr.bf16.mxu0 0
        %1782 = vmatmul.mubr.bf16.gmra.mxu0 %v1701
        %v1783 = vpop.f32.mrf.mxu0
        %v1784 = vadd.f32 %v1671, %v1783
        %v1785 = vpop.f32.mrf.mxu0
        %v1786 = vpop.f32.mrf.mxu0
        %v1787 = vadd.f32 %v1671, %v1786
        %v1788 = vpop.f32.mrf.mxu0
        %1789 = vmatprep.mubr.bf16.mxu0 0
        %1790 = vmatmul.mubr.bf16.gmra.mxu0 %v1704
        %v1791 = vpop.f32.mrf.mxu0
        %v1792 = vadd.f32 %v1671, %v1791
        %v1793 = vpop.f32.mrf.mxu0
        %v1794 = vpop.f32.mrf.mxu0
        %v1795 = vadd.f32 %v1671, %v1794
        %v1796 = vpop.f32.mrf.mxu0
        %1797 = vmatprep.mubr.bf16.mxu0 0
        %1798 = vmatmul.mubr.bf16.gmra.mxu0 %v1707
        %v1799 = vpop.f32.mrf.mxu0
        %v1800 = vadd.f32 %v1671, %v1799
        %v1801 = vpop.f32.mrf.mxu0
        %v1802 = vpop.f32.mrf.mxu0
        %v1803 = vadd.f32 %v1671, %v1802
        %v1804 = vpop.f32.mrf.mxu0
        %1805 = vdwg.mxu0
        %v1806 = vpack.c.bf16 %v1747, %v1744
        %v1807 = vpack.c.bf16 %v1755, %v1752
        %v1808 = vpack.c.bf16 %v1763, %v1760
        %v1809 = vpack.c.bf16 %v1771, %v1768
        %v1810 = vpack.c.bf16 %v1779, %v1776
        %v1811 = vpack.c.bf16 %v1787, %v1784
        %v1812 = vpack.c.bf16 %v1795, %v1792
        %v1813 = vpack.c.bf16 %v1803, %v1800
        %1814 = vmatprep.subr.bf16.mxu0 0
        %1815 = vmatpush1.bf16.msra.mxu0 %v1813
        %1816 = vmatprep.subr.bf16.mxu0 0
        %1817 = vmatpush1.bf16.msra.mxu0 %v1812
        %1818 = vmatprep.subr.bf16.mxu0 0
        %1819 = vmatpush1.bf16.msra.mxu0 %v1811
        %1820 = vmatprep.subr.bf16.mxu0 0
        %1821 = vmatpush1.bf16.msra.mxu0 %v1810
        %1822 = vmatprep.subr.bf16.mxu0 0
        %1823 = vmatpush1.bf16.msra.mxu0 %v1809
        %1824 = vmatprep.subr.bf16.mxu0 0
        %1825 = vmatpush1.bf16.msra.mxu0 %v1808
        %1826 = vmatprep.subr.bf16.mxu0 0
        %1827 = vmatpush1.bf16.msra.mxu0 %v1807
        %1828 = vmatprep.subr.bf16.mxu0 0
        %1829 = vmatpush1.bf16.msra.mxu0 %v1806
        %1830 = vmatprep.subr.bf16.mxu0 0
        %1831 = vmatpush2.bf16.msra.mxu0 0
        %1832 = vmatprep.subr.bf16.mxu0 0
        %1833 = vmatpush2.bf16.msra.mxu0 0
        %1834 = vmatprep.subr.bf16.mxu0 0
        %1835 = vmatpush2.bf16.msra.mxu0 0
        %1836 = vmatprep.subr.bf16.mxu0 0
        %1837 = vmatpush2.bf16.msra.mxu0 0
        %1838 = vmatprep.subr.bf16.mxu0 0
        %1839 = vmatpush2.bf16.msra.mxu0 0
        %1840 = vmatprep.subr.bf16.mxu0 0
        %1841 = vmatpush2.bf16.msra.mxu0 0
        %1842 = vmatprep.subr.bf16.mxu0 0
        %1843 = vmatpush2.bf16.msra.mxu0 0
        %1844 = vmatprep.subr.bf16.mxu0 0
        %1845 = vmatpush2.bf16.msra.mxu0 0
        %1846 = vmatprep.mubr.bf16.mxu0 0
        %1847 = vmatmul.mubr.bf16.gmra.mxu0 %v765
        %v1848 = vpop.f32.mrf.mxu0
        %v1849 = vadd.f32 0.0, %v1848
        %v1850 = vpop.f32.mrf.mxu0
        %v1851 = vpop.f32.mrf.mxu0
        %v1852 = vadd.f32 0.0, %v1851
        %v1853 = vpop.f32.mrf.mxu0
        %1854 = vmatprep.mubr.bf16.mxu0 0
        %1855 = vmatmul.mubr.bf16.gmra.mxu0 %v766
        %v1856 = vpop.f32.mrf.mxu0
        %v1857 = vadd.f32 0.0, %v1856
        %v1858 = vpop.f32.mrf.mxu0
        %v1859 = vpop.f32.mrf.mxu0
        %v1860 = vadd.f32 0.0, %v1859
        %v1861 = vpop.f32.mrf.mxu0
        %1862 = vmatprep.mubr.bf16.mxu0 0
        %1863 = vmatmul.mubr.bf16.gmra.mxu0 %v767
        %v1864 = vpop.f32.mrf.mxu0
        %v1865 = vadd.f32 0.0, %v1864
        %v1866 = vpop.f32.mrf.mxu0
        %v1867 = vpop.f32.mrf.mxu0
        %v1868 = vadd.f32 0.0, %v1867
        %v1869 = vpop.f32.mrf.mxu0
        %1870 = vmatprep.mubr.bf16.mxu0 0
        %1871 = vmatmul.mubr.bf16.gmra.mxu0 %v768
        %v1872 = vpop.f32.mrf.mxu0
        %v1873 = vadd.f32 0.0, %v1872
        %v1874 = vpop.f32.mrf.mxu0
        %v1875 = vpop.f32.mrf.mxu0
        %v1876 = vadd.f32 0.0, %v1875
        %v1877 = vpop.f32.mrf.mxu0
        %1878 = vmatprep.mubr.bf16.mxu0 0
        %1879 = vmatmul.mubr.bf16.gmra.mxu0 %v769
        %v1880 = vpop.f32.mrf.mxu0
        %v1881 = vadd.f32 0.0, %v1880
        %v1882 = vpop.f32.mrf.mxu0
        %v1883 = vpop.f32.mrf.mxu0
        %v1884 = vadd.f32 0.0, %v1883
        %v1885 = vpop.f32.mrf.mxu0
        %1886 = vmatprep.mubr.bf16.mxu0 0
        %1887 = vmatmul.mubr.bf16.gmra.mxu0 %v770
        %v1888 = vpop.f32.mrf.mxu0
        %v1889 = vadd.f32 0.0, %v1888
        %v1890 = vpop.f32.mrf.mxu0
        %v1891 = vpop.f32.mrf.mxu0
        %v1892 = vadd.f32 0.0, %v1891
        %v1893 = vpop.f32.mrf.mxu0
        %1894 = vmatprep.mubr.bf16.mxu0 0
        %1895 = vmatmul.mubr.bf16.gmra.mxu0 %v771
        %v1896 = vpop.f32.mrf.mxu0
        %v1897 = vadd.f32 0.0, %v1896
        %v1898 = vpop.f32.mrf.mxu0
        %v1899 = vpop.f32.mrf.mxu0
        %v1900 = vadd.f32 0.0, %v1899
        %v1901 = vpop.f32.mrf.mxu0
        %1902 = vmatprep.mubr.bf16.mxu0 0
        %1903 = vmatmul.mubr.bf16.gmra.mxu0 %v772
        %v1904 = vpop.f32.mrf.mxu0
        %v1905 = vadd.f32 0.0, %v1904
        %v1906 = vpop.f32.mrf.mxu0
        %v1907 = vpop.f32.mrf.mxu0
        %v1908 = vadd.f32 0.0, %v1907
        %v1909 = vpop.f32.mrf.mxu0
        %1910 = vdwg.mxu0
        %1919 = vrot.lane.b32.xlu0 %v1806, 96
        %v1920 = vpop.permute.xlu0 %1919
        %1921 = vrot.lane.b32.xlu0 %v1807, 96
        %v1922 = vpop.permute.xlu0 %1921
        %1923 = vrot.lane.b32.xlu0 %v1808, 96
        %v1924 = vpop.permute.xlu0 %1923
        %1925 = vrot.lane.b32.xlu0 %v1809, 96
        %v1926 = vpop.permute.xlu0 %1925
        %1927 = vrot.lane.b32.xlu0 %v1810, 96
        %v1928 = vpop.permute.xlu0 %1927
        %1929 = vrot.lane.b32.xlu0 %v1811, 96
        %v1930 = vpop.permute.xlu0 %1929
        %1931 = vrot.lane.b32.xlu0 %v1812, 96
        %v1932 = vpop.permute.xlu0 %1931
        %1933 = vrot.lane.b32.xlu0 %v1813, 96
        %v1934 = vpop.permute.xlu0 %1933
        %1943 = vmatprep.subr.bf16.mxu0 0
        %1944 = vmatpush1.bf16.msra.mxu0 %v1934
        %1945 = vmatprep.subr.bf16.mxu0 0
        %1946 = vmatpush1.bf16.msra.mxu0 %v1932
        %1947 = vmatprep.subr.bf16.mxu0 0
        %1948 = vmatpush1.bf16.msra.mxu0 %v1930
        %1949 = vmatprep.subr.bf16.mxu0 0
        %1950 = vmatpush1.bf16.msra.mxu0 %v1928
        %1951 = vmatprep.subr.bf16.mxu0 0
        %1952 = vmatpush1.bf16.msra.mxu0 %v1926
        %1953 = vmatprep.subr.bf16.mxu0 0
        %1954 = vmatpush1.bf16.msra.mxu0 %v1924
        %1955 = vmatprep.subr.bf16.mxu0 0
        %1956 = vmatpush1.bf16.msra.mxu0 %v1922
        %1957 = vmatprep.subr.bf16.mxu0 0
        %1958 = vmatpush1.bf16.msra.mxu0 %v1920
        %1959 = vmatprep.subr.bf16.mxu0 0
        %1960 = vmatpush2.bf16.msra.mxu0 0
        %1961 = vmatprep.subr.bf16.mxu0 0
        %1962 = vmatpush2.bf16.msra.mxu0 0
        %1963 = vmatprep.subr.bf16.mxu0 0
        %1964 = vmatpush2.bf16.msra.mxu0 0
        %1965 = vmatprep.subr.bf16.mxu0 0
        %1966 = vmatpush2.bf16.msra.mxu0 0
        %1967 = vmatprep.subr.bf16.mxu0 0
        %1968 = vmatpush2.bf16.msra.mxu0 0
        %1969 = vmatprep.subr.bf16.mxu0 0
        %1970 = vmatpush2.bf16.msra.mxu0 0
        %1971 = vmatprep.subr.bf16.mxu0 0
        %1972 = vmatpush2.bf16.msra.mxu0 0
        %1973 = vmatprep.subr.bf16.mxu0 0
        %1974 = vmatpush2.bf16.msra.mxu0 0
        %1975 = vmatprep.mubr.bf16.mxu0 0
        %1976 = vmatmul.mubr.bf16.gmra.mxu0 %v927
        %v1977 = vpop.f32.mrf.mxu0
        %v1978 = vadd.f32 0.0, %v1977
        %v1979 = vpop.f32.mrf.mxu0
        %v1980 = vpop.f32.mrf.mxu0
        %v1981 = vadd.f32 0.0, %v1980
        %v1982 = vpop.f32.mrf.mxu0
        %1983 = vmatprep.mubr.bf16.mxu0 0
        %1984 = vmatmul.mubr.bf16.gmra.mxu0 %v928
        %v1985 = vpop.f32.mrf.mxu0
        %v1986 = vadd.f32 0.0, %v1985
        %v1987 = vpop.f32.mrf.mxu0
        %v1988 = vpop.f32.mrf.mxu0
        %v1989 = vadd.f32 0.0, %v1988
        %v1990 = vpop.f32.mrf.mxu0
        %1991 = vmatprep.mubr.bf16.mxu0 0
        %1992 = vmatmul.mubr.bf16.gmra.mxu0 %v929
        %v1993 = vpop.f32.mrf.mxu0
        %v1994 = vadd.f32 0.0, %v1993
        %v1995 = vpop.f32.mrf.mxu0
        %v1996 = vpop.f32.mrf.mxu0
        %v1997 = vadd.f32 0.0, %v1996
        %v1998 = vpop.f32.mrf.mxu0
        %1999 = vmatprep.mubr.bf16.mxu0 0
        %2000 = vmatmul.mubr.bf16.gmra.mxu0 %v930
        %v2001 = vpop.f32.mrf.mxu0
        %v2002 = vadd.f32 0.0, %v2001
        %v2003 = vpop.f32.mrf.mxu0
        %v2004 = vpop.f32.mrf.mxu0
        %v2005 = vadd.f32 0.0, %v2004
        %v2006 = vpop.f32.mrf.mxu0
        %2007 = vmatprep.mubr.bf16.mxu0 0
        %2008 = vmatmul.mubr.bf16.gmra.mxu0 %v931
        %v2009 = vpop.f32.mrf.mxu0
        %v2010 = vadd.f32 0.0, %v2009
        %v2011 = vpop.f32.mrf.mxu0
        %v2012 = vpop.f32.mrf.mxu0
        %v2013 = vadd.f32 0.0, %v2012
        %v2014 = vpop.f32.mrf.mxu0
        %2015 = vmatprep.mubr.bf16.mxu0 0
        %2016 = vmatmul.mubr.bf16.gmra.mxu0 %v932
        %v2017 = vpop.f32.mrf.mxu0
        %v2018 = vadd.f32 0.0, %v2017
        %v2019 = vpop.f32.mrf.mxu0
        %v2020 = vpop.f32.mrf.mxu0
        %v2021 = vadd.f32 0.0, %v2020
        %v2022 = vpop.f32.mrf.mxu0
        %2023 = vmatprep.mubr.bf16.mxu0 0
        %2024 = vmatmul.mubr.bf16.gmra.mxu0 %v933
        %v2025 = vpop.f32.mrf.mxu0
        %v2026 = vadd.f32 0.0, %v2025
        %v2027 = vpop.f32.mrf.mxu0
        %v2028 = vpop.f32.mrf.mxu0
        %v2029 = vadd.f32 0.0, %v2028
        %v2030 = vpop.f32.mrf.mxu0
        %2031 = vmatprep.mubr.bf16.mxu0 0
        %2032 = vmatmul.mubr.bf16.gmra.mxu0 %v934
        %v2033 = vpop.f32.mrf.mxu0
        %v2034 = vadd.f32 0.0, %v2033
        %v2035 = vpop.f32.mrf.mxu0
        %v2036 = vpop.f32.mrf.mxu0
        %v2037 = vadd.f32 0.0, %v2036
        %v2038 = vpop.f32.mrf.mxu0
        %2039 = vdwg.mxu0
        %2040 = vrot.lane.b32.xlu0 %v1806, 64
        %v2041 = vpop.permute.xlu0 %2040
        %2042 = vrot.lane.b32.xlu0 %v1807, 64
        %v2043 = vpop.permute.xlu0 %2042
        %2044 = vrot.lane.b32.xlu0 %v1808, 64
        %v2045 = vpop.permute.xlu0 %2044
        %2046 = vrot.lane.b32.xlu0 %v1809, 64
        %v2047 = vpop.permute.xlu0 %2046
        %2048 = vrot.lane.b32.xlu0 %v1810, 64
        %v2049 = vpop.permute.xlu0 %2048
        %2050 = vrot.lane.b32.xlu0 %v1811, 64
        %v2051 = vpop.permute.xlu0 %2050
        %2052 = vrot.lane.b32.xlu0 %v1812, 64
        %v2053 = vpop.permute.xlu0 %2052
        %2054 = vrot.lane.b32.xlu0 %v1813, 64
        %v2055 = vpop.permute.xlu0 %2054
        %2064 = vmatprep.subr.bf16.mxu0 0
        %2065 = vmatpush1.bf16.msra.mxu0 %v2055
        %2066 = vmatprep.subr.bf16.mxu0 0
        %2067 = vmatpush1.bf16.msra.mxu0 %v2053
        %2068 = vmatprep.subr.bf16.mxu0 0
        %2069 = vmatpush1.bf16.msra.mxu0 %v2051
        %2070 = vmatprep.subr.bf16.mxu0 0
        %2071 = vmatpush1.bf16.msra.mxu0 %v2049
        %2072 = vmatprep.subr.bf16.mxu0 0
        %2073 = vmatpush1.bf16.msra.mxu0 %v2047
        %2074 = vmatprep.subr.bf16.mxu0 0
        %2075 = vmatpush1.bf16.msra.mxu0 %v2045
        %2076 = vmatprep.subr.bf16.mxu0 0
        %2077 = vmatpush1.bf16.msra.mxu0 %v2043
        %2078 = vmatprep.subr.bf16.mxu0 0
        %2079 = vmatpush1.bf16.msra.mxu0 %v2041
        %2080 = vmatprep.subr.bf16.mxu0 0
        %2081 = vmatpush2.bf16.msra.mxu0 0
        %2082 = vmatprep.subr.bf16.mxu0 0
        %2083 = vmatpush2.bf16.msra.mxu0 0
        %2084 = vmatprep.subr.bf16.mxu0 0
        %2085 = vmatpush2.bf16.msra.mxu0 0
        %2086 = vmatprep.subr.bf16.mxu0 0
        %2087 = vmatpush2.bf16.msra.mxu0 0
        %2088 = vmatprep.subr.bf16.mxu0 0
        %2089 = vmatpush2.bf16.msra.mxu0 0
        %2090 = vmatprep.subr.bf16.mxu0 0
        %2091 = vmatpush2.bf16.msra.mxu0 0
        %2092 = vmatprep.subr.bf16.mxu0 0
        %2093 = vmatpush2.bf16.msra.mxu0 0
        %2094 = vmatprep.subr.bf16.mxu0 0
        %2095 = vmatpush2.bf16.msra.mxu0 0
        %2096 = vmatprep.mubr.bf16.mxu0 0
        %2097 = vmatmul.mubr.bf16.gmra.mxu0 %v1121
        %v2098 = vpop.f32.mrf.mxu0
        %v2099 = vadd.f32 0.0, %v2098
        %v2100 = vpop.f32.mrf.mxu0
        %v2101 = vpop.f32.mrf.mxu0
        %v2102 = vadd.f32 0.0, %v2101
        %v2103 = vpop.f32.mrf.mxu0
        %2104 = vmatprep.mubr.bf16.mxu0 0
        %2105 = vmatmul.mubr.bf16.gmra.mxu0 %v1122
        %v2106 = vpop.f32.mrf.mxu0
        %v2107 = vadd.f32 0.0, %v2106
        %v2108 = vpop.f32.mrf.mxu0
        %v2109 = vpop.f32.mrf.mxu0
        %v2110 = vadd.f32 0.0, %v2109
        %v2111 = vpop.f32.mrf.mxu0
        %2112 = vmatprep.mubr.bf16.mxu0 0
        %2113 = vmatmul.mubr.bf16.gmra.mxu0 %v1123
        %v2114 = vpop.f32.mrf.mxu0
        %v2115 = vadd.f32 0.0, %v2114
        %v2116 = vpop.f32.mrf.mxu0
        %v2117 = vpop.f32.mrf.mxu0
        %v2118 = vadd.f32 0.0, %v2117
        %v2119 = vpop.f32.mrf.mxu0
        %2120 = vmatprep.mubr.bf16.mxu0 0
        %2121 = vmatmul.mubr.bf16.gmra.mxu0 %v1124
        %v2122 = vpop.f32.mrf.mxu0
        %v2123 = vadd.f32 0.0, %v2122
        %v2124 = vpop.f32.mrf.mxu0
        %v2125 = vpop.f32.mrf.mxu0
        %v2126 = vadd.f32 0.0, %v2125
        %v2127 = vpop.f32.mrf.mxu0
        %2128 = vmatprep.mubr.bf16.mxu0 0
        %2129 = vmatmul.mubr.bf16.gmra.mxu0 %v1125
        %v2130 = vpop.f32.mrf.mxu0
        %v2131 = vadd.f32 0.0, %v2130
        %v2132 = vpop.f32.mrf.mxu0
        %v2133 = vpop.f32.mrf.mxu0
        %v2134 = vadd.f32 0.0, %v2133
        %v2135 = vpop.f32.mrf.mxu0
        %2136 = vmatprep.mubr.bf16.mxu0 0
        %2137 = vmatmul.mubr.bf16.gmra.mxu0 %v1126
        %v2138 = vpop.f32.mrf.mxu0
        %v2139 = vadd.f32 0.0, %v2138
        %v2140 = vpop.f32.mrf.mxu0
        %v2141 = vpop.f32.mrf.mxu0
        %v2142 = vadd.f32 0.0, %v2141
        %v2143 = vpop.f32.mrf.mxu0
        %2144 = vmatprep.mubr.bf16.mxu0 0
        %2145 = vmatmul.mubr.bf16.gmra.mxu0 %v1127
        %v2146 = vpop.f32.mrf.mxu0
        %v2147 = vadd.f32 0.0, %v2146
        %v2148 = vpop.f32.mrf.mxu0
        %v2149 = vpop.f32.mrf.mxu0
        %v2150 = vadd.f32 0.0, %v2149
        %v2151 = vpop.f32.mrf.mxu0
        %2152 = vmatprep.mubr.bf16.mxu0 0
        %2153 = vmatmul.mubr.bf16.gmra.mxu0 %v1128
        %v2154 = vpop.f32.mrf.mxu0
        %v2155 = vadd.f32 0.0, %v2154
        %v2156 = vpop.f32.mrf.mxu0
        %v2157 = vpop.f32.mrf.mxu0
        %v2158 = vadd.f32 0.0, %v2157
        %v2159 = vpop.f32.mrf.mxu0
        %2160 = vdwg.mxu0
        %2177 = vrot.lane.b32.xlu0 %v1978, 32
        %v2178 = vpop.permute.xlu0 %2177
        %2179 = vrot.lane.b32.xlu0 %v1981, 32
        %v2180 = vpop.permute.xlu0 %2179
        %2181 = vrot.lane.b32.xlu0 %v1986, 32
        %v2182 = vpop.permute.xlu0 %2181
        %2183 = vrot.lane.b32.xlu0 %v1989, 32
        %v2184 = vpop.permute.xlu0 %2183
        %2185 = vrot.lane.b32.xlu0 %v1994, 32
        %v2186 = vpop.permute.xlu0 %2185
        %2187 = vrot.lane.b32.xlu0 %v1997, 32
        %v2188 = vpop.permute.xlu0 %2187
        %2189 = vrot.lane.b32.xlu0 %v2002, 32
        %v2190 = vpop.permute.xlu0 %2189
        %2191 = vrot.lane.b32.xlu0 %v2005, 32
        %v2192 = vpop.permute.xlu0 %2191
        %2193 = vrot.lane.b32.xlu0 %v2010, 32
        %v2194 = vpop.permute.xlu0 %2193
        %2195 = vrot.lane.b32.xlu0 %v2013, 32
        %v2196 = vpop.permute.xlu0 %2195
        %2197 = vrot.lane.b32.xlu0 %v2018, 32
        %v2198 = vpop.permute.xlu0 %2197
        %2199 = vrot.lane.b32.xlu0 %v2021, 32
        %v2200 = vpop.permute.xlu0 %2199
        %2201 = vrot.lane.b32.xlu0 %v2026, 32
        %v2202 = vpop.permute.xlu0 %2201
        %2203 = vrot.lane.b32.xlu0 %v2029, 32
        %v2204 = vpop.permute.xlu0 %2203
        %2205 = vrot.lane.b32.xlu0 %v2034, 32
        %v2206 = vpop.permute.xlu0 %2205
        %2207 = vrot.lane.b32.xlu0 %v2037, 32
        %v2208 = vpop.permute.xlu0 %2207
        %2241 = vrot.lane.b32.xlu0 %v2099, 64
        %v2242 = vpop.permute.xlu0 %2241
        %2243 = vrot.lane.b32.xlu0 %v2102, 64
        %v2244 = vpop.permute.xlu0 %2243
        %2245 = vrot.lane.b32.xlu0 %v2107, 64
        %v2246 = vpop.permute.xlu0 %2245
        %2247 = vrot.lane.b32.xlu0 %v2110, 64
        %v2248 = vpop.permute.xlu0 %2247
        %2249 = vrot.lane.b32.xlu0 %v2115, 64
        %v2250 = vpop.permute.xlu0 %2249
        %2251 = vrot.lane.b32.xlu0 %v2118, 64
        %v2252 = vpop.permute.xlu0 %2251
        %2253 = vrot.lane.b32.xlu0 %v2123, 64
        %v2254 = vpop.permute.xlu0 %2253
        %2255 = vrot.lane.b32.xlu0 %v2126, 64
        %v2256 = vpop.permute.xlu0 %2255
        %2257 = vrot.lane.b32.xlu0 %v2131, 64
        %v2258 = vpop.permute.xlu0 %2257
        %2259 = vrot.lane.b32.xlu0 %v2134, 64
        %v2260 = vpop.permute.xlu0 %2259
        %2261 = vrot.lane.b32.xlu0 %v2139, 64
        %v2262 = vpop.permute.xlu0 %2261
        %2263 = vrot.lane.b32.xlu0 %v2142, 64
        %v2264 = vpop.permute.xlu0 %2263
        %2265 = vrot.lane.b32.xlu0 %v2147, 64
        %v2266 = vpop.permute.xlu0 %2265
        %2267 = vrot.lane.b32.xlu0 %v2150, 64
        %v2268 = vpop.permute.xlu0 %2267
        %2269 = vrot.lane.b32.xlu0 %v2155, 64
        %v2270 = vpop.permute.xlu0 %2269
        %2271 = vrot.lane.b32.xlu0 %v2158, 64
        %v2272 = vpop.permute.xlu0 %2271
        %v2289 = vsel %vm587, %v1849, %v2178
        %v2290 = vsel %vm587, %v1852, %v2180
        %v2291 = vsel %vm587, %v1857, %v2182
        %v2292 = vsel %vm587, %v1860, %v2184
        %v2293 = vsel %vm587, %v1865, %v2186
        %v2294 = vsel %vm587, %v1868, %v2188
        %v2295 = vsel %vm587, %v1873, %v2190
        %v2296 = vsel %vm587, %v1876, %v2192
        %v2297 = vsel %vm587, %v1881, %v2194
        %v2298 = vsel %vm587, %v1884, %v2196
        %v2299 = vsel %vm587, %v1889, %v2198
        %v2300 = vsel %vm587, %v1892, %v2200
        %v2301 = vsel %vm587, %v1897, %v2202
        %v2302 = vsel %vm587, %v1900, %v2204
        %v2303 = vsel %vm587, %v1905, %v2206
        %v2304 = vsel %vm587, %v1908, %v2208
        %v2305 = vsel %vm1402, %v2289, %v2242
        %v2306 = vsel %vm1402, %v2290, %v2244
        %v2307 = vsel %vm1402, %v2291, %v2246
        %v2308 = vsel %vm1402, %v2292, %v2248
        %v2309 = vsel %vm1402, %v2293, %v2250
        %v2310 = vsel %vm1402, %v2294, %v2252
        %v2311 = vsel %vm1402, %v2295, %v2254
        %v2312 = vsel %vm1402, %v2296, %v2256
        %v2313 = vsel %vm1402, %v2297, %v2258
        %v2314 = vsel %vm1402, %v2298, %v2260
        %v2315 = vsel %vm1402, %v2299, %v2262
        %v2316 = vsel %vm1402, %v2300, %v2264
        %v2317 = vsel %vm1402, %v2301, %v2266
        %v2318 = vsel %vm1402, %v2302, %v2268
        %v2319 = vsel %vm1402, %v2303, %v2270
        %v2320 = vsel %vm1402, %v2304, %v2272
        %v2321 = vtanh.pop %v2305
        %v2322 = vtanh.pop %v2306
        %v2323 = vtanh.pop %v2307
        %v2324 = vtanh.pop %v2308
        %v2325 = vtanh.pop %v2309
        %v2326 = vtanh.pop %v2310
        %v2327 = vtanh.pop %v2311
        %v2328 = vtanh.pop %v2312
        %v2329 = vtanh.pop %v2313
        %v2330 = vtanh.pop %v2314
        %v2331 = vtanh.pop %v2315
        %v2332 = vtanh.pop %v2316
        %v2333 = vtanh.pop %v2317
        %v2334 = vtanh.pop %v2318
        %v2335 = vtanh.pop %v2319
        %v2336 = vtanh.pop %v2320
        %v2337 = vpack.c.bf16 %v2322, %v2321
        %v2338 = vpack.c.bf16 %v2324, %v2323
        %v2339 = vpack.c.bf16 %v2326, %v2325
        %v2340 = vpack.c.bf16 %v2328, %v2327
        %v2341 = vpack.c.bf16 %v2330, %v2329
        %v2342 = vpack.c.bf16 %v2332, %v2331
        %v2343 = vpack.c.bf16 %v2334, %v2333
        %v2344 = vpack.c.bf16 %v2336, %v2335
        %s2345 = scalar_lea.vmem %s6, 48
        %v2346 = vld [vmem:[%s2345] sm:$0xf]
        %v2347 = vld [vmem:[%s2345 + $0x4] sm:$0xf]
        %v2348 = vld [vmem:[%s2345 + $0x8] sm:$0xf]
        %v2349 = vld [vmem:[%s2345 + $0xc] sm:$0xf]
        %v2350 = vld [vmem:[%s2345 + $0x10] sm:$0xf]
        %v2351 = vld [vmem:[%s2345 + $0x14] sm:$0xf]
        %v2352 = vld [vmem:[%s2345 + $0x18] sm:$0xf]
        %v2353 = vld [vmem:[%s2345 + $0x1c] sm:$0xf]
        %v2354 = vld [vmem:[%s2345 + $0x20] sm:$0xf]
        %v2355 = vld [vmem:[%s2345 + $0x24] sm:$0xf]
        %v2356 = vld [vmem:[%s2345 + $0x28] sm:$0xf]
        %v2357 = vld [vmem:[%s2345 + $0x2c] sm:$0xf]
        %s2358 = scalar_lea.vmem %s7, 1
        %v2359 = vld [vmem:[%s2358] sm:$0x1]
        %v2361 = vlaneseq
        %v2362 = vshrl.u32 %v2361, 7
        %v2363 = vsub.s32 0, %v2362
        %v2364 = vrot.slane %v2359, %v2363
        %v2378 = vunpack.c.l.b16 %v2346
        %v2379 = vunpack.c.l.b16 %v2347
        %v2380 = vunpack.c.l.b16 %v2348
        %v2381 = vunpack.c.l.b16 %v2349
        %v2382 = vunpack.c.l.b16 %v2350
        %v2383 = vunpack.c.l.b16 %v2351
        %v2384 = vunpack.c.l.b16 %v2352
        %v2385 = vunpack.c.l.b16 %v2353
        %v2386 = vunpack.c.l.b16 %v2354
        %v2387 = vunpack.c.l.b16 %v2355
        %v2388 = vunpack.c.l.b16 %v2356
        %v2389 = vunpack.c.l.b16 %v2357
        %v2390 = vpack.c.b16 %v2379, %v2378
        %v2391 = vpack.c.b16 %v2381, %v2380
        %v2392 = vpack.c.b16 %v2383, %v2382
        %v2393 = vpack.c.b16 %v2385, %v2384
        %v2394 = vpack.c.b16 %v2387, %v2386
        %v2395 = vpack.c.b16 %v2389, %v2388
        %v2403 = vsel %vm1498, %v2337, 0
        %v2406 = vsel %vm1498, %v2338, 0
        %v2409 = vsel %vm1498, %v2339, 0
        %v2412 = vsel %vm1498, %v2340, 0
        %v2415 = vsel %vm1498, %v2341, 0
        %v2418 = vsel %vm1498, %v2342, 0
        %v2421 = vsel %vm1498, %v2343, 0
        %v2424 = vsel %vm1498, %v2344, 0
        %2426 = vmatprep.subr.bf16.mxu0 0
        %2427 = vmatpush1.bf16.msra.mxu0 0
        %2428 = vmatprep.subr.bf16.mxu0 0
        %2429 = vmatpush1.bf16.msra.mxu0 0
        %2430 = vmatprep.subr.bf16.mxu0 0
        %2431 = vmatpush1.bf16.msra.mxu0 %v2395
        %2432 = vmatprep.subr.bf16.mxu0 0
        %2433 = vmatpush1.bf16.msra.mxu0 %v2394
        %2434 = vmatprep.subr.bf16.mxu0 0
        %2435 = vmatpush1.bf16.msra.mxu0 %v2393
        %2436 = vmatprep.subr.bf16.mxu0 0
        %2437 = vmatpush1.bf16.msra.mxu0 %v2392
        %2438 = vmatprep.subr.bf16.mxu0 0
        %2439 = vmatpush1.bf16.msra.mxu0 %v2391
        %2440 = vmatprep.subr.bf16.mxu0 0
        %2441 = vmatpush1.bf16.msra.mxu0 %v2390
        %2442 = vmatprep.subr.bf16.mxu0 0
        %2443 = vmatpush2.bf16.msra.mxu0 0
        %2444 = vmatprep.subr.bf16.mxu0 0
        %2445 = vmatpush2.bf16.msra.mxu0 0
        %2446 = vmatprep.subr.bf16.mxu0 0
        %2447 = vmatpush2.bf16.msra.mxu0 0
        %2448 = vmatprep.subr.bf16.mxu0 0
        %2449 = vmatpush2.bf16.msra.mxu0 0
        %2450 = vmatprep.subr.bf16.mxu0 0
        %2451 = vmatpush2.bf16.msra.mxu0 0
        %2452 = vmatprep.subr.bf16.mxu0 0
        %2453 = vmatpush2.bf16.msra.mxu0 0
        %2454 = vmatprep.subr.bf16.mxu0 0
        %2455 = vmatpush2.bf16.msra.mxu0 0
        %2456 = vmatprep.subr.bf16.mxu0 0
        %2457 = vmatpush2.bf16.msra.mxu0 0
        %2458 = vmatprep.mubr.bf16.mxu0 0
        %2459 = vmatmul.mubr.bf16.gmra.mxu0 %v2403
        %v2460 = vpop.f32.mrf.mxu0
        %v2461 = vadd.f32 %v2364, %v2460
        %v2462 = vpop.f32.mrf.mxu0
        %v2463 = vpop.f32.mrf.mxu0
        %v2464 = vadd.f32 %v2364, %v2463
        %v2465 = vpop.f32.mrf.mxu0
        %2466 = vmatprep.mubr.bf16.mxu0 0
        %2467 = vmatmul.mubr.bf16.gmra.mxu0 %v2406
        %v2468 = vpop.f32.mrf.mxu0
        %v2469 = vadd.f32 %v2364, %v2468
        %v2470 = vpop.f32.mrf.mxu0
        %v2471 = vpop.f32.mrf.mxu0
        %v2472 = vadd.f32 %v2364, %v2471
        %v2473 = vpop.f32.mrf.mxu0
        %2474 = vmatprep.mubr.bf16.mxu0 0
        %2475 = vmatmul.mubr.bf16.gmra.mxu0 %v2409
        %v2476 = vpop.f32.mrf.mxu0
        %v2477 = vadd.f32 %v2364, %v2476
        %v2478 = vpop.f32.mrf.mxu0
        %v2479 = vpop.f32.mrf.mxu0
        %v2480 = vadd.f32 %v2364, %v2479
        %v2481 = vpop.f32.mrf.mxu0
        %2482 = vmatprep.mubr.bf16.mxu0 0
        %2483 = vmatmul.mubr.bf16.gmra.mxu0 %v2412
        %v2484 = vpop.f32.mrf.mxu0
        %v2485 = vadd.f32 %v2364, %v2484
        %v2486 = vpop.f32.mrf.mxu0
        %v2487 = vpop.f32.mrf.mxu0
        %v2488 = vadd.f32 %v2364, %v2487
        %v2489 = vpop.f32.mrf.mxu0
        %2490 = vmatprep.mubr.bf16.mxu0 0
        %2491 = vmatmul.mubr.bf16.gmra.mxu0 %v2415
        %v2492 = vpop.f32.mrf.mxu0
        %v2493 = vadd.f32 %v2364, %v2492
        %v2494 = vpop.f32.mrf.mxu0
        %v2495 = vpop.f32.mrf.mxu0
        %v2496 = vadd.f32 %v2364, %v2495
        %v2497 = vpop.f32.mrf.mxu0
        %2498 = vmatprep.mubr.bf16.mxu0 0
        %2499 = vmatmul.mubr.bf16.gmra.mxu0 %v2418
        %v2500 = vpop.f32.mrf.mxu0
        %v2501 = vadd.f32 %v2364, %v2500
        %v2502 = vpop.f32.mrf.mxu0
        %v2503 = vpop.f32.mrf.mxu0
        %v2504 = vadd.f32 %v2364, %v2503
        %v2505 = vpop.f32.mrf.mxu0
        %2506 = vmatprep.mubr.bf16.mxu0 0
        %2507 = vmatmul.mubr.bf16.gmra.mxu0 %v2421
        %v2508 = vpop.f32.mrf.mxu0
        %v2509 = vadd.f32 %v2364, %v2508
        %v2510 = vpop.f32.mrf.mxu0
        %v2511 = vpop.f32.mrf.mxu0
        %v2512 = vadd.f32 %v2364, %v2511
        %v2513 = vpop.f32.mrf.mxu0
        %2514 = vmatprep.mubr.bf16.mxu0 0
        %2515 = vmatmul.mubr.bf16.gmra.mxu0 %v2424
        %v2516 = vpop.f32.mrf.mxu0
        %v2517 = vadd.f32 %v2364, %v2516
        %v2518 = vpop.f32.mrf.mxu0
        %v2519 = vpop.f32.mrf.mxu0
        %v2520 = vadd.f32 %v2364, %v2519
        %v2521 = vpop.f32.mrf.mxu0
        %2522 = vdwg.mxu0
        %v2523 = vadd.f32 %v2461, %v1636
        %v2524 = vadd.f32 %v2464, %v1637
        %v2525 = vadd.f32 %v2469, %v1638
        %v2526 = vadd.f32 %v2472, %v1639
        %v2527 = vadd.f32 %v2477, %v1640
        %v2528 = vadd.f32 %v2480, %v1641
        %v2529 = vadd.f32 %v2485, %v1642
        %v2530 = vadd.f32 %v2488, %v1643
        %v2531 = vadd.f32 %v2493, %v1644
        %v2532 = vadd.f32 %v2496, %v1645
        %v2533 = vadd.f32 %v2501, %v1646
        %v2534 = vadd.f32 %v2504, %v1647
        %v2535 = vadd.f32 %v2509, %v1648
        %v2536 = vadd.f32 %v2512, %v1649
        %v2537 = vadd.f32 %v2517, %v1650
        %v2538 = vadd.f32 %v2520, %v1651
        %v2539 = vtanh.pop %v2523
        %v2540 = vtanh.pop %v2524
        %v2541 = vtanh.pop %v2525
        %v2542 = vtanh.pop %v2526
        %v2543 = vtanh.pop %v2527
        %v2544 = vtanh.pop %v2528
        %v2545 = vtanh.pop %v2529
        %v2546 = vtanh.pop %v2530
        %v2547 = vtanh.pop %v2531
        %v2548 = vtanh.pop %v2532
        %v2549 = vtanh.pop %v2533
        %v2550 = vtanh.pop %v2534
        %v2551 = vtanh.pop %v2535
        %v2552 = vtanh.pop %v2536
        %v2553 = vtanh.pop %v2537
        %v2554 = vtanh.pop %v2538
        %v2555 = vpack.c.bf16 %v2540, %v2539
        %v2556 = vpack.c.bf16 %v2542, %v2541
        %v2557 = vpack.c.bf16 %v2544, %v2543
        %v2558 = vpack.c.bf16 %v2546, %v2545
        %v2559 = vpack.c.bf16 %v2548, %v2547
        %v2560 = vpack.c.bf16 %v2550, %v2549
        %v2561 = vpack.c.bf16 %v2552, %v2551
        %v2562 = vpack.c.bf16 %v2554, %v2553
        %s2563 = scalar_lea.vmem %s4, 32
        %v2564 = vld [vmem:[%s2563] sm:$0xf]
        %v2565 = vld [vmem:[%s2563 + $0x4] sm:$0xf]
        %v2566 = vld [vmem:[%s2563 + $0x8] sm:$0xf]
        %v2567 = vld [vmem:[%s2563 + $0xc] sm:$0xf]
        %s2568 = scalar_lea.vmem %s5, 2
        %v2569 = vld [vmem:[%s2568] sm:$0x1]
        %v2571 = vlaneseq
        %v2572 = vshrl.u32 %v2571, 7
        %v2573 = vsub.s32 0, %v2572
        %v2574 = vrot.slane %v2569, %v2573
        %v2580 = vunpack.c.l.b16 %v2564
        %v2581 = vunpack.c.l.b16 %v2565
        %v2582 = vunpack.c.l.b16 %v2566
        %v2583 = vunpack.c.l.b16 %v2567
        %v2584 = vpack.c.b16 %v2581, %v2580
        %v2585 = vpack.c.b16 %v2583, %v2582
        %v2589 = vsel %vm587, %v2555, 0
        %v2592 = vsel %vm587, %v2556, 0
        %v2595 = vsel %vm587, %v2557, 0
        %v2598 = vsel %vm587, %v2558, 0
        %v2601 = vsel %vm587, %v2559, 0
        %v2604 = vsel %vm587, %v2560, 0
        %v2607 = vsel %vm587, %v2561, 0
        %v2610 = vsel %vm587, %v2562, 0
        %2612 = vmatprep.subr.bf16.mxu0 0
        %2613 = vmatpush1.bf16.msra.mxu0 0
        %2614 = vmatprep.subr.bf16.mxu0 0
        %2615 = vmatpush1.bf16.msra.mxu0 0
        %2616 = vmatprep.subr.bf16.mxu0 0
        %2617 = vmatpush1.bf16.msra.mxu0 0
        %2618 = vmatprep.subr.bf16.mxu0 0
        %2619 = vmatpush1.bf16.msra.mxu0 0
        %2620 = vmatprep.subr.bf16.mxu0 0
        %2621 = vmatpush1.bf16.msra.mxu0 0
        %2622 = vmatprep.subr.bf16.mxu0 0
        %2623 = vmatpush1.bf16.msra.mxu0 0
        %2624 = vmatprep.subr.bf16.mxu0 0
        %2625 = vmatpush1.bf16.msra.mxu0 %v2585
        %2626 = vmatprep.subr.bf16.mxu0 0
        %2627 = vmatpush1.bf16.msra.mxu0 %v2584
        %2628 = vmatprep.subr.bf16.mxu0 0
        %2629 = vmatpush2.bf16.msra.mxu0 0
        %2630 = vmatprep.subr.bf16.mxu0 0
        %2631 = vmatpush2.bf16.msra.mxu0 0
        %2632 = vmatprep.subr.bf16.mxu0 0
        %2633 = vmatpush2.bf16.msra.mxu0 0
        %2634 = vmatprep.subr.bf16.mxu0 0
        %2635 = vmatpush2.bf16.msra.mxu0 0
        %2636 = vmatprep.subr.bf16.mxu0 0
        %2637 = vmatpush2.bf16.msra.mxu0 0
        %2638 = vmatprep.subr.bf16.mxu0 0
        %2639 = vmatpush2.bf16.msra.mxu0 0
        %2640 = vmatprep.subr.bf16.mxu0 0
        %2641 = vmatpush2.bf16.msra.mxu0 0
        %2642 = vmatprep.subr.bf16.mxu0 0
        %2643 = vmatpush2.bf16.msra.mxu0 0
        %2644 = vmatprep.mubr.bf16.mxu0 0
        %2645 = vmatmul.mubr.bf16.gmra.mxu0 %v2589
        %v2646 = vpop.f32.mrf.mxu0
        %v2647 = vadd.f32 %v2574, %v2646
        %v2648 = vpop.f32.mrf.mxu0
        %v2649 = vpop.f32.mrf.mxu0
        %v2650 = vadd.f32 %v2574, %v2649
        %v2651 = vpop.f32.mrf.mxu0
        %2652 = vmatprep.mubr.bf16.mxu0 0
        %2653 = vmatmul.mubr.bf16.gmra.mxu0 %v2592
        %v2654 = vpop.f32.mrf.mxu0
        %v2655 = vadd.f32 %v2574, %v2654
        %v2656 = vpop.f32.mrf.mxu0
        %v2657 = vpop.f32.mrf.mxu0
        %v2658 = vadd.f32 %v2574, %v2657
        %v2659 = vpop.f32.mrf.mxu0
        %2660 = vmatprep.mubr.bf16.mxu0 0
        %2661 = vmatmul.mubr.bf16.gmra.mxu0 %v2595
        %v2662 = vpop.f32.mrf.mxu0
        %v2663 = vadd.f32 %v2574, %v2662
        %v2664 = vpop.f32.mrf.mxu0
        %v2665 = vpop.f32.mrf.mxu0
        %v2666 = vadd.f32 %v2574, %v2665
        %v2667 = vpop.f32.mrf.mxu0
        %2668 = vmatprep.mubr.bf16.mxu0 0
        %2669 = vmatmul.mubr.bf16.gmra.mxu0 %v2598
        %v2670 = vpop.f32.mrf.mxu0
        %v2671 = vadd.f32 %v2574, %v2670
        %v2672 = vpop.f32.mrf.mxu0
        %v2673 = vpop.f32.mrf.mxu0
        %v2674 = vadd.f32 %v2574, %v2673
        %v2675 = vpop.f32.mrf.mxu0
        %2676 = vmatprep.mubr.bf16.mxu0 0
        %2677 = vmatmul.mubr.bf16.gmra.mxu0 %v2601
        %v2678 = vpop.f32.mrf.mxu0
        %v2679 = vadd.f32 %v2574, %v2678
        %v2680 = vpop.f32.mrf.mxu0
        %v2681 = vpop.f32.mrf.mxu0
        %v2682 = vadd.f32 %v2574, %v2681
        %v2683 = vpop.f32.mrf.mxu0
        %2684 = vmatprep.mubr.bf16.mxu0 0
        %2685 = vmatmul.mubr.bf16.gmra.mxu0 %v2604
        %v2686 = vpop.f32.mrf.mxu0
        %v2687 = vadd.f32 %v2574, %v2686
        %v2688 = vpop.f32.mrf.mxu0
        %v2689 = vpop.f32.mrf.mxu0
        %v2690 = vadd.f32 %v2574, %v2689
        %v2691 = vpop.f32.mrf.mxu0
        %2692 = vmatprep.mubr.bf16.mxu0 0
        %2693 = vmatmul.mubr.bf16.gmra.mxu0 %v2607
        %v2694 = vpop.f32.mrf.mxu0
        %v2695 = vadd.f32 %v2574, %v2694
        %v2696 = vpop.f32.mrf.mxu0
        %v2697 = vpop.f32.mrf.mxu0
        %v2698 = vadd.f32 %v2574, %v2697
        %v2699 = vpop.f32.mrf.mxu0
        %2700 = vmatprep.mubr.bf16.mxu0 0
        %2701 = vmatmul.mubr.bf16.gmra.mxu0 %v2610
        %v2702 = vpop.f32.mrf.mxu0
        %v2703 = vadd.f32 %v2574, %v2702
        %v2704 = vpop.f32.mrf.mxu0
        %v2705 = vpop.f32.mrf.mxu0
        %v2706 = vadd.f32 %v2574, %v2705
        %v2707 = vpop.f32.mrf.mxu0
        %2708 = vdwg.mxu0
        %v2709 = vpack.c.bf16 %v2650, %v2647
        %v2710 = vpack.c.bf16 %v2658, %v2655
        %v2711 = vpack.c.bf16 %v2666, %v2663
        %v2712 = vpack.c.bf16 %v2674, %v2671
        %v2713 = vpack.c.bf16 %v2682, %v2679
        %v2714 = vpack.c.bf16 %v2690, %v2687
        %v2715 = vpack.c.bf16 %v2698, %v2695
        %v2716 = vpack.c.bf16 %v2706, %v2703
        %2717 = vmatprep.subr.bf16.mxu0 0
        %2718 = vmatpush1.bf16.msra.mxu0 %v2716
        %2719 = vmatprep.subr.bf16.mxu0 0
        %2720 = vmatpush1.bf16.msra.mxu0 %v2715
        %2721 = vmatprep.subr.bf16.mxu0 0
        %2722 = vmatpush1.bf16.msra.mxu0 %v2714
        %2723 = vmatprep.subr.bf16.mxu0 0
        %2724 = vmatpush1.bf16.msra.mxu0 %v2713
        %2725 = vmatprep.subr.bf16.mxu0 0
        %2726 = vmatpush1.bf16.msra.mxu0 %v2712
        %2727 = vmatprep.subr.bf16.mxu0 0
        %2728 = vmatpush1.bf16.msra.mxu0 %v2711
        %2729 = vmatprep.subr.bf16.mxu0 0
        %2730 = vmatpush1.bf16.msra.mxu0 %v2710
        %2731 = vmatprep.subr.bf16.mxu0 0
        %2732 = vmatpush1.bf16.msra.mxu0 %v2709
        %2733 = vmatprep.subr.bf16.mxu0 0
        %2734 = vmatpush2.bf16.msra.mxu0 0
        %2735 = vmatprep.subr.bf16.mxu0 0
        %2736 = vmatpush2.bf16.msra.mxu0 0
        %2737 = vmatprep.subr.bf16.mxu0 0
        %2738 = vmatpush2.bf16.msra.mxu0 0
        %2739 = vmatprep.subr.bf16.mxu0 0
        %2740 = vmatpush2.bf16.msra.mxu0 0
        %2741 = vmatprep.subr.bf16.mxu0 0
        %2742 = vmatpush2.bf16.msra.mxu0 0
        %2743 = vmatprep.subr.bf16.mxu0 0
        %2744 = vmatpush2.bf16.msra.mxu0 0
        %2745 = vmatprep.subr.bf16.mxu0 0
        %2746 = vmatpush2.bf16.msra.mxu0 0
        %2747 = vmatprep.subr.bf16.mxu0 0
        %2748 = vmatpush2.bf16.msra.mxu0 0
        %2749 = vmatprep.mubr.bf16.mxu0 0
        %2750 = vmatmul.mubr.bf16.gmra.mxu0 %v765
        %v2751 = vpop.f32.mrf.mxu0
        %v2752 = vadd.f32 0.0, %v2751
        %v2753 = vpop.f32.mrf.mxu0
        %v2754 = vpop.f32.mrf.mxu0
        %v2755 = vadd.f32 0.0, %v2754
        %v2756 = vpop.f32.mrf.mxu0
        %2757 = vmatprep.mubr.bf16.mxu0 0
        %2758 = vmatmul.mubr.bf16.gmra.mxu0 %v766
        %v2759 = vpop.f32.mrf.mxu0
        %v2760 = vadd.f32 0.0, %v2759
        %v2761 = vpop.f32.mrf.mxu0
        %v2762 = vpop.f32.mrf.mxu0
        %v2763 = vadd.f32 0.0, %v2762
        %v2764 = vpop.f32.mrf.mxu0
        %2765 = vmatprep.mubr.bf16.mxu0 0
        %2766 = vmatmul.mubr.bf16.gmra.mxu0 %v767
        %v2767 = vpop.f32.mrf.mxu0
        %v2768 = vadd.f32 0.0, %v2767
        %v2769 = vpop.f32.mrf.mxu0
        %v2770 = vpop.f32.mrf.mxu0
        %v2771 = vadd.f32 0.0, %v2770
        %v2772 = vpop.f32.mrf.mxu0
        %2773 = vmatprep.mubr.bf16.mxu0 0
        %2774 = vmatmul.mubr.bf16.gmra.mxu0 %v768
        %v2775 = vpop.f32.mrf.mxu0
        %v2776 = vadd.f32 0.0, %v2775
        %v2777 = vpop.f32.mrf.mxu0
        %v2778 = vpop.f32.mrf.mxu0
        %v2779 = vadd.f32 0.0, %v2778
        %v2780 = vpop.f32.mrf.mxu0
        %2781 = vmatprep.mubr.bf16.mxu0 0
        %2782 = vmatmul.mubr.bf16.gmra.mxu0 %v769
        %v2783 = vpop.f32.mrf.mxu0
        %v2784 = vadd.f32 0.0, %v2783
        %v2785 = vpop.f32.mrf.mxu0
        %v2786 = vpop.f32.mrf.mxu0
        %v2787 = vadd.f32 0.0, %v2786
        %v2788 = vpop.f32.mrf.mxu0
        %2789 = vmatprep.mubr.bf16.mxu0 0
        %2790 = vmatmul.mubr.bf16.gmra.mxu0 %v770
        %v2791 = vpop.f32.mrf.mxu0
        %v2792 = vadd.f32 0.0, %v2791
        %v2793 = vpop.f32.mrf.mxu0
        %v2794 = vpop.f32.mrf.mxu0
        %v2795 = vadd.f32 0.0, %v2794
        %v2796 = vpop.f32.mrf.mxu0
        %2797 = vmatprep.mubr.bf16.mxu0 0
        %2798 = vmatmul.mubr.bf16.gmra.mxu0 %v771
        %v2799 = vpop.f32.mrf.mxu0
        %v2800 = vadd.f32 0.0, %v2799
        %v2801 = vpop.f32.mrf.mxu0
        %v2802 = vpop.f32.mrf.mxu0
        %v2803 = vadd.f32 0.0, %v2802
        %v2804 = vpop.f32.mrf.mxu0
        %2805 = vmatprep.mubr.bf16.mxu0 0
        %2806 = vmatmul.mubr.bf16.gmra.mxu0 %v772
        %v2807 = vpop.f32.mrf.mxu0
        %v2808 = vadd.f32 0.0, %v2807
        %v2809 = vpop.f32.mrf.mxu0
        %v2810 = vpop.f32.mrf.mxu0
        %v2811 = vadd.f32 0.0, %v2810
        %v2812 = vpop.f32.mrf.mxu0
        %2813 = vdwg.mxu0
        %2822 = vrot.lane.b32.xlu0 %v2709, 96
        %v2823 = vpop.permute.xlu0 %2822
        %2824 = vrot.lane.b32.xlu0 %v2710, 96
        %v2825 = vpop.permute.xlu0 %2824
        %2826 = vrot.lane.b32.xlu0 %v2711, 96
        %v2827 = vpop.permute.xlu0 %2826
        %2828 = vrot.lane.b32.xlu0 %v2712, 96
        %v2829 = vpop.permute.xlu0 %2828
        %2830 = vrot.lane.b32.xlu0 %v2713, 96
        %v2831 = vpop.permute.xlu0 %2830
        %2832 = vrot.lane.b32.xlu0 %v2714, 96
        %v2833 = vpop.permute.xlu0 %2832
        %2834 = vrot.lane.b32.xlu0 %v2715, 96
        %v2835 = vpop.permute.xlu0 %2834
        %2836 = vrot.lane.b32.xlu0 %v2716, 96
        %v2837 = vpop.permute.xlu0 %2836
        %2846 = vmatprep.subr.bf16.mxu0 0
        %2847 = vmatpush1.bf16.msra.mxu0 %v2837
        %2848 = vmatprep.subr.bf16.mxu0 0
        %2849 = vmatpush1.bf16.msra.mxu0 %v2835
        %2850 = vmatprep.subr.bf16.mxu0 0
        %2851 = vmatpush1.bf16.msra.mxu0 %v2833
        %2852 = vmatprep.subr.bf16.mxu0 0
        %2853 = vmatpush1.bf16.msra.mxu0 %v2831
        %2854 = vmatprep.subr.bf16.mxu0 0
        %2855 = vmatpush1.bf16.msra.mxu0 %v2829
        %2856 = vmatprep.subr.bf16.mxu0 0
        %2857 = vmatpush1.bf16.msra.mxu0 %v2827
        %2858 = vmatprep.subr.bf16.mxu0 0
        %2859 = vmatpush1.bf16.msra.mxu0 %v2825
        %2860 = vmatprep.subr.bf16.mxu0 0
        %2861 = vmatpush1.bf16.msra.mxu0 %v2823
        %2862 = vmatprep.subr.bf16.mxu0 0
        %2863 = vmatpush2.bf16.msra.mxu0 0
        %2864 = vmatprep.subr.bf16.mxu0 0
        %2865 = vmatpush2.bf16.msra.mxu0 0
        %2866 = vmatprep.subr.bf16.mxu0 0
        %2867 = vmatpush2.bf16.msra.mxu0 0
        %2868 = vmatprep.subr.bf16.mxu0 0
        %2869 = vmatpush2.bf16.msra.mxu0 0
        %2870 = vmatprep.subr.bf16.mxu0 0
        %2871 = vmatpush2.bf16.msra.mxu0 0
        %2872 = vmatprep.subr.bf16.mxu0 0
        %2873 = vmatpush2.bf16.msra.mxu0 0
        %2874 = vmatprep.subr.bf16.mxu0 0
        %2875 = vmatpush2.bf16.msra.mxu0 0
        %2876 = vmatprep.subr.bf16.mxu0 0
        %2877 = vmatpush2.bf16.msra.mxu0 0
        %2878 = vmatprep.mubr.bf16.mxu0 0
        %2879 = vmatmul.mubr.bf16.gmra.mxu0 %v927
        %v2880 = vpop.f32.mrf.mxu0
        %v2881 = vadd.f32 0.0, %v2880
        %v2882 = vpop.f32.mrf.mxu0
        %v2883 = vpop.f32.mrf.mxu0
        %v2884 = vadd.f32 0.0, %v2883
        %v2885 = vpop.f32.mrf.mxu0
        %2886 = vmatprep.mubr.bf16.mxu0 0
        %2887 = vmatmul.mubr.bf16.gmra.mxu0 %v928
        %v2888 = vpop.f32.mrf.mxu0
        %v2889 = vadd.f32 0.0, %v2888
        %v2890 = vpop.f32.mrf.mxu0
        %v2891 = vpop.f32.mrf.mxu0
        %v2892 = vadd.f32 0.0, %v2891
        %v2893 = vpop.f32.mrf.mxu0
        %2894 = vmatprep.mubr.bf16.mxu0 0
        %2895 = vmatmul.mubr.bf16.gmra.mxu0 %v929
        %v2896 = vpop.f32.mrf.mxu0
        %v2897 = vadd.f32 0.0, %v2896
        %v2898 = vpop.f32.mrf.mxu0
        %v2899 = vpop.f32.mrf.mxu0
        %v2900 = vadd.f32 0.0, %v2899
        %v2901 = vpop.f32.mrf.mxu0
        %2902 = vmatprep.mubr.bf16.mxu0 0
        %2903 = vmatmul.mubr.bf16.gmra.mxu0 %v930
        %v2904 = vpop.f32.mrf.mxu0
        %v2905 = vadd.f32 0.0, %v2904
        %v2906 = vpop.f32.mrf.mxu0
        %v2907 = vpop.f32.mrf.mxu0
        %v2908 = vadd.f32 0.0, %v2907
        %v2909 = vpop.f32.mrf.mxu0
        %2910 = vmatprep.mubr.bf16.mxu0 0
        %2911 = vmatmul.mubr.bf16.gmra.mxu0 %v931
        %v2912 = vpop.f32.mrf.mxu0
        %v2913 = vadd.f32 0.0, %v2912
        %v2914 = vpop.f32.mrf.mxu0
        %v2915 = vpop.f32.mrf.mxu0
        %v2916 = vadd.f32 0.0, %v2915
        %v2917 = vpop.f32.mrf.mxu0
        %2918 = vmatprep.mubr.bf16.mxu0 0
        %2919 = vmatmul.mubr.bf16.gmra.mxu0 %v932
        %v2920 = vpop.f32.mrf.mxu0
        %v2921 = vadd.f32 0.0, %v2920
        %v2922 = vpop.f32.mrf.mxu0
        %v2923 = vpop.f32.mrf.mxu0
        %v2924 = vadd.f32 0.0, %v2923
        %v2925 = vpop.f32.mrf.mxu0
        %2926 = vmatprep.mubr.bf16.mxu0 0
        %2927 = vmatmul.mubr.bf16.gmra.mxu0 %v933
        %v2928 = vpop.f32.mrf.mxu0
        %v2929 = vadd.f32 0.0, %v2928
        %v2930 = vpop.f32.mrf.mxu0
        %v2931 = vpop.f32.mrf.mxu0
        %v2932 = vadd.f32 0.0, %v2931
        %v2933 = vpop.f32.mrf.mxu0
        %2934 = vmatprep.mubr.bf16.mxu0 0
        %2935 = vmatmul.mubr.bf16.gmra.mxu0 %v934
        %v2936 = vpop.f32.mrf.mxu0
        %v2937 = vadd.f32 0.0, %v2936
        %v2938 = vpop.f32.mrf.mxu0
        %v2939 = vpop.f32.mrf.mxu0
        %v2940 = vadd.f32 0.0, %v2939
        %v2941 = vpop.f32.mrf.mxu0
        %2942 = vdwg.mxu0
        %2943 = vrot.lane.b32.xlu0 %v2709, 64
        %v2944 = vpop.permute.xlu0 %2943
        %2945 = vrot.lane.b32.xlu0 %v2710, 64
        %v2946 = vpop.permute.xlu0 %2945
        %2947 = vrot.lane.b32.xlu0 %v2711, 64
        %v2948 = vpop.permute.xlu0 %2947
        %2949 = vrot.lane.b32.xlu0 %v2712, 64
        %v2950 = vpop.permute.xlu0 %2949
        %2951 = vrot.lane.b32.xlu0 %v2713, 64
        %v2952 = vpop.permute.xlu0 %2951
        %2953 = vrot.lane.b32.xlu0 %v2714, 64
        %v2954 = vpop.permute.xlu0 %2953
        %2955 = vrot.lane.b32.xlu0 %v2715, 64
        %v2956 = vpop.permute.xlu0 %2955
        %2957 = vrot.lane.b32.xlu0 %v2716, 64
        %v2958 = vpop.permute.xlu0 %2957
        %2967 = vmatprep.subr.bf16.mxu0 0
        %2968 = vmatpush1.bf16.msra.mxu0 %v2958
        %2969 = vmatprep.subr.bf16.mxu0 0
        %2970 = vmatpush1.bf16.msra.mxu0 %v2956
        %2971 = vmatprep.subr.bf16.mxu0 0
        %2972 = vmatpush1.bf16.msra.mxu0 %v2954
        %2973 = vmatprep.subr.bf16.mxu0 0
        %2974 = vmatpush1.bf16.msra.mxu0 %v2952
        %2975 = vmatprep.subr.bf16.mxu0 0
        %2976 = vmatpush1.bf16.msra.mxu0 %v2950
        %2977 = vmatprep.subr.bf16.mxu0 0
        %2978 = vmatpush1.bf16.msra.mxu0 %v2948
        %2979 = vmatprep.subr.bf16.mxu0 0
        %2980 = vmatpush1.bf16.msra.mxu0 %v2946
        %2981 = vmatprep.subr.bf16.mxu0 0
        %2982 = vmatpush1.bf16.msra.mxu0 %v2944
        %2983 = vmatprep.subr.bf16.mxu0 0
        %2984 = vmatpush2.bf16.msra.mxu0 0
        %2985 = vmatprep.subr.bf16.mxu0 0
        %2986 = vmatpush2.bf16.msra.mxu0 0
        %2987 = vmatprep.subr.bf16.mxu0 0
        %2988 = vmatpush2.bf16.msra.mxu0 0
        %2989 = vmatprep.subr.bf16.mxu0 0
        %2990 = vmatpush2.bf16.msra.mxu0 0
        %2991 = vmatprep.subr.bf16.mxu0 0
        %2992 = vmatpush2.bf16.msra.mxu0 0
        %2993 = vmatprep.subr.bf16.mxu0 0
        %2994 = vmatpush2.bf16.msra.mxu0 0
        %2995 = vmatprep.subr.bf16.mxu0 0
        %2996 = vmatpush2.bf16.msra.mxu0 0
        %2997 = vmatprep.subr.bf16.mxu0 0
        %2998 = vmatpush2.bf16.msra.mxu0 0
        %2999 = vmatprep.mubr.bf16.mxu0 0
        %3000 = vmatmul.mubr.bf16.gmra.mxu0 %v1121
        %v3001 = vpop.f32.mrf.mxu0
        %v3002 = vadd.f32 0.0, %v3001
        %v3003 = vpop.f32.mrf.mxu0
        %v3004 = vpop.f32.mrf.mxu0
        %v3005 = vadd.f32 0.0, %v3004
        %v3006 = vpop.f32.mrf.mxu0
        %3007 = vmatprep.mubr.bf16.mxu0 0
        %3008 = vmatmul.mubr.bf16.gmra.mxu0 %v1122
        %v3009 = vpop.f32.mrf.mxu0
        %v3010 = vadd.f32 0.0, %v3009
        %v3011 = vpop.f32.mrf.mxu0
        %v3012 = vpop.f32.mrf.mxu0
        %v3013 = vadd.f32 0.0, %v3012
        %v3014 = vpop.f32.mrf.mxu0
        %3015 = vmatprep.mubr.bf16.mxu0 0
        %3016 = vmatmul.mubr.bf16.gmra.mxu0 %v1123
        %v3017 = vpop.f32.mrf.mxu0
        %v3018 = vadd.f32 0.0, %v3017
        %v3019 = vpop.f32.mrf.mxu0
        %v3020 = vpop.f32.mrf.mxu0
        %v3021 = vadd.f32 0.0, %v3020
        %v3022 = vpop.f32.mrf.mxu0
        %3023 = vmatprep.mubr.bf16.mxu0 0
        %3024 = vmatmul.mubr.bf16.gmra.mxu0 %v1124
        %v3025 = vpop.f32.mrf.mxu0
        %v3026 = vadd.f32 0.0, %v3025
        %v3027 = vpop.f32.mrf.mxu0
        %v3028 = vpop.f32.mrf.mxu0
        %v3029 = vadd.f32 0.0, %v3028
        %v3030 = vpop.f32.mrf.mxu0
        %3031 = vmatprep.mubr.bf16.mxu0 0
        %3032 = vmatmul.mubr.bf16.gmra.mxu0 %v1125
        %v3033 = vpop.f32.mrf.mxu0
        %v3034 = vadd.f32 0.0, %v3033
        %v3035 = vpop.f32.mrf.mxu0
        %v3036 = vpop.f32.mrf.mxu0
        %v3037 = vadd.f32 0.0, %v3036
        %v3038 = vpop.f32.mrf.mxu0
        %3039 = vmatprep.mubr.bf16.mxu0 0
        %3040 = vmatmul.mubr.bf16.gmra.mxu0 %v1126
        %v3041 = vpop.f32.mrf.mxu0
        %v3042 = vadd.f32 0.0, %v3041
        %v3043 = vpop.f32.mrf.mxu0
        %v3044 = vpop.f32.mrf.mxu0
        %v3045 = vadd.f32 0.0, %v3044
        %v3046 = vpop.f32.mrf.mxu0
        %3047 = vmatprep.mubr.bf16.mxu0 0
        %3048 = vmatmul.mubr.bf16.gmra.mxu0 %v1127
        %v3049 = vpop.f32.mrf.mxu0
        %v3050 = vadd.f32 0.0, %v3049
        %v3051 = vpop.f32.mrf.mxu0
        %v3052 = vpop.f32.mrf.mxu0
        %v3053 = vadd.f32 0.0, %v3052
        %v3054 = vpop.f32.mrf.mxu0
        %3055 = vmatprep.mubr.bf16.mxu0 0
        %3056 = vmatmul.mubr.bf16.gmra.mxu0 %v1128
        %v3057 = vpop.f32.mrf.mxu0
        %v3058 = vadd.f32 0.0, %v3057
        %v3059 = vpop.f32.mrf.mxu0
        %v3060 = vpop.f32.mrf.mxu0
        %v3061 = vadd.f32 0.0, %v3060
        %v3062 = vpop.f32.mrf.mxu0
        %3063 = vdwg.mxu0
        %3080 = vrot.lane.b32.xlu0 %v2881, 32
        %v3081 = vpop.permute.xlu0 %3080
        %3082 = vrot.lane.b32.xlu0 %v2884, 32
        %v3083 = vpop.permute.xlu0 %3082
        %3084 = vrot.lane.b32.xlu0 %v2889, 32
        %v3085 = vpop.permute.xlu0 %3084
        %3086 = vrot.lane.b32.xlu0 %v2892, 32
        %v3087 = vpop.permute.xlu0 %3086
        %3088 = vrot.lane.b32.xlu0 %v2897, 32
        %v3089 = vpop.permute.xlu0 %3088
        %3090 = vrot.lane.b32.xlu0 %v2900, 32
        %v3091 = vpop.permute.xlu0 %3090
        %3092 = vrot.lane.b32.xlu0 %v2905, 32
        %v3093 = vpop.permute.xlu0 %3092
        %3094 = vrot.lane.b32.xlu0 %v2908, 32
        %v3095 = vpop.permute.xlu0 %3094
        %3096 = vrot.lane.b32.xlu0 %v2913, 32
        %v3097 = vpop.permute.xlu0 %3096
        %3098 = vrot.lane.b32.xlu0 %v2916, 32
        %v3099 = vpop.permute.xlu0 %3098
        %3100 = vrot.lane.b32.xlu0 %v2921, 32
        %v3101 = vpop.permute.xlu0 %3100
        %3102 = vrot.lane.b32.xlu0 %v2924, 32
        %v3103 = vpop.permute.xlu0 %3102
        %3104 = vrot.lane.b32.xlu0 %v2929, 32
        %v3105 = vpop.permute.xlu0 %3104
        %3106 = vrot.lane.b32.xlu0 %v2932, 32
        %v3107 = vpop.permute.xlu0 %3106
        %3108 = vrot.lane.b32.xlu0 %v2937, 32
        %v3109 = vpop.permute.xlu0 %3108
        %3110 = vrot.lane.b32.xlu0 %v2940, 32
        %v3111 = vpop.permute.xlu0 %3110
        %3144 = vrot.lane.b32.xlu0 %v3002, 64
        %v3145 = vpop.permute.xlu0 %3144
        %3146 = vrot.lane.b32.xlu0 %v3005, 64
        %v3147 = vpop.permute.xlu0 %3146
        %3148 = vrot.lane.b32.xlu0 %v3010, 64
        %v3149 = vpop.permute.xlu0 %3148
        %3150 = vrot.lane.b32.xlu0 %v3013, 64
        %v3151 = vpop.permute.xlu0 %3150
        %3152 = vrot.lane.b32.xlu0 %v3018, 64
        %v3153 = vpop.permute.xlu0 %3152
        %3154 = vrot.lane.b32.xlu0 %v3021, 64
        %v3155 = vpop.permute.xlu0 %3154
        %3156 = vrot.lane.b32.xlu0 %v3026, 64
        %v3157 = vpop.permute.xlu0 %3156
        %3158 = vrot.lane.b32.xlu0 %v3029, 64
        %v3159 = vpop.permute.xlu0 %3158
        %3160 = vrot.lane.b32.xlu0 %v3034, 64
        %v3161 = vpop.permute.xlu0 %3160
        %3162 = vrot.lane.b32.xlu0 %v3037, 64
        %v3163 = vpop.permute.xlu0 %3162
        %3164 = vrot.lane.b32.xlu0 %v3042, 64
        %v3165 = vpop.permute.xlu0 %3164
        %3166 = vrot.lane.b32.xlu0 %v3045, 64
        %v3167 = vpop.permute.xlu0 %3166
        %3168 = vrot.lane.b32.xlu0 %v3050, 64
        %v3169 = vpop.permute.xlu0 %3168
        %3170 = vrot.lane.b32.xlu0 %v3053, 64
        %v3171 = vpop.permute.xlu0 %3170
        %3172 = vrot.lane.b32.xlu0 %v3058, 64
        %v3173 = vpop.permute.xlu0 %3172
        %3174 = vrot.lane.b32.xlu0 %v3061, 64
        %v3175 = vpop.permute.xlu0 %3174
        %v3192 = vsel %vm587, %v2752, %v3081
        %v3193 = vsel %vm587, %v2755, %v3083
        %v3194 = vsel %vm587, %v2760, %v3085
        %v3195 = vsel %vm587, %v2763, %v3087
        %v3196 = vsel %vm587, %v2768, %v3089
        %v3197 = vsel %vm587, %v2771, %v3091
        %v3198 = vsel %vm587, %v2776, %v3093
        %v3199 = vsel %vm587, %v2779, %v3095
        %v3200 = vsel %vm587, %v2784, %v3097
        %v3201 = vsel %vm587, %v2787, %v3099
        %v3202 = vsel %vm587, %v2792, %v3101
        %v3203 = vsel %vm587, %v2795, %v3103
        %v3204 = vsel %vm587, %v2800, %v3105
        %v3205 = vsel %vm587, %v2803, %v3107
        %v3206 = vsel %vm587, %v2808, %v3109
        %v3207 = vsel %vm587, %v2811, %v3111
        %v3208 = vsel %vm1402, %v3192, %v3145
        %v3209 = vsel %vm1402, %v3193, %v3147
        %v3210 = vsel %vm1402, %v3194, %v3149
        %v3211 = vsel %vm1402, %v3195, %v3151
        %v3212 = vsel %vm1402, %v3196, %v3153
        %v3213 = vsel %vm1402, %v3197, %v3155
        %v3214 = vsel %vm1402, %v3198, %v3157
        %v3215 = vsel %vm1402, %v3199, %v3159
        %v3216 = vsel %vm1402, %v3200, %v3161
        %v3217 = vsel %vm1402, %v3201, %v3163
        %v3218 = vsel %vm1402, %v3202, %v3165
        %v3219 = vsel %vm1402, %v3203, %v3167
        %v3220 = vsel %vm1402, %v3204, %v3169
        %v3221 = vsel %vm1402, %v3205, %v3171
        %v3222 = vsel %vm1402, %v3206, %v3173
        %v3223 = vsel %vm1402, %v3207, %v3175
        %v3224 = vtanh.pop %v3208
        %v3225 = vtanh.pop %v3209
        %v3226 = vtanh.pop %v3210
        %v3227 = vtanh.pop %v3211
        %v3228 = vtanh.pop %v3212
        %v3229 = vtanh.pop %v3213
        %v3230 = vtanh.pop %v3214
        %v3231 = vtanh.pop %v3215
        %v3232 = vtanh.pop %v3216
        %v3233 = vtanh.pop %v3217
        %v3234 = vtanh.pop %v3218
        %v3235 = vtanh.pop %v3219
        %v3236 = vtanh.pop %v3220
        %v3237 = vtanh.pop %v3221
        %v3238 = vtanh.pop %v3222
        %v3239 = vtanh.pop %v3223
        %v3240 = vpack.c.bf16 %v3225, %v3224
        %v3241 = vpack.c.bf16 %v3227, %v3226
        %v3242 = vpack.c.bf16 %v3229, %v3228
        %v3243 = vpack.c.bf16 %v3231, %v3230
        %v3244 = vpack.c.bf16 %v3233, %v3232
        %v3245 = vpack.c.bf16 %v3235, %v3234
        %v3246 = vpack.c.bf16 %v3237, %v3236
        %v3247 = vpack.c.bf16 %v3239, %v3238
        %s3248 = scalar_lea.vmem %s6, 96
        %v3249 = vld [vmem:[%s3248] sm:$0xf]
        %v3250 = vld [vmem:[%s3248 + $0x4] sm:$0xf]
        %v3251 = vld [vmem:[%s3248 + $0x8] sm:$0xf]
        %v3252 = vld [vmem:[%s3248 + $0xc] sm:$0xf]
        %v3253 = vld [vmem:[%s3248 + $0x10] sm:$0xf]
        %v3254 = vld [vmem:[%s3248 + $0x14] sm:$0xf]
        %v3255 = vld [vmem:[%s3248 + $0x18] sm:$0xf]
        %v3256 = vld [vmem:[%s3248 + $0x1c] sm:$0xf]
        %v3257 = vld [vmem:[%s3248 + $0x20] sm:$0xf]
        %v3258 = vld [vmem:[%s3248 + $0x24] sm:$0xf]
        %v3259 = vld [vmem:[%s3248 + $0x28] sm:$0xf]
        %v3260 = vld [vmem:[%s3248 + $0x2c] sm:$0xf]
        %s3261 = scalar_lea.vmem %s7, 2
        %v3262 = vld [vmem:[%s3261] sm:$0x1]
        %v3264 = vlaneseq
        %v3265 = vshrl.u32 %v3264, 7
        %v3266 = vsub.s32 0, %v3265
        %v3267 = vrot.slane %v3262, %v3266
        %v3281 = vunpack.c.l.b16 %v3249
        %v3282 = vunpack.c.l.b16 %v3250
        %v3283 = vunpack.c.l.b16 %v3251
        %v3284 = vunpack.c.l.b16 %v3252
        %v3285 = vunpack.c.l.b16 %v3253
        %v3286 = vunpack.c.l.b16 %v3254
        %v3287 = vunpack.c.l.b16 %v3255
        %v3288 = vunpack.c.l.b16 %v3256
        %v3289 = vunpack.c.l.b16 %v3257
        %v3290 = vunpack.c.l.b16 %v3258
        %v3291 = vunpack.c.l.b16 %v3259
        %v3292 = vunpack.c.l.b16 %v3260
        %v3293 = vpack.c.b16 %v3282, %v3281
        %v3294 = vpack.c.b16 %v3284, %v3283
        %v3295 = vpack.c.b16 %v3286, %v3285
        %v3296 = vpack.c.b16 %v3288, %v3287
        %v3297 = vpack.c.b16 %v3290, %v3289
        %v3298 = vpack.c.b16 %v3292, %v3291
        %v3306 = vsel %vm1498, %v3240, 0
        %v3309 = vsel %vm1498, %v3241, 0
        %v3312 = vsel %vm1498, %v3242, 0
        %v3315 = vsel %vm1498, %v3243, 0
        %v3318 = vsel %vm1498, %v3244, 0
        %v3321 = vsel %vm1498, %v3245, 0
        %v3324 = vsel %vm1498, %v3246, 0
        %v3327 = vsel %vm1498, %v3247, 0
        %3329 = vmatprep.subr.bf16.mxu0 0
        %3330 = vmatpush1.bf16.msra.mxu0 0
        %3331 = vmatprep.subr.bf16.mxu0 0
        %3332 = vmatpush1.bf16.msra.mxu0 0
        %3333 = vmatprep.subr.bf16.mxu0 0
        %3334 = vmatpush1.bf16.msra.mxu0 %v3298
        %3335 = vmatprep.subr.bf16.mxu0 0
        %3336 = vmatpush1.bf16.msra.mxu0 %v3297
        %3337 = vmatprep.subr.bf16.mxu0 0
        %3338 = vmatpush1.bf16.msra.mxu0 %v3296
        %3339 = vmatprep.subr.bf16.mxu0 0
        %3340 = vmatpush1.bf16.msra.mxu0 %v3295
        %3341 = vmatprep.subr.bf16.mxu0 0
        %3342 = vmatpush1.bf16.msra.mxu0 %v3294
        %3343 = vmatprep.subr.bf16.mxu0 0
        %3344 = vmatpush1.bf16.msra.mxu0 %v3293
        %3345 = vmatprep.subr.bf16.mxu0 0
        %3346 = vmatpush2.bf16.msra.mxu0 0
        %3347 = vmatprep.subr.bf16.mxu0 0
        %3348 = vmatpush2.bf16.msra.mxu0 0
        %3349 = vmatprep.subr.bf16.mxu0 0
        %3350 = vmatpush2.bf16.msra.mxu0 0
        %3351 = vmatprep.subr.bf16.mxu0 0
        %3352 = vmatpush2.bf16.msra.mxu0 0
        %3353 = vmatprep.subr.bf16.mxu0 0
        %3354 = vmatpush2.bf16.msra.mxu0 0
        %3355 = vmatprep.subr.bf16.mxu0 0
        %3356 = vmatpush2.bf16.msra.mxu0 0
        %3357 = vmatprep.subr.bf16.mxu0 0
        %3358 = vmatpush2.bf16.msra.mxu0 0
        %3359 = vmatprep.subr.bf16.mxu0 0
        %3360 = vmatpush2.bf16.msra.mxu0 0
        %3361 = vmatprep.mubr.bf16.mxu0 0
        %3362 = vmatmul.mubr.bf16.gmra.mxu0 %v3306
        %v3363 = vpop.f32.mrf.mxu0
        %v3364 = vadd.f32 %v3267, %v3363
        %v3365 = vpop.f32.mrf.mxu0
        %v3366 = vpop.f32.mrf.mxu0
        %v3367 = vadd.f32 %v3267, %v3366
        %v3368 = vpop.f32.mrf.mxu0
        %3369 = vmatprep.mubr.bf16.mxu0 0
        %3370 = vmatmul.mubr.bf16.gmra.mxu0 %v3309
        %v3371 = vpop.f32.mrf.mxu0
        %v3372 = vadd.f32 %v3267, %v3371
        %v3373 = vpop.f32.mrf.mxu0
        %v3374 = vpop.f32.mrf.mxu0
        %v3375 = vadd.f32 %v3267, %v3374
        %v3376 = vpop.f32.mrf.mxu0
        %3377 = vmatprep.mubr.bf16.mxu0 0
        %3378 = vmatmul.mubr.bf16.gmra.mxu0 %v3312
        %v3379 = vpop.f32.mrf.mxu0
        %v3380 = vadd.f32 %v3267, %v3379
        %v3381 = vpop.f32.mrf.mxu0
        %v3382 = vpop.f32.mrf.mxu0
        %v3383 = vadd.f32 %v3267, %v3382
        %v3384 = vpop.f32.mrf.mxu0
        %3385 = vmatprep.mubr.bf16.mxu0 0
        %3386 = vmatmul.mubr.bf16.gmra.mxu0 %v3315
        %v3387 = vpop.f32.mrf.mxu0
        %v3388 = vadd.f32 %v3267, %v3387
        %v3389 = vpop.f32.mrf.mxu0
        %v3390 = vpop.f32.mrf.mxu0
        %v3391 = vadd.f32 %v3267, %v3390
        %v3392 = vpop.f32.mrf.mxu0
        %3393 = vmatprep.mubr.bf16.mxu0 0
        %3394 = vmatmul.mubr.bf16.gmra.mxu0 %v3318
        %v3395 = vpop.f32.mrf.mxu0
        %v3396 = vadd.f32 %v3267, %v3395
        %v3397 = vpop.f32.mrf.mxu0
        %v3398 = vpop.f32.mrf.mxu0
        %v3399 = vadd.f32 %v3267, %v3398
        %v3400 = vpop.f32.mrf.mxu0
        %3401 = vmatprep.mubr.bf16.mxu0 0
        %3402 = vmatmul.mubr.bf16.gmra.mxu0 %v3321
        %v3403 = vpop.f32.mrf.mxu0
        %v3404 = vadd.f32 %v3267, %v3403
        %v3405 = vpop.f32.mrf.mxu0
        %v3406 = vpop.f32.mrf.mxu0
        %v3407 = vadd.f32 %v3267, %v3406
        %v3408 = vpop.f32.mrf.mxu0
        %3409 = vmatprep.mubr.bf16.mxu0 0
        %3410 = vmatmul.mubr.bf16.gmra.mxu0 %v3324
        %v3411 = vpop.f32.mrf.mxu0
        %v3412 = vadd.f32 %v3267, %v3411
        %v3413 = vpop.f32.mrf.mxu0
        %v3414 = vpop.f32.mrf.mxu0
        %v3415 = vadd.f32 %v3267, %v3414
        %v3416 = vpop.f32.mrf.mxu0
        %3417 = vmatprep.mubr.bf16.mxu0 0
        %3418 = vmatmul.mubr.bf16.gmra.mxu0 %v3327
        %v3419 = vpop.f32.mrf.mxu0
        %v3420 = vadd.f32 %v3267, %v3419
        %v3421 = vpop.f32.mrf.mxu0
        %v3422 = vpop.f32.mrf.mxu0
        %v3423 = vadd.f32 %v3267, %v3422
        %v3424 = vpop.f32.mrf.mxu0
        %3425 = vdwg.mxu0
        %v3426 = vadd.f32 %v3364, %v2539
        %v3427 = vadd.f32 %v3367, %v2540
        %v3428 = vadd.f32 %v3372, %v2541
        %v3429 = vadd.f32 %v3375, %v2542
        %v3430 = vadd.f32 %v3380, %v2543
        %v3431 = vadd.f32 %v3383, %v2544
        %v3432 = vadd.f32 %v3388, %v2545
        %v3433 = vadd.f32 %v3391, %v2546
        %v3434 = vadd.f32 %v3396, %v2547
        %v3435 = vadd.f32 %v3399, %v2548
        %v3436 = vadd.f32 %v3404, %v2549
        %v3437 = vadd.f32 %v3407, %v2550
        %v3438 = vadd.f32 %v3412, %v2551
        %v3439 = vadd.f32 %v3415, %v2552
        %v3440 = vadd.f32 %v3420, %v2553
        %v3441 = vadd.f32 %v3423, %v2554
        %v3442 = vtanh.pop %v3426
        %v3443 = vtanh.pop %v3427
        %v3444 = vtanh.pop %v3428
        %v3445 = vtanh.pop %v3429
        %v3446 = vtanh.pop %v3430
        %v3447 = vtanh.pop %v3431
        %v3448 = vtanh.pop %v3432
        %v3449 = vtanh.pop %v3433
        %v3450 = vtanh.pop %v3434
        %v3451 = vtanh.pop %v3435
        %v3452 = vtanh.pop %v3436
        %v3453 = vtanh.pop %v3437
        %v3454 = vtanh.pop %v3438
        %v3455 = vtanh.pop %v3439
        %v3456 = vtanh.pop %v3440
        %v3457 = vtanh.pop %v3441
        %3458 = vst.msk [vmem:[%s347] sm:$0xff] %vm587, %v3442
        %3459 = vst.msk [vmem:[%s347 + $0x8] sm:$0xff] %vm587, %v3443
        %3460 = vst.msk [vmem:[%s347 + $0x10] sm:$0xff] %vm587, %v3444
        %3461 = vst.msk [vmem:[%s347 + $0x18] sm:$0xff] %vm587, %v3445
        %3462 = vst.msk [vmem:[%s347 + $0x20] sm:$0xff] %vm587, %v3446
        %3463 = vst.msk [vmem:[%s347 + $0x28] sm:$0xff] %vm587, %v3447
        %3464 = vst.msk [vmem:[%s347 + $0x30] sm:$0xff] %vm587, %v3448
        %3465 = vst.msk [vmem:[%s347 + $0x38] sm:$0xff] %vm587, %v3449
        %3466 = vst.msk [vmem:[%s347 + $0x40] sm:$0xff] %vm587, %v3450
        %3467 = vst.msk [vmem:[%s347 + $0x48] sm:$0xff] %vm587, %v3451
        %3468 = vst.msk [vmem:[%s347 + $0x50] sm:$0xff] %vm587, %v3452
        %3469 = vst.msk [vmem:[%s347 + $0x58] sm:$0xff] %vm587, %v3453
        %3470 = vst.msk [vmem:[%s347 + $0x60] sm:$0xff] %vm587, %v3454
        %3471 = vst.msk [vmem:[%s347 + $0x68] sm:$0xff] %vm587, %v3455
        %3472 = vst.msk [vmem:[%s347 + $0x70] sm:$0xff] %vm587, %v3456
        %3473 = vst.msk [vmem:[%s347 + $0x78] sm:$0xff] %vm587, %v3457
        %s3474 = smul.u32 16, %s22
        %p3475 = scmp.lt.s32.totalorder %s3474, 31
        %s3476 = scalar_select %p3475, %s3474, 31
        %s3477 = smul.addr %s3476, 8
        %s3478 = scalar_lea.vmem %s8, %s3477
        // Predicated region
        $region57: #{tpu_custom_call.1} parent=51 // pred_check
          %p3479 = pneg %p218
        $region58: #{tpu_custom_call.1} parent=51 // pred_check_branch
          %3481 = sbr.rel (%p3479) target = $region60
        $region59: #{tpu_custom_call.1} parent=51 // pred_region
          %s3482 = smul.u32 16, %s22
        $region60: #{tpu_custom_call.1} parent=51 // pred_fallthru
          _
      $region52: #{tpu_custom_call.1} parent=5 // pred_fallthru
        _
      %p3483 = scmp.le.s32.totalorder 2, %s17
      // Predicated region
      $region61: #{tpu_custom_call.1} parent=5 // pred_check
        %p3484 = pneg %p3483
      $region62: #{tpu_custom_call.1} parent=5 // pred_check_branch
        %3486 = sbr.rel (%p3484) target = $region64
      $region63: #{tpu_custom_call.1} parent=5 // pred_region
        %s3487 = ssub.s32 %s17, 2
        // Predicated region
        $region65: #{tpu_custom_call.1} parent=63 // pred_check
          %p3488 = pneg %p224
        $region66: #{tpu_custom_call.1} parent=63 // pred_check_branch
          %3490 = sbr.rel (%p3488) target = $region68
        $region67: #{tpu_custom_call.1} parent=63 // pred_region
          %s3491 = smul.u32 16, %s23
          %p3492 = scmp.lt.s32.totalorder %s3491, 31
          %s3493 = scalar_select %p3492, %s3491, 31
          %s3494 = smul.addr %s3493, 8
          %s3495 = scalar_lea.vmem %s8, %s3494
        $region68: #{tpu_custom_call.1} parent=63 // pred_fallthru
          _
      $region64: #{tpu_custom_call.1} parent=5 // pred_fallthru
        _
    $region6: #{tpu_custom_call.1} parent=1 // loop_footer
      %s21 = sadd.s32 1, %s17
    $region7: #{tpu_custom_call.1} parent=1 // loop_footer_branch
      %16 = sbr.rel target = $region3
    $region8: #{tpu_custom_call.1} parent=1 // loop_exit
      _
    %3496 = vsyncpa [#allocation3], 1
    %s3497 = scalar_lea.sflag [#allocation3], 1
    %3498 = vsyncpa %s3497, 1

</llo_original>
